<compile_context>
chip_gen: v7x
topology: tpu7x:2x2x1
jax: 0.10.0
libtpu: 0.0.40
codegen_flags: <defaults>
</compile_context>

<pallas_src>
import functools

import jax
import jax.numpy as jnp
from jax.experimental import pallas as pl
from jax.experimental.pallas import tpu as pltpu

EPS = 1e-5
_MIB = 1024 * 1024


# ----------------------------------------------------------------------------
# helpers
# ----------------------------------------------------------------------------
def _pick_rows(H, W, bytes_per_pixel, budget=4 * _MIB, lane_align=False):
    """Largest divisor TH of H whose strip (TH*W pixels) fits the byte budget.

    lane_align additionally requires TH*W % 128 == 0 (or TH == H) so the strip
    can be the minormost dim of a channel-major block.
    """
    def ok(t):
        return (not lane_align) or t == H or (t * W) % 128 == 0

    best = None
    for t in range(1, H + 1):
        if H % t == 0 and ok(t) and t * W * bytes_per_pixel <= budget:
            best = t
    if best is None:                      # nothing fits the budget: take the
        for t in range(1, H + 1):         # smallest legal strip instead.
            if H % t == 0 and ok(t):
                best = t
                break
    return best if best is not None else H


def _vmem_limit(io_bytes, resident_bytes=0):
    """Scoped-VMEM request: double-buffered I/O blocks + once-counted scratch."""
    cap = 64 * _MIB                                   # assume v7x if unknown
    try:
        cap = int(pltpu.get_tpu_info().vmem_capacity_bytes)
    except Exception:
        pass
    need = 2 * int(io_bytes) + int(resident_bytes) + 4 * _MIB
    return int(min(max(need, 16 * _MIB), (5 * cap) // 8))


def _fold_bn(sum_c, sq_c, count, gamma, beta):
    """Per-channel [sum, sumsq] -> folded affine (scale, bias) so y = x*s + b."""
    mean = sum_c / count
    var = jnp.maximum(sq_c / count - mean * mean, 0.0)
    scale = gamma.reshape(-1) * jax.lax.rsqrt(var + EPS)
    bias = beta.reshape(-1) - mean * scale
    return scale, bias


def _stats_rows(h):
    """(rows, C) f32 -> (2, C): [per-channel sum ; per-channel sum of squares]."""
    s = jnp.sum(h, axis=0, keepdims=True)
    q = jnp.sum(h * h, axis=0, keepdims=True)
    row = jax.lax.broadcasted_iota(jnp.int32, (2, h.shape[1]), 0)
    return jnp.where(row == 0, s, q)      # single lane-dense store at the caller


def _stats_cols(h):
    """(C, cols) f32 -> (C, 2): [per-channel sum , per-channel sum of squares]."""
    s = jnp.sum(h, axis=1, keepdims=True)
    q = jnp.sum(h * h, axis=1, keepdims=True)
    col = jax.lax.broadcasted_iota(jnp.int32, (h.shape[0], 2), 1)
    return jnp.where(col == 0, s, q)


# ----------------------------------------------------------------------------
# kernels
# ----------------------------------------------------------------------------
def _k_conv1_from_nchw(x_ref, w_ref, h_ref, st_ref):
    """conv1 (1x1) straight off a channel-major NCHW block + BN1 partial stats."""
    xb = x_ref[0].astype(w_ref.dtype)                  # (Cin, RT)
    h = jax.lax.dot_general(                           # x^T @ w1  -> (RT, width)
        xb, w_ref[...], (((0,), (0,)), ((), ())),
        preferred_element_type=jnp.float32)
    h_ref[...] = h.astype(h_ref.dtype)
    st_ref[0] = _stats_rows(h)


def _make_k_conv3x3(W, TH, width, CTR, S):
    """folded bn1+relu + 3x3 conv (stride 1, pad 1) on one H-strip per step."""
    Pb = TH * W

    def kernel(h1_ref, top_ref, bot_ref, s_ref, b_ref, m_ref, w2_ref,
               h2_ref, st_ref, pad_ref):
        s_idx = pl.program_id(1)
        cdt = pad_ref.dtype

        # folded bn1 scale/bias + relu (f32 math), strip + 1-row halos
        a = jnp.maximum(h1_ref[...].astype(jnp.float32) * s_ref[...]
                        + b_ref[...], 0.0)                       # (Pb, width)
        tval = jnp.where(s_idx > 0, 1.0, 0.0)      # zero halo at image top
        bval = jnp.where(s_idx < S - 1, 1.0, 0.0)  # zero halo at image bottom
        top = jnp.maximum(top_ref[...].astype(jnp.float32) * s_ref[...]
                          + b_ref[...], 0.0) * tval              # (W, width)
        bot = jnp.maximum(bot_ref[...].astype(jnp.float32) * s_ref[...]
                          + b_ref[...], 0.0) * bval              # (W, width)

        rmask = m_ref[:, 0:1]                      # zero where w == W-1 (dx=-1 src)
        lmask = m_ref[:, 1:2]                      # zero where w == 0   (dx=+1 src)
        rm_row, lm_row = rmask[0:W, :], lmask[0:W, :]

        # Two single rows that are read but never written this step must be 0
        # (their logical value is masked out); everything else is written below,
        # so no stale scratch data is ever read (pipeline/megacore safe).
        zrow = jnp.zeros((1, 3 * width), cdt)
        pad_ref[CTR - W:CTR - W + 1, :] = zrow
        pad_ref[CTR + Pb + W - 1:CTR + Pb + W, :] = zrow

        # Pre-shifted, pre-masked bands: band b holds the dx = b-1 tap source,
        # shifted by -dx rows, so each dy-slice of the buffer is already the
        # K-concatenated (Pb, 3*width) patch.
        pad_ref[CTR + 1 - W:CTR + 1, 0:width] = (top * rm_row).astype(cdt)
        pad_ref[CTR + 1:CTR + 1 + Pb, 0:width] = (a * rmask).astype(cdt)
        pad_ref[CTR + 1 + Pb:CTR + 1 + Pb + W, 0:width] = (bot * rm_row).astype(cdt)

        pad_ref[CTR - W:CTR, width:2 * width] = top.astype(cdt)
        pad_ref[CTR:CTR + Pb, width:2 * width] = a.astype(cdt)
        pad_ref[CTR + Pb:CTR + Pb + W, width:2 * width] = bot.astype(cdt)

        pad_ref[CTR - 1 - W:CTR - 1, 2 * width:3 * width] = (top * lm_row).astype(cdt)
        pad_ref[CTR - 1:CTR - 1 + Pb, 2 * width:3 * width] = (a * lmask).astype(cdt)
        pad_ref[CTR - 1 + Pb:CTR - 1 + Pb + W, 2 * width:3 * width] = \
            (bot * lm_row).astype(cdt)

        # Three sublane-aligned big-K matmuls (dy = -1, 0, +1), f32 accumulation
        # kept in the expression (no separate zero-init/RMW pass).
        h = jnp.dot(pad_ref[CTR - W:CTR - W + Pb, :], w2_ref[0],
                    preferred_element_type=jnp.float32)
        h = h + jnp.dot(pad_ref[CTR:CTR + Pb, :], w2_ref[1],
                        preferred_element_type=jnp.float32)
        h = h + jnp.dot(pad_ref[CTR + W:CTR + W + Pb, :], w2_ref[2],
                        preferred_element_type=jnp.float32)

        h2_ref[...] = h.astype(h2_ref.dtype)
        st_ref[0] = _stats_rows(h)

    return kernel


def _k_bn_conv3_cm(h2_ref, s_ref, b_ref, w3t_ref, h3_ref, st_ref):
    """folded bn2+relu + conv3 (1x1); emits a channel-major block + BN3 stats."""
    a = jnp.maximum(h2_ref[...].astype(jnp.float32) * s_ref[...]
                    + b_ref[...], 0.0)                           # (RT, width)
    h = jax.lax.dot_general(                           # w3^T @ a^T -> (Cout, RT)
        w3t_ref[...], a.astype(w3t_ref.dtype), (((1,), (1,)), ((), ())),
        preferred_element_type=jnp.float32)
    h3_ref[0] = h.astype(h3_ref.dtype)
    st_ref[0] = _stats_cols(h)


def _k_bn_residual_relu(h3_ref, s_ref, b_ref, x_ref, o_ref):
    """folded bn3 + residual add + relu, channel-major (writes NCHW directly)."""
    o_ref[0] = jnp.maximum(
        h3_ref[0].astype(jnp.float32) * s_ref[...] + b_ref[...] + x_ref[0], 0.0)


# ----------------------------------------------------------------------------
# forward
# ----------------------------------------------------------------------------
@functools.partial(jax.jit, static_argnames=("compute_dtype",))
def bottleneck_forward(x_nchw, params, compute_dtype=jnp.bfloat16):
    """x_nchw: (N, Cin, H, W) float32. Returns (N, Cout, H, W) float32."""
    w1, w2, w3, g1, b1, g2, b2, g3, b3 = params
    N, Cin, H, W = x_nchw.shape
    width = w1.shape[1]
    Cout = w3.shape[1]
    assert Cout == Cin, "residual add requires planes*expansion == inplanes"
    assert W % 8 == 0, "kernel assumes the image width is a multiple of 8"
    HW = H * W
    NP = N * HW

    cdt = jnp.dtype(compute_dtype)
    csz = cdt.itemsize
    f32 = jnp.float32
    par2 = ("parallel", "parallel")

    # Contiguous (free) reshape only; layout conversion happens inside kernels.
    x3 = x_nchw.reshape(N, Cin, HW)
    w1c = w1.astype(cdt)                               # (Cin, width)
    w2c = w2.reshape(3, 3 * width, width).astype(cdt)  # dy-major, dx stacked in K
    w3t = jnp.transpose(w3).astype(cdt)                # (Cout, width)

    # ---- stage 1: conv1 (1x1) from NCHW + BN1 partial stats -------------------
    th1 = _pick_rows(H, W, Cin * 4 + width * (csz + 4), lane_align=True)
    RT1, S1 = th1 * W, H // th1
    h1, st1 = pl.pallas_call(
        _k_conv1_from_nchw,
        out_shape=(jax.ShapeDtypeStruct((NP, width), cdt),
                   jax.ShapeDtypeStruct((N * S1, 2, width), f32)),
        grid_spec=pltpu.PrefetchScalarGridSpec(
            num_scalar_prefetch=0, grid=(N, S1),
            in_specs=[pl.BlockSpec((1, Cin, RT1), lambda n, r: (n, 0, r)),
                      pl.BlockSpec((Cin, width), lambda n, r: (0, 0))],
            out_specs=(pl.BlockSpec((RT1, width), lambda n, r: (n * S1 + r, 0)),
                       pl.BlockSpec((1, 2, width), lambda n, r: (n * S1 + r, 0, 0)))),
        compiler_params=pltpu.CompilerParams(
            dimension_semantics=par2,
            vmem_limit_bytes=_vmem_limit(
                RT1 * (Cin * 4 + width * csz),
                Cin * width * csz + RT1 * width * 4)),
    )(x3, w1c)
    tot1 = jnp.sum(st1, axis=0)
    s1v, b1v = _fold_bn(tot1[0], tot1[1], NP, g1, b1)
    scale1, bias1 = s1v.reshape(1, width), b1v.reshape(1, width)

    # ---- stage 2: bn1+relu + 3x3 conv (H-strips, 1-row halo) + BN2 stats ------
    th2 = _pick_rows(H, W, width * (4 * csz + 10))
    Pb, S2 = th2 * W, H // th2
    CTR = ((W + 1 + 7) // 8) * 8                       # sublane-aligned centre
    PADROWS = CTR + Pb + W + 1

    wv = jnp.arange(Pb, dtype=jnp.int32) % W           # precomputed border masks
    masks = jnp.stack([(wv != W - 1).astype(f32),      # rmask (dx = -1 sources)
                       (wv != 0).astype(f32)], axis=1)  # lmask (dx = +1 sources)

    h2, st2 = pl.pallas_call(
        _make_k_conv3x3(W, th2, width, CTR, S2),
        out_shape=(jax.ShapeDtypeStruct((NP, width), cdt),
                   jax.ShapeDtypeStruct((N * S2, 2, width), f32)),
        grid_spec=pltpu.PrefetchScalarGridSpec(
            num_scalar_prefetch=0, grid=(N, S2),
            in_specs=[
                pl.BlockSpec((Pb, width), lambda n, s: (n * S2 + s, 0)),
                pl.BlockSpec((W, width),
                             lambda n, s: (n * H + jnp.maximum(s * th2 - 1, 0), 0)),
                pl.BlockSpec((W, width),
                             lambda n, s: (n * H + jnp.minimum((s + 1) * th2, H - 1), 0)),
                pl.BlockSpec((1, width), lambda n, s: (0, 0)),
                pl.BlockSpec((1, width), lambda n, s: (0, 0)),
                pl.BlockSpec((Pb, 2), lambda n, s: (0, 0)),
                pl.BlockSpec((3, 3 * width, width), lambda n, s: (0, 0, 0)),
            ],
            out_specs=(pl.BlockSpec((Pb, width), lambda n, s: (n * S2 + s, 0)),
                       pl.BlockSpec((1, 2, width), lambda n, s: (n * S2 + s, 0, 0))),
            scratch_shapes=[pltpu.VMEM((PADROWS, 3 * width), cdt)]),
        compiler_params=pltpu.CompilerParams(
            dimension_semantics=par2,
            vmem_limit_bytes=_vmem_limit(
                Pb * width * 2 * csz + 2 * W * width * csz + Pb * 2 * 4,
                PADROWS * 3 * width * csz + 9 * width * width * csz
                + 3 * Pb * width * 4)),
    )(h1, h1, h1, scale1, bias1, masks, w2c)
    tot2 = jnp.sum(st2, axis=0)
    s2v, b2v = _fold_bn(tot2[0], tot2[1], NP, g2, b2)
    scale2, bias2 = s2v.reshape(1, width), b2v.reshape(1, width)

    # ---- stage 3: bn2+relu + conv3 (1x1) -> channel-major + BN3 stats ---------
    th3 = _pick_rows(H, W, width * (csz + 6) + Cout * (csz + 4), lane_align=True)
    RT3, S3 = th3 * W, H // th3
    h3, st3 = pl.pallas_call(
        _k_bn_conv3_cm,
        out_shape=(jax.ShapeDtypeStruct((N, Cout, HW), cdt),
                   jax.ShapeDtypeStruct((N * S3, Cout, 2), f32)),
        grid_spec=pltpu.PrefetchScalarGridSpec(
            num_scalar_prefetch=0, grid=(N, S3),
            in_specs=[pl.BlockSpec((RT3, width), lambda n, r: (n * S3 + r, 0)),
                      pl.BlockSpec((1, width), lambda n, r: (0, 0)),
                      pl.BlockSpec((1, width), lambda n, r: (0, 0)),
                      pl.BlockSpec((Cout, width), lambda n, r: (0, 0))],
            out_specs=(pl.BlockSpec((1, Cout, RT3), lambda n, r: (n, 0, r)),
                       pl.BlockSpec((1, Cout, 2), lambda n, r: (n * S3 + r, 0, 0)))),
        compiler_params=pltpu.CompilerParams(
            dimension_semantics=par2,
            vmem_limit_bytes=_vmem_limit(
                RT3 * (width * csz + Cout * csz),
                Cout * width * csz + RT3 * (width + Cout) * 4)),
    )(h2, scale2, bias2, w3t)
    tot3 = jnp.sum(st3, axis=0)
    s3v, b3v = _fold_bn(tot3[:, 0], tot3[:, 1], NP, g3, b3)
    scale3, bias3 = s3v.reshape(Cout, 1), b3v.reshape(Cout, 1)

    # ---- stage 4: bn3 + residual + relu, channel-major (writes NCHW) ----------
    th4 = _pick_rows(H, W, Cout * (csz + 8) + Cin * 4, lane_align=True)
    RT4, S4 = th4 * W, H // th4
    out = pl.pallas_call(
        _k_bn_residual_relu,
        out_shape=jax.ShapeDtypeStruct((N, Cout, HW), f32),
        grid_spec=pltpu.PrefetchScalarGridSpec(
            num_scalar_prefetch=0, grid=(N, S4),
            in_specs=[pl.BlockSpec((1, Cout, RT4), lambda n, r: (n, 0, r)),
                      pl.BlockSpec((Cout, 1), lambda n, r: (0, 0)),
                      pl.BlockSpec((Cout, 1), lambda n, r: (0, 0)),
                      pl.BlockSpec((1, Cin, RT4), lambda n, r: (n, 0, r))],
            out_specs=pl.BlockSpec((1, Cout, RT4), lambda n, r: (n, 0, r))),
        compiler_params=pltpu.CompilerParams(
            dimension_semantics=par2,
            vmem_limit_bytes=_vmem_limit(
                RT4 * (Cout * csz + Cin * 4 + Cout * 4),
                RT4 * Cout * 4)),
    )(h3, scale3, bias3, x3)

    return out.reshape(N, Cout, H, W)


# ----------------------------------------------------------------------------
# pure-JAX reference (same semantics) for verification
# ----------------------------------------------------------------------------
def bottleneck_reference(x_nchw, params):
    w1, w2, w3, g1, b1, g2, b2, g3, b3 = params
    x = jnp.transpose(x_nchw, (0, 2, 3, 1))  # NHWC

    def bn(v, g, b, relu):
        mean = jnp.mean(v, axis=(0, 1, 2), keepdims=True)
        var = jnp.mean(jnp.square(v - mean), axis=(0, 1, 2), keepdims=True)
        y = (v - mean) * jax.lax.rsqrt(var + EPS) * g.reshape(1, 1, 1, -1) \
            + b.reshape(1, 1, 1, -1)
        return jnp.maximum(y, 0.0) if relu else y

    h = jnp.einsum("nhwc,cd->nhwd", x, w1)
    h = bn(h, g1, b1, True)
    w2_hwio = w2.reshape(3, 3, w2.shape[-2], w2.shape[-1])
    h = jax.lax.conv_general_dilated(
        h, w2_hwio, window_strides=(1, 1), padding="SAME",
        dimension_numbers=("NHWC", "HWIO", "NHWC"))
    h = bn(h, g2, b2, True)
    h = jnp.einsum("nhwc,cd->nhwd", h, w3)
    h = bn(h, g3, b3, False)
    out = jnp.maximum(h + x, 0.0)
    return jnp.transpose(out, (0, 3, 1, 2))


if __name__ == "__main__":
    # Shapes consistent with the module defaults: inplanes = planes*expansion,
    # width = planes * (base_width/64) * groups = planes * 2.
    N, H, W = 2, 16, 16
    planes = 4
    inplanes = planes * 4          # 16
    width = planes * 2             # 8   (base_width=128, groups=1)
    Cout = planes * 4              # 16

    key = jax.random.PRNGKey(0)
    ks = jax.random.split(key, 10)
    x = jax.random.normal(ks[0], (N, inplanes, H, W), jnp.float32)

    w1 = jax.random.normal(ks[1], (inplanes, width), jnp.float32) * 0.1
    w2 = jax.random.normal(ks[2], (9, width, width), jnp.float32) * 0.1
    w3 = jax.random.normal(ks[3], (width, Cout), jnp.float32) * 0.1
    g1 = 1.0 + 0.1 * jax.random.normal(ks[4], (1, width), jnp.float32)
    b1 = 0.1 * jax.random.normal(ks[5], (1, width), jnp.float32)
    g2 = 1.0 + 0.1 * jax.random.normal(ks[6], (1, width), jnp.float32)
    b2 = 0.1 * jax.random.normal(ks[7], (1, width), jnp.float32)
    g3 = 1.0 + 0.1 * jax.random.normal(ks[8], (1, Cout), jnp.float32)
    b3 = 0.1 * jax.random.normal(ks[9], (1, Cout), jnp.float32)
    params = (w1, w2, w3, g1, b1, g2, b2, g3, b3)

    ref = jax.block_until_ready(bottleneck_reference(x, params))

    # Algorithmic exactness check (f32 path).
    out_f32 = jax.block_until_ready(
        bottleneck_forward(x, params, compute_dtype=jnp.float32))
    assert out_f32.shape == (N, Cout, H, W)
    assert jnp.allclose(out_f32, ref, atol=1e-3, rtol=1e-3), "f32 mismatch"

    # Default fast path (bf16 matmul operands + bf16 inter-stage slabs).
    out_bf16 = jax.block_until_ready(bottleneck_forward(x, params))
    assert out_bf16.shape == (N, Cout, H, W)
    assert jnp.allclose(out_bf16, ref, atol=1e-1, rtol=1e-1), "bf16 mismatch"

    print("KERNEL_OK")
</pallas_src>

<mosaic_0001>
module attributes {stable_mosaic.version = 11 : i64} {
  func.func @_k_conv1_from_nchw(%arg0: i32, %arg1: i32, %arg2: memref<1x16x256xf32, #tpu.memory_space<vmem>>, %arg3: memref<16x8xf32, #tpu.memory_space<vmem>>, %arg4: memref<256x8xf32, #tpu.memory_space<vmem>>, %arg5: memref<1x2x8xf32, #tpu.memory_space<vmem>>) attributes {dimension_semantics = [#tpu.dimension_semantics<parallel>, #tpu.dimension_semantics<parallel>], iteration_bounds = array<i64: 2, 1>, scalar_prefetch = 0 : i64, scratch_operands = 0 : i64, tpu.core_type = #tpu.core_type<tc>, window_params = [{transform_indices = @transform_0, window_bounds = array<i64: 1, 16, 256>}, {pipeline_mode = #tpu.pipeline_mode<synchronous>, transform_indices = @transform_1, window_bounds = array<i64: 16, 8>}, {transform_indices = @transform_2, window_bounds = array<i64: 256, 8>}, {transform_indices = @transform_3, window_bounds = array<i64: 1, 2, 8>}]} {
    %c0 = arith.constant 0 : index
    %c0_0 = arith.constant 0 : index
    %c0_1 = arith.constant 0 : index
    %0 = vector.load %arg2[%c0, %c0_0, %c0_1] : memref<1x16x256xf32, #tpu.memory_space<vmem>>, vector<1x16x256xf32>
    %1 = vector.shape_cast %0 : vector<1x16x256xf32> to vector<16x256xf32>
    %c0_2 = arith.constant 0 : index
    %c0_3 = arith.constant 0 : index
    %2 = vector.load %arg3[%c0_2, %c0_3] : memref<16x8xf32, #tpu.memory_space<vmem>>, vector<16x8xf32>
    %cst = arith.constant dense<0.000000e+00> : vector<256x8xf32>
    %3 = tpu.matmul %1, %2, %cst {dimension_numbers = #tpu.dot_dimension_numbers<[0], [0], [1], [1], [0, 1, 1, 1], [], []>} : vector<16x256xf32>, vector<16x8xf32>, vector<256x8xf32> -> vector<256x8xf32>
    %c0_4 = arith.constant 0 : index
    %c0_5 = arith.constant 0 : index
    %4 = vector.load %arg4[%c0_4, %c0_5] : memref<256x8xf32, #tpu.memory_space<vmem>>, vector<256x8xf32>
    tpu.vector_store %arg4[%c0_4, %c0_5], %3 {strides = array<i32>} : memref<256x8xf32, #tpu.memory_space<vmem>>, vector<256x8xf32>,
    %cst_6 = arith.constant dense<0.000000e+00> : vector<8xf32>
    %5 = vector.multi_reduction <add>, %3, %cst_6 [0] : vector<256x8xf32> to vector<8xf32>
    %6 = vector.shape_cast %5 : vector<8xf32> to vector<1x8xf32>
    %7 = arith.mulf %3, %3 : vector<256x8xf32>
    %cst_7 = arith.constant dense<0.000000e+00> : vector<8xf32>
    %8 = vector.multi_reduction <add>, %7, %cst_7 [0] : vector<256x8xf32> to vector<8xf32>
    %9 = vector.shape_cast %8 : vector<8xf32> to vector<1x8xf32>
    %10 = tpu.iota {dimensions = array<i32: 0>} : vector<2x8xi32>
    %c0_i32 = arith.constant 0 : i32
    %11 = vector.broadcast %c0_i32 : i32 to vector<2x8xi32>
    %12 = arith.cmpi eq, %10, %11 : vector<2x8xi32>
    %13 = vector.shape_cast %6 : vector<1x8xf32> to vector<1x8xf32>
    %14 = vector.broadcast %13 : vector<1x8xf32> to vector<2x8xf32>
    %15 = vector.shape_cast %9 : vector<1x8xf32> to vector<1x8xf32>
    %16 = vector.broadcast %15 : vector<1x8xf32> to vector<2x8xf32>
    %17 = arith.select %12, %14, %16 : vector<2x8xi1>, vector<2x8xf32>
    %c0_8 = arith.constant 0 : index
    %c0_9 = arith.constant 0 : index
    %c0_10 = arith.constant 0 : index
    %18 = vector.load %arg5[%c0_8, %c0_9, %c0_10] : memref<1x2x8xf32, #tpu.memory_space<vmem>>, vector<1x2x8xf32>
    %19 = vector.shape_cast %18 : vector<1x2x8xf32> to vector<2x8xf32>
    %20 = vector.shape_cast %17 : vector<2x8xf32> to vector<1x2x8xf32>
    tpu.vector_store %arg5[%c0_8, %c0_9, %c0_10], %20 {strides = array<i32>} : memref<1x2x8xf32, #tpu.memory_space<vmem>>, vector<1x2x8xf32>,
    return
  }
  func.func @transform_0(%arg0: i32, %arg1: i32) -> (i32, i32, i32) {
    %c0_i32 = arith.constant 0 : i32
    %c0_i32_0 = arith.constant 0 : i32
    return %arg0, %c0_i32, %arg1 : i32, i32, i32
  }
  func.func @transform_1(%arg0: i32, %arg1: i32) -> (i32, i32) {
    %c0_i32 = arith.constant 0 : i32
    %c0_i32_0 = arith.constant 0 : i32
    %c0_i32_1 = arith.constant 0 : i32
    return %c0_i32, %c0_i32_0 : i32, i32
  }
  func.func @transform_2(%arg0: i32, %arg1: i32) -> (i32, i32) {
    %c1_i32 = arith.constant 1 : i32
    %0 = arith.muli %arg0, %c1_i32 : i32
    %1 = arith.addi %0, %arg1 : i32
    %c0_i32 = arith.constant 0 : i32
    %c0_i32_0 = arith.constant 0 : i32
    return %1, %c0_i32 : i32, i32
  }
  func.func @transform_3(%arg0: i32, %arg1: i32) -> (i32, i32, i32) {
    %c1_i32 = arith.constant 1 : i32
    %0 = arith.muli %arg0, %c1_i32 : i32
    %1 = arith.addi %0, %arg1 : i32
    %c0_i32 = arith.constant 0 : i32
    %c0_i32_0 = arith.constant 0 : i32
    %c0_i32_1 = arith.constant 0 : i32
    return %1, %c0_i32, %c0_i32_0 : i32, i32, i32
  }
}

module attributes {stable_mosaic.version = 11 : i64} {
  func.func @kernel(%arg0: i32, %arg1: i32, %arg2: memref<256x8xf32, #tpu.memory_space<vmem>>, %arg3: memref<16x8xf32, #tpu.memory_space<vmem>>, %arg4: memref<16x8xf32, #tpu.memory_space<vmem>>, %arg5: memref<1x8xf32, #tpu.memory_space<vmem>>, %arg6: memref<1x8xf32, #tpu.memory_space<vmem>>, %arg7: memref<256x2xf32, #tpu.memory_space<vmem>>, %arg8: memref<3x24x8xf32, #tpu.memory_space<vmem>>, %arg9: memref<256x8xf32, #tpu.memory_space<vmem>>, %arg10: memref<1x2x8xf32, #tpu.memory_space<vmem>>, %arg11: memref<297x24xf32, #tpu.memory_space<vmem>>) attributes {dimension_semantics = [#tpu.dimension_semantics<parallel>, #tpu.dimension_semantics<parallel>], iteration_bounds = array<i64: 2, 1>, scalar_prefetch = 0 : i64, scratch_operands = 1 : i64, tpu.core_type = #tpu.core_type<tc>, window_params = [{transform_indices = @transform_0, window_bounds = array<i64: 256, 8>}, {transform_indices = @transform_1, window_bounds = array<i64: 16, 8>}, {transform_indices = @transform_2, window_bounds = array<i64: 16, 8>}, {pipeline_mode = #tpu.pipeline_mode<synchronous>, transform_indices = @transform_3, window_bounds = array<i64: 1, 8>}, {pipeline_mode = #tpu.pipeline_mode<synchronous>, transform_indices = @transform_4, window_bounds = array<i64: 1, 8>}, {pipeline_mode = #tpu.pipeline_mode<synchronous>, transform_indices = @transform_5, window_bounds = array<i64: 256, 2>}, {pipeline_mode = #tpu.pipeline_mode<synchronous>, transform_indices = @transform_6, window_bounds = array<i64: 3, 24, 8>}, {transform_indices = @transform_7, window_bounds = array<i64: 256, 8>}, {transform_indices = @transform_8, window_bounds = array<i64: 1, 2, 8>}]} {
    %c0 = arith.constant 0 : index
    %c0_0 = arith.constant 0 : index
    %0 = vector.load %arg2[%c0, %c0_0] : memref<256x8xf32, #tpu.memory_space<vmem>>, vector<256x8xf32>
    %c0_1 = arith.constant 0 : index
    %c0_2 = arith.constant 0 : index
    %1 = vector.load %arg5[%c0_1, %c0_2] : memref<1x8xf32, #tpu.memory_space<vmem>>, vector<1x8xf32>
    %2 = vector.broadcast %1 : vector<1x8xf32> to vector<256x8xf32>
    %3 = arith.mulf %0, %2 : vector<256x8xf32>
    %c0_3 = arith.constant 0 : index
    %c0_4 = arith.constant 0 : index
    %4 = vector.load %arg6[%c0_3, %c0_4] : memref<1x8xf32, #tpu.memory_space<vmem>>, vector<1x8xf32>
    %5 = vector.broadcast %4 : vector<1x8xf32> to vector<256x8xf32>
    %6 = arith.addf %3, %5 : vector<256x8xf32>
    %cst = arith.constant 0.000000e+00 : f32
    %7 = vector.broadcast %cst : f32 to vector<256x8xf32>
    %8 = arith.maximumf %6, %7 : vector<256x8xf32>
    %c0_i32 = arith.constant 0 : i32
    %9 = arith.cmpi sgt, %arg1, %c0_i32 : i32
    %cst_5 = arith.constant 1.000000e+00 : f32
    %cst_6 = arith.constant 0.000000e+00 : f32
    %10 = arith.select %9, %cst_5, %cst_6 : f32
    %c0_i32_7 = arith.constant 0 : i32
    %11 = arith.cmpi slt, %arg1, %c0_i32_7 : i32
    %cst_8 = arith.constant 1.000000e+00 : f32
    %cst_9 = arith.constant 0.000000e+00 : f32
    %12 = arith.select %11, %cst_8, %cst_9 : f32
    %c0_10 = arith.constant 0 : index
    %c0_11 = arith.constant 0 : index
    %13 = vector.load %arg3[%c0_10, %c0_11] : memref<16x8xf32, #tpu.memory_space<vmem>>, vector<16x8xf32>
    %c0_12 = arith.constant 0 : index
    %c0_13 = arith.constant 0 : index
    %14 = vector.load %arg5[%c0_12, %c0_13] : memref<1x8xf32, #tpu.memory_space<vmem>>, vector<1x8xf32>
    %15 = vector.broadcast %14 : vector<1x8xf32> to vector<16x8xf32>
    %16 = arith.mulf %13, %15 : vector<16x8xf32>
    %c0_14 = arith.constant 0 : index
    %c0_15 = arith.constant 0 : index
    %17 = vector.load %arg6[%c0_14, %c0_15] : memref<1x8xf32, #tpu.memory_space<vmem>>, vector<1x8xf32>
    %18 = vector.broadcast %17 : vector<1x8xf32> to vector<16x8xf32>
    %19 = arith.addf %16, %18 : vector<16x8xf32>
    %cst_16 = arith.constant 0.000000e+00 : f32
    %20 = vector.broadcast %cst_16 : f32 to vector<16x8xf32>
    %21 = arith.maximumf %19, %20 : vector<16x8xf32>
    %22 = vector.broadcast %10 : f32 to vector<16x8xf32>
    %23 = arith.mulf %21, %22 : vector<16x8xf32>
    %c0_17 = arith.constant 0 : index
    %c0_18 = arith.constant 0 : index
    %24 = vector.load %arg4[%c0_17, %c0_18] : memref<16x8xf32, #tpu.memory_space<vmem>>, vector<16x8xf32>
    %c0_19 = arith.constant 0 : index
    %c0_20 = arith.constant 0 : index
    %25 = vector.load %arg5[%c0_19, %c0_20] : memref<1x8xf32, #tpu.memory_space<vmem>>, vector<1x8xf32>
    %26 = vector.broadcast %25 : vector<1x8xf32> to vector<16x8xf32>
    %27 = arith.mulf %24, %26 : vector<16x8xf32>
    %c0_21 = arith.constant 0 : index
    %c0_22 = arith.constant 0 : index
    %28 = vector.load %arg6[%c0_21, %c0_22] : memref<1x8xf32, #tpu.memory_space<vmem>>, vector<1x8xf32>
    %29 = vector.broadcast %28 : vector<1x8xf32> to vector<16x8xf32>
    %30 = arith.addf %27, %29 : vector<16x8xf32>
    %cst_23 = arith.constant 0.000000e+00 : f32
    %31 = vector.broadcast %cst_23 : f32 to vector<16x8xf32>
    %32 = arith.maximumf %30, %31 : vector<16x8xf32>
    %33 = vector.broadcast %12 : f32 to vector<16x8xf32>
    %34 = arith.mulf %32, %33 : vector<16x8xf32>
    %c0_24 = arith.constant 0 : index
    %c0_25 = arith.constant 0 : index
    %35 = vector.load %arg7[%c0_24, %c0_25] : memref<256x2xf32, #tpu.memory_space<vmem>>, vector<256x1xf32>
    %c0_26 = arith.constant 0 : index
    %c1 = arith.constant 1 : index
    %36 = vector.load %arg7[%c0_26, %c1] : memref<256x2xf32, #tpu.memory_space<vmem>>, vector<256x1xf32>
    %37 = vector.extract_strided_slice %35 {offsets = [0, 0], sizes = [16, 1], strides = [1, 1]} : vector<256x1xf32> to vector<16x1xf32>
    %38 = vector.extract_strided_slice %36 {offsets = [0, 0], sizes = [16, 1], strides = [1, 1]} : vector<256x1xf32> to vector<16x1xf32>
    %cst_27 = arith.constant 0.000000e+00 : f32
    %39 = vector.broadcast %cst_27 : f32 to vector<1x24xf32>
    %c8 = arith.constant 8 : index
    %c0_28 = arith.constant 0 : index
    %40 = vector.load %arg11[%c8, %c0_28] : memref<297x24xf32, #tpu.memory_space<vmem>>, vector<1x24xf32>
    tpu.vector_store %arg11[%c8, %c0_28], %39 {strides = array<i32>} : memref<297x24xf32, #tpu.memory_space<vmem>>, vector<1x24xf32>,
    %c295 = arith.constant 295 : index
    %c0_29 = arith.constant 0 : index
    %41 = vector.load %arg11[%c295, %c0_29] : memref<297x24xf32, #tpu.memory_space<vmem>>, vector<1x24xf32>
    tpu.vector_store %arg11[%c295, %c0_29], %39 {strides = array<i32>} : memref<297x24xf32, #tpu.memory_space<vmem>>, vector<1x24xf32>,
    %42 = vector.broadcast %37 : vector<16x1xf32> to vector<16x8xf32>
    %43 = arith.mulf %23, %42 : vector<16x8xf32>
    %c9 = arith.constant 9 : index
    %c0_30 = arith.constant 0 : index
    %44 = vector.load %arg11[%c9, %c0_30] : memref<297x24xf32, #tpu.memory_space<vmem>>, vector<16x8xf32>
    tpu.vector_store %arg11[%c9, %c0_30], %43 {strides = array<i32>} : memref<297x24xf32, #tpu.memory_space<vmem>>, vector<16x8xf32>,
    %45 = vector.broadcast %35 : vector<256x1xf32> to vector<256x8xf32>
    %46 = arith.mulf %8, %45 : vector<256x8xf32>
    %c25 = arith.constant 25 : index
    %c0_31 = arith.constant 0 : index
    %47 = vector.load %arg11[%c25, %c0_31] : memref<297x24xf32, #tpu.memory_space<vmem>>, vector<256x8xf32>
    tpu.vector_store %arg11[%c25, %c0_31], %46 {strides = array<i32>} : memref<297x24xf32, #tpu.memory_space<vmem>>, vector<256x8xf32>,
    %48 = vector.broadcast %37 : vector<16x1xf32> to vector<16x8xf32>
    %49 = arith.mulf %34, %48 : vector<16x8xf32>
    %c281 = arith.constant 281 : index
    %c0_32 = arith.constant 0 : index
    %50 = vector.load %arg11[%c281, %c0_32] : memref<297x24xf32, #tpu.memory_space<vmem>>, vector<16x8xf32>
    tpu.vector_store %arg11[%c281, %c0_32], %49 {strides = array<i32>} : memref<297x24xf32, #tpu.memory_space<vmem>>, vector<16x8xf32>,
    %c8_33 = arith.constant 8 : index
    %c8_34 = arith.constant 8 : index
    %51 = vector.load %arg11[%c8_33, %c8_34] : memref<297x24xf32, #tpu.memory_space<vmem>>, vector<16x8xf32>
    tpu.vector_store %arg11[%c8_33, %c8_34], %23 {strides = array<i32>} : memref<297x24xf32, #tpu.memory_space<vmem>>, vector<16x8xf32>,
    %c24 = arith.constant 24 : index
    %c8_35 = arith.constant 8 : index
    %52 = vector.load %arg11[%c24, %c8_35] : memref<297x24xf32, #tpu.memory_space<vmem>>, vector<256x8xf32>
    tpu.vector_store %arg11[%c24, %c8_35], %8 {strides = array<i32>} : memref<297x24xf32, #tpu.memory_space<vmem>>, vector<256x8xf32>,
    %c280 = arith.constant 280 : index
    %c8_36 = arith.constant 8 : index
    %53 = vector.load %arg11[%c280, %c8_36] : memref<297x24xf32, #tpu.memory_space<vmem>>, vector<16x8xf32>
    tpu.vector_store %arg11[%c280, %c8_36], %34 {strides = array<i32>} : memref<297x24xf32, #tpu.memory_space<vmem>>, vector<16x8xf32>,
    %54 = vector.broadcast %38 : vector<16x1xf32> to vector<16x8xf32>
    %55 = arith.mulf %23, %54 : vector<16x8xf32>
    %c7 = arith.constant 7 : index
    %c16 = arith.constant 16 : index
    %56 = vector.load %arg11[%c7, %c16] : memref<297x24xf32, #tpu.memory_space<vmem>>, vector<16x8xf32>
    tpu.vector_store %arg11[%c7, %c16], %55 {strides = array<i32>} : memref<297x24xf32, #tpu.memory_space<vmem>>, vector<16x8xf32>,
    %57 = vector.broadcast %36 : vector<256x1xf32> to vector<256x8xf32>
    %58 = arith.mulf %8, %57 : vector<256x8xf32>
    %c23 = arith.constant 23 : index
    %c16_37 = arith.constant 16 : index
    %59 = vector.load %arg11[%c23, %c16_37] : memref<297x24xf32, #tpu.memory_space<vmem>>, vector<256x8xf32>
    tpu.vector_store %arg11[%c23, %c16_37], %58 {strides = array<i32>} : memref<297x24xf32, #tpu.memory_space<vmem>>, vector<256x8xf32>,
    %60 = vector.broadcast %38 : vector<16x1xf32> to vector<16x8xf32>
    %61 = arith.mulf %34, %60 : vector<16x8xf32>
    %c279 = arith.constant 279 : index
    %c16_38 = arith.constant 16 : index
    %62 = vector.load %arg11[%c279, %c16_38] : memref<297x24xf32, #tpu.memory_space<vmem>>, vector<16x8xf32>
    tpu.vector_store %arg11[%c279, %c16_38], %61 {strides = array<i32>} : memref<297x24xf32, #tpu.memory_space<vmem>>, vector<16x8xf32>,
    %c8_39 = arith.constant 8 : index
    %c0_40 = arith.constant 0 : index
    %63 = vector.load %arg11[%c8_39, %c0_40] : memref<297x24xf32, #tpu.memory_space<vmem>>, vector<256x24xf32>
    %c0_41 = arith.constant 0 : index
    %c0_42 = arith.constant 0 : index
    %c0_43 = arith.constant 0 : index
    %64 = vector.load %arg8[%c0_41, %c0_42, %c0_43] : memref<3x24x8xf32, #tpu.memory_space<vmem>>, vector<1x24x8xf32>
    %65 = vector.shape_cast %64 : vector<1x24x8xf32> to vector<24x8xf32>
    %cst_44 = arith.constant dense<0.000000e+00> : vector<256x8xf32>
    %66 = tpu.matmul %63, %65, %cst_44 {dimension_numbers = #tpu.dot_dimension_numbers<[1], [0], [0], [1], [0, 0, 1, 1], [], []>} : vector<256x24xf32>, vector<24x8xf32>, vector<256x8xf32> -> vector<256x8xf32>
    %c24_45 = arith.constant 24 : index
    %c0_46 = arith.constant 0 : index
    %67 = vector.load %arg11[%c24_45, %c0_46] : memref<297x24xf32, #tpu.memory_space<vmem>>, vector<256x24xf32>
    %c1_47 = arith.constant 1 : index
    %c0_48 = arith.constant 0 : index
    %c0_49 = arith.constant 0 : index
    %68 = vector.load %arg8[%c1_47, %c0_48, %c0_49] : memref<3x24x8xf32, #tpu.memory_space<vmem>>, vector<1x24x8xf32>
    %69 = vector.shape_cast %68 : vector<1x24x8xf32> to vector<24x8xf32>
    %cst_50 = arith.constant dense<0.000000e+00> : vector<256x8xf32>
    %70 = tpu.matmul %67, %69, %cst_50 {dimension_numbers = #tpu.dot_dimension_numbers<[1], [0], [0], [1], [0, 0, 1, 1], [], []>} : vector<256x24xf32>, vector<24x8xf32>, vector<256x8xf32> -> vector<256x8xf32>
    %71 = arith.addf %66, %70 : vector<256x8xf32>
    %c40 = arith.constant 40 : index
    %c0_51 = arith.constant 0 : index
    %72 = vector.load %arg11[%c40, %c0_51] : memref<297x24xf32, #tpu.memory_space<vmem>>, vector<256x24xf32>
    %c2 = arith.constant 2 : index
    %c0_52 = arith.constant 0 : index
    %c0_53 = arith.constant 0 : index
    %73 = vector.load %arg8[%c2, %c0_52, %c0_53] : memref<3x24x8xf32, #tpu.memory_space<vmem>>, vector<1x24x8xf32>
    %74 = vector.shape_cast %73 : vector<1x24x8xf32> to vector<24x8xf32>
    %cst_54 = arith.constant dense<0.000000e+00> : vector<256x8xf32>
    %75 = tpu.matmul %72, %74, %cst_54 {dimension_numbers = #tpu.dot_dimension_numbers<[1], [0], [0], [1], [0, 0, 1, 1], [], []>} : vector<256x24xf32>, vector<24x8xf32>, vector<256x8xf32> -> vector<256x8xf32>
    %76 = arith.addf %71, %75 : vector<256x8xf32>
    %c0_55 = arith.constant 0 : index
    %c0_56 = arith.constant 0 : index
    %77 = vector.load %arg9[%c0_55, %c0_56] : memref<256x8xf32, #tpu.memory_space<vmem>>, vector<256x8xf32>
    tpu.vector_store %arg9[%c0_55, %c0_56], %76 {strides = array<i32>} : memref<256x8xf32, #tpu.memory_space<vmem>>, vector<256x8xf32>,
    %cst_57 = arith.constant dense<0.000000e+00> : vector<8xf32>
    %78 = vector.multi_reduction <add>, %76, %cst_57 [0] : vector<256x8xf32> to vector<8xf32>
    %79 = vector.shape_cast %78 : vector<8xf32> to vector<1x8xf32>
    %80 = arith.mulf %76, %76 : vector<256x8xf32>
    %cst_58 = arith.constant dense<0.000000e+00> : vector<8xf32>
    %81 = vector.multi_reduction <add>, %80, %cst_58 [0] : vector<256x8xf32> to vector<8xf32>
    %82 = vector.shape_cast %81 : vector<8xf32> to vector<1x8xf32>
    %83 = tpu.iota {dimensions = array<i32: 0>} : vector<2x8xi32>
    %c0_i32_59 = arith.constant 0 : i32
    %84 = vector.broadcast %c0_i32_59 : i32 to vector<2x8xi32>
    %85 = arith.cmpi eq, %83, %84 : vector<2x8xi32>
    %86 = vector.shape_cast %79 : vector<1x8xf32> to vector<1x8xf32>
    %87 = vector.broadcast %86 : vector<1x8xf32> to vector<2x8xf32>
    %88 = vector.shape_cast %82 : vector<1x8xf32> to vector<1x8xf32>
    %89 = vector.broadcast %88 : vector<1x8xf32> to vector<2x8xf32>
    %90 = arith.select %85, %87, %89 : vector<2x8xi1>, vector<2x8xf32>
    %c0_60 = arith.constant 0 : index
    %c0_61 = arith.constant 0 : index
    %c0_62 = arith.constant 0 : index
    %91 = vector.load %arg10[%c0_60, %c0_61, %c0_62] : memref<1x2x8xf32, #tpu.memory_space<vmem>>, vector<1x2x8xf32>
    %92 = vector.shape_cast %91 : vector<1x2x8xf32> to vector<2x8xf32>
    %93 = vector.shape_cast %90 : vector<2x8xf32> to vector<1x2x8xf32>
    tpu.vector_store %arg10[%c0_60, %c0_61, %c0_62], %93 {strides = array<i32>} : memref<1x2x8xf32, #tpu.memory_space<vmem>>, vector<1x2x8xf32>,
    return
  }
  func.func @transform_0(%arg0: i32, %arg1: i32) -> (i32, i32) {
    %c1_i32 = arith.constant 1 : i32
    %0 = arith.muli %arg0, %c1_i32 : i32
    %1 = arith.addi %0, %arg1 : i32
    %c0_i32 = arith.constant 0 : i32
    %c0_i32_0 = arith.constant 0 : i32
    return %1, %c0_i32 : i32, i32
  }
  func.func @transform_1(%arg0: i32, %arg1: i32) -> (i32, i32) {
    %c16_i32 = arith.constant 16 : i32
    %0 = arith.muli %arg0, %c16_i32 : i32
    %c16_i32_0 = arith.constant 16 : i32
    %1 = arith.muli %arg1, %c16_i32_0 : i32
    %c1_i32 = arith.constant 1 : i32
    %2 = arith.subi %1, %c1_i32 : i32
    %c0_i32 = arith.constant 0 : i32
    %3 = arith.maxsi %2, %c0_i32 : i32
    %4 = arith.addi %0, %3 : i32
    %c0_i32_1 = arith.constant 0 : i32
    %c0_i32_2 = arith.constant 0 : i32
    return %4, %c0_i32_1 : i32, i32
  }
  func.func @transform_2(%arg0: i32, %arg1: i32) -> (i32, i32) {
    %c16_i32 = arith.constant 16 : i32
    %0 = arith.muli %arg0, %c16_i32 : i32
    %c1_i32 = arith.constant 1 : i32
    %1 = arith.addi %arg1, %c1_i32 : i32
    %c16_i32_0 = arith.constant 16 : i32
    %2 = arith.muli %1, %c16_i32_0 : i32
    %c15_i32 = arith.constant 15 : i32
    %3 = arith.minsi %2, %c15_i32 : i32
    %4 = arith.addi %0, %3 : i32
    %c0_i32 = arith.constant 0 : i32
    %c0_i32_1 = arith.constant 0 : i32
    return %4, %c0_i32 : i32, i32
  }
  func.func @transform_3(%arg0: i32, %arg1: i32) -> (i32, i32) {
    %c0_i32 = arith.constant 0 : i32
    %c0_i32_0 = arith.constant 0 : i32
    %c0_i32_1 = arith.constant 0 : i32
    return %c0_i32, %c0_i32_0 : i32, i32
  }
  func.func @transform_4(%arg0: i32, %arg1: i32) -> (i32, i32) {
    %c0_i32 = arith.constant 0 : i32
    %c0_i32_0 = arith.constant 0 : i32
    %c0_i32_1 = arith.constant 0 : i32
    return %c0_i32, %c0_i32_0 : i32, i32
  }
  func.func @transform_5(%arg0: i32, %arg1: i32) -> (i32, i32) {
    %c0_i32 = arith.constant 0 : i32
    %c0_i32_0 = arith.constant 0 : i32
    %c0_i32_1 = arith.constant 0 : i32
    return %c0_i32, %c0_i32_0 : i32, i32
  }
  func.func @transform_6(%arg0: i32, %arg1: i32) -> (i32, i32, i32) {
    %c0_i32 = arith.constant 0 : i32
    %c0_i32_0 = arith.constant 0 : i32
    %c0_i32_1 = arith.constant 0 : i32
    %c0_i32_2 = arith.constant 0 : i32
    return %c0_i32, %c0_i32_0, %c0_i32_1 : i32, i32, i32
  }
  func.func @transform_7(%arg0: i32, %arg1: i32) -> (i32, i32) {
    %c1_i32 = arith.constant 1 : i32
    %0 = arith.muli %arg0, %c1_i32 : i32
    %1 = arith.addi %0, %arg1 : i32
    %c0_i32 = arith.constant 0 : i32
    %c0_i32_0 = arith.constant 0 : i32
    return %1, %c0_i32 : i32, i32
  }
  func.func @transform_8(%arg0: i32, %arg1: i32) -> (i32, i32, i32) {
    %c1_i32 = arith.constant 1 : i32
    %0 = arith.muli %arg0, %c1_i32 : i32
    %1 = arith.addi %0, %arg1 : i32
    %c0_i32 = arith.constant 0 : i32
    %c0_i32_0 = arith.constant 0 : i32
    %c0_i32_1 = arith.constant 0 : i32
    return %1, %c0_i32, %c0_i32_0 : i32, i32, i32
  }
}

module attributes {stable_mosaic.version = 11 : i64} {
  func.func @_k_bn_conv3_cm(%arg0: i32, %arg1: i32, %arg2: memref<256x8xf32, #tpu.memory_space<vmem>>, %arg3: memref<1x8xf32, #tpu.memory_space<vmem>>, %arg4: memref<1x8xf32, #tpu.memory_space<vmem>>, %arg5: memref<16x8xf32, #tpu.memory_space<vmem>>, %arg6: memref<1x16x256xf32, #tpu.memory_space<vmem>>, %arg7: memref<1x16x2xf32, #tpu.memory_space<vmem>>) attributes {dimension_semantics = [#tpu.dimension_semantics<parallel>, #tpu.dimension_semantics<parallel>], iteration_bounds = array<i64: 2, 1>, scalar_prefetch = 0 : i64, scratch_operands = 0 : i64, tpu.core_type = #tpu.core_type<tc>, window_params = [{transform_indices = @transform_0, window_bounds = array<i64: 256, 8>}, {pipeline_mode = #tpu.pipeline_mode<synchronous>, transform_indices = @transform_1, window_bounds = array<i64: 1, 8>}, {pipeline_mode = #tpu.pipeline_mode<synchronous>, transform_indices = @transform_2, window_bounds = array<i64: 1, 8>}, {pipeline_mode = #tpu.pipeline_mode<synchronous>, transform_indices = @transform_3, window_bounds = array<i64: 16, 8>}, {transform_indices = @transform_4, window_bounds = array<i64: 1, 16, 256>}, {transform_indices = @transform_5, window_bounds = array<i64: 1, 16, 2>}]} {
    %c0 = arith.constant 0 : index
    %c0_0 = arith.constant 0 : index
    %0 = vector.load %arg2[%c0, %c0_0] : memref<256x8xf32, #tpu.memory_space<vmem>>, vector<256x8xf32>
    %c0_1 = arith.constant 0 : index
    %c0_2 = arith.constant 0 : index
    %1 = vector.load %arg3[%c0_1, %c0_2] : memref<1x8xf32, #tpu.memory_space<vmem>>, vector<1x8xf32>
    %2 = vector.broadcast %1 : vector<1x8xf32> to vector<256x8xf32>
    %3 = arith.mulf %0, %2 : vector<256x8xf32>
    %c0_3 = arith.constant 0 : index
    %c0_4 = arith.constant 0 : index
    %4 = vector.load %arg4[%c0_3, %c0_4] : memref<1x8xf32, #tpu.memory_space<vmem>>, vector<1x8xf32>
    %5 = vector.broadcast %4 : vector<1x8xf32> to vector<256x8xf32>
    %6 = arith.addf %3, %5 : vector<256x8xf32>
    %cst = arith.constant 0.000000e+00 : f32
    %7 = vector.broadcast %cst : f32 to vector<256x8xf32>
    %8 = arith.maximumf %6, %7 : vector<256x8xf32>
    %c0_5 = arith.constant 0 : index
    %c0_6 = arith.constant 0 : index
    %9 = vector.load %arg5[%c0_5, %c0_6] : memref<16x8xf32, #tpu.memory_space<vmem>>, vector<16x8xf32>
    %cst_7 = arith.constant dense<0.000000e+00> : vector<16x256xf32>
    %10 = tpu.matmul %9, %8, %cst_7 {dimension_numbers = #tpu.dot_dimension_numbers<[1], [1], [0], [0], [0, 0, 1, 0], [], []>} : vector<16x8xf32>, vector<256x8xf32>, vector<16x256xf32> -> vector<16x256xf32>
    %c0_8 = arith.constant 0 : index
    %c0_9 = arith.constant 0 : index
    %c0_10 = arith.constant 0 : index
    %11 = vector.load %arg6[%c0_8, %c0_9, %c0_10] : memref<1x16x256xf32, #tpu.memory_space<vmem>>, vector<1x16x256xf32>
    %12 = vector.shape_cast %11 : vector<1x16x256xf32> to vector<16x256xf32>
    %13 = vector.shape_cast %10 : vector<16x256xf32> to vector<1x16x256xf32>
    tpu.vector_store %arg6[%c0_8, %c0_9, %c0_10], %13 {strides = array<i32>} : memref<1x16x256xf32, #tpu.memory_space<vmem>>, vector<1x16x256xf32>,
    %cst_11 = arith.constant dense<0.000000e+00> : vector<16xf32>
    %14 = vector.multi_reduction <add>, %10, %cst_11 [1] : vector<16x256xf32> to vector<16xf32>
    %15 = vector.shape_cast %14 : vector<16xf32> to vector<16x1xf32>
    %16 = arith.mulf %10, %10 : vector<16x256xf32>
    %cst_12 = arith.constant dense<0.000000e+00> : vector<16xf32>
    %17 = vector.multi_reduction <add>, %16, %cst_12 [1] : vector<16x256xf32> to vector<16xf32>
    %18 = vector.shape_cast %17 : vector<16xf32> to vector<16x1xf32>
    %19 = tpu.iota {dimensions = array<i32: 1>} : vector<16x2xi32>
    %c0_i32 = arith.constant 0 : i32
    %20 = vector.broadcast %c0_i32 : i32 to vector<16x2xi32>
    %21 = arith.cmpi eq, %19, %20 : vector<16x2xi32>
    %22 = vector.shape_cast %15 : vector<16x1xf32> to vector<16x1xf32>
    %23 = vector.broadcast %22 : vector<16x1xf32> to vector<16x2xf32>
    %24 = vector.shape_cast %18 : vector<16x1xf32> to vector<16x1xf32>
    %25 = vector.broadcast %24 : vector<16x1xf32> to vector<16x2xf32>
    %26 = arith.select %21, %23, %25 : vector<16x2xi1>, vector<16x2xf32>
    %c0_13 = arith.constant 0 : index
    %c0_14 = arith.constant 0 : index
    %c0_15 = arith.constant 0 : index
    %27 = vector.load %arg7[%c0_13, %c0_14, %c0_15] : memref<1x16x2xf32, #tpu.memory_space<vmem>>, vector<1x16x2xf32>
    %28 = vector.shape_cast %27 : vector<1x16x2xf32> to vector<16x2xf32>
    %29 = vector.shape_cast %26 : vector<16x2xf32> to vector<1x16x2xf32>
    tpu.vector_store %arg7[%c0_13, %c0_14, %c0_15], %29 {strides = array<i32>} : memref<1x16x2xf32, #tpu.memory_space<vmem>>, vector<1x16x2xf32>,
    return
  }
  func.func @transform_0(%arg0: i32, %arg1: i32) -> (i32, i32) {
    %c1_i32 = arith.constant 1 : i32
    %0 = arith.muli %arg0, %c1_i32 : i32
    %1 = arith.addi %0, %arg1 : i32
    %c0_i32 = arith.constant 0 : i32
    %c0_i32_0 = arith.constant 0 : i32
    return %1, %c0_i32 : i32, i32
  }
  func.func @transform_1(%arg0: i32, %arg1: i32) -> (i32, i32) {
    %c0_i32 = arith.constant 0 : i32
    %c0_i32_0 = arith.constant 0 : i32
    %c0_i32_1 = arith.constant 0 : i32
    return %c0_i32, %c0_i32_0 : i32, i32
  }
  func.func @transform_2(%arg0: i32, %arg1: i32) -> (i32, i32) {
    %c0_i32 = arith.constant 0 : i32
    %c0_i32_0 = arith.constant 0 : i32
    %c0_i32_1 = arith.constant 0 : i32
    return %c0_i32, %c0_i32_0 : i32, i32
  }
  func.func @transform_3(%arg0: i32, %arg1: i32) -> (i32, i32) {
    %c0_i32 = arith.constant 0 : i32
    %c0_i32_0 = arith.constant 0 : i32
    %c0_i32_1 = arith.constant 0 : i32
    return %c0_i32, %c0_i32_0 : i32, i32
  }
  func.func @transform_4(%arg0: i32, %arg1: i32) -> (i32, i32, i32) {
    %c0_i32 = arith.constant 0 : i32
    %c0_i32_0 = arith.constant 0 : i32
    return %arg0, %c0_i32, %arg1 : i32, i32, i32
  }
  func.func @transform_5(%arg0: i32, %arg1: i32) -> (i32, i32, i32) {
    %c1_i32 = arith.constant 1 : i32
    %0 = arith.muli %arg0, %c1_i32 : i32
    %1 = arith.addi %0, %arg1 : i32
    %c0_i32 = arith.constant 0 : i32
    %c0_i32_0 = arith.constant 0 : i32
    %c0_i32_1 = arith.constant 0 : i32
    return %1, %c0_i32, %c0_i32_0 : i32, i32, i32
  }
}

module attributes {stable_mosaic.version = 11 : i64} {
  func.func @_k_bn_residual_relu(%arg0: i32, %arg1: i32, %arg2: memref<1x16x256xf32, #tpu.memory_space<vmem>>, %arg3: memref<16x1xf32, #tpu.memory_space<vmem>>, %arg4: memref<16x1xf32, #tpu.memory_space<vmem>>, %arg5: memref<1x16x256xf32, #tpu.memory_space<vmem>>, %arg6: memref<1x16x256xf32, #tpu.memory_space<vmem>>) attributes {dimension_semantics = [#tpu.dimension_semantics<parallel>, #tpu.dimension_semantics<parallel>], iteration_bounds = array<i64: 2, 1>, scalar_prefetch = 0 : i64, scratch_operands = 0 : i64, tpu.core_type = #tpu.core_type<tc>, window_params = [{transform_indices = @transform_0, window_bounds = array<i64: 1, 16, 256>}, {pipeline_mode = #tpu.pipeline_mode<synchronous>, transform_indices = @transform_1, window_bounds = array<i64: 16, 1>}, {pipeline_mode = #tpu.pipeline_mode<synchronous>, transform_indices = @transform_2, window_bounds = array<i64: 16, 1>}, {transform_indices = @transform_3, window_bounds = array<i64: 1, 16, 256>}, {transform_indices = @transform_4, window_bounds = array<i64: 1, 16, 256>}]} {
    %c0 = arith.constant 0 : index
    %c0_0 = arith.constant 0 : index
    %c0_1 = arith.constant 0 : index
    %0 = vector.load %arg2[%c0, %c0_0, %c0_1] : memref<1x16x256xf32, #tpu.memory_space<vmem>>, vector<1x16x256xf32>
    %1 = vector.shape_cast %0 : vector<1x16x256xf32> to vector<16x256xf32>
    %c0_2 = arith.constant 0 : index
    %c0_3 = arith.constant 0 : index
    %2 = vector.load %arg3[%c0_2, %c0_3] : memref<16x1xf32, #tpu.memory_space<vmem>>, vector<16x1xf32>
    %3 = vector.broadcast %2 : vector<16x1xf32> to vector<16x256xf32>
    %4 = arith.mulf %1, %3 : vector<16x256xf32>
    %c0_4 = arith.constant 0 : index
    %c0_5 = arith.constant 0 : index
    %5 = vector.load %arg4[%c0_4, %c0_5] : memref<16x1xf32, #tpu.memory_space<vmem>>, vector<16x1xf32>
    %6 = vector.broadcast %5 : vector<16x1xf32> to vector<16x256xf32>
    %7 = arith.addf %4, %6 : vector<16x256xf32>
    %c0_6 = arith.constant 0 : index
    %c0_7 = arith.constant 0 : index
    %c0_8 = arith.constant 0 : index
    %8 = vector.load %arg5[%c0_6, %c0_7, %c0_8] : memref<1x16x256xf32, #tpu.memory_space<vmem>>, vector<1x16x256xf32>
    %9 = vector.shape_cast %8 : vector<1x16x256xf32> to vector<16x256xf32>
    %10 = arith.addf %7, %9 : vector<16x256xf32>
    %cst = arith.constant 0.000000e+00 : f32
    %11 = vector.broadcast %cst : f32 to vector<16x256xf32>
    %12 = arith.maximumf %10, %11 : vector<16x256xf32>
    %c0_9 = arith.constant 0 : index
    %c0_10 = arith.constant 0 : index
    %c0_11 = arith.constant 0 : index
    %13 = vector.load %arg6[%c0_9, %c0_10, %c0_11] : memref<1x16x256xf32, #tpu.memory_space<vmem>>, vector<1x16x256xf32>
    %14 = vector.shape_cast %13 : vector<1x16x256xf32> to vector<16x256xf32>
    %15 = vector.shape_cast %12 : vector<16x256xf32> to vector<1x16x256xf32>
    tpu.vector_store %arg6[%c0_9, %c0_10, %c0_11], %15 {strides = array<i32>} : memref<1x16x256xf32, #tpu.memory_space<vmem>>, vector<1x16x256xf32>,
    return
  }
  func.func @transform_0(%arg0: i32, %arg1: i32) -> (i32, i32, i32) {
    %c0_i32 = arith.constant 0 : i32
    %c0_i32_0 = arith.constant 0 : i32
    return %arg0, %c0_i32, %arg1 : i32, i32, i32
  }
  func.func @transform_1(%arg0: i32, %arg1: i32) -> (i32, i32) {
    %c0_i32 = arith.constant 0 : i32
    %c0_i32_0 = arith.constant 0 : i32
    %c0_i32_1 = arith.constant 0 : i32
    return %c0_i32, %c0_i32_0 : i32, i32
  }
  func.func @transform_2(%arg0: i32, %arg1: i32) -> (i32, i32) {
    %c0_i32 = arith.constant 0 : i32
    %c0_i32_0 = arith.constant 0 : i32
    %c0_i32_1 = arith.constant 0 : i32
    return %c0_i32, %c0_i32_0 : i32, i32
  }
  func.func @transform_3(%arg0: i32, %arg1: i32) -> (i32, i32, i32) {
    %c0_i32 = arith.constant 0 : i32
    %c0_i32_0 = arith.constant 0 : i32
    return %arg0, %c0_i32, %arg1 : i32, i32, i32
  }
  func.func @transform_4(%arg0: i32, %arg1: i32) -> (i32, i32, i32) {
    %c0_i32 = arith.constant 0 : i32
    %c0_i32_0 = arith.constant 0 : i32
    return %arg0, %c0_i32, %arg1 : i32, i32, i32
  }
}

</mosaic_0001>

<llo_original>
// kernel: bottleneck_forward.4
$region0: #{bottleneck_forward.4}
  #allocation0 [shape = 'u32[]', space=smem, size = 0x4, offset = 0x4, fixed_abs, tag = 'smem constant byte address 0x4 - core index']
  #allocation1 [shape = 'u32[144,128]{1,0:T(1,128)}', space=vmem, size = 0x12000, scoped, tag = 'internal scratch']
  %s0 = inlined_call_operand.vmem [shape: f32[2,16,256], index: 0, kind: input, shape index: {}]
  %s1 = inlined_call_operand.vmem [shape: f32[16,8], index: 1, kind: input, shape index: {}]
  %s2 = inlined_call_operand.vmem [shape: f32[512,8], index: 2, kind: output, shape index: {0}]
  %s3 = inlined_call_operand.vmem [shape: f32[2,2,8], index: 3, kind: output, shape index: {1}]
  %4 = xla_tuple %s2, %s3
  %s5 = sld [smem:[#allocation0]]
  $region49: #{bottleneck_forward.4} parent=0
    _
  %s7 = ssub.s32 1, %s5
  %s8 = scalar_select 0, %s7, %s5
  loop: start=0, step=1, limit=4
  $region2: #{bottleneck_forward.4} parent=0 // loop_pre_header
    _
  $region3: #{bottleneck_forward.4} parent=0 // loop_header
    %s10 = sphi 0, %s14
    %p11 = scmp.ge.s32.totalorder %s10, 4
    %s17 = sphi 0, %s29
    %s18 = sphi 0, %s25
    %s19 = sphi 0, %s17
    %s20 = sphi 0, %s18
    %s21 = sphi 0, %s19
    %s22 = sphi 0, %s20
    %s34 = sphi 0, %s36
    %s37 = sphi 0, %s34
    %s38 = sphi 0, %s37
    %s54 = sphi 0, %s38
    %s58 = sphi 0, %s58
    %s60 = sphi 0, %s58
    %s61 = sphi 0, %s60
    %s75 = sphi 0, %s61
    %s83 = sphi 0, %s85
    %s86 = sphi 0, %s83
    %s87 = sphi 0, %s86
    %s103 = sphi 0, %s87
    %s111 = sphi 0, %s113
    %s114 = sphi 0, %s111
    %s115 = sphi 0, %s114
    %s131 = sphi 0, %s115
  $region4: #{bottleneck_forward.4} parent=0 // loop_header_branch
    %13 = sbr.rel (%p11) target = $region8
  $region5: #{bottleneck_forward.4} parent=0 // loop_body
    %s15 = ssub.s32 %s10, 1
    %s16 = ssub.s32 %s10, 2
    %s23 = sadd.s32 1, %s18
    %p24 = scmp.ge.s32.totalorder %s23, 1
    %s25 = scalar_select %p24, 0, %s23
    %s26 = sadd.s32 1, %s17
    %s27 = scalar_select %p24, %s26, %s17
    %p28 = scmp.ge.s32.totalorder %s27, 2
    %s29 = scalar_select %p28, 0, %s27
    %s30 = ssub.s32 %s17, %s29
    %s31 = ssub.s32 %s18, %s25
    %s32 = sor.u32 %s30, %s31
    %p33 = scmp.eq.s32.totalorder %s32, 0
    %s35 = sadd.s32 %s34, 1
    %s36 = scalar_select %p33, %s34, %s35
    %p39 = pneg %p33
    %p40 = scmp.eq.s32.totalorder %s10, 1
    %p41 = por %p39, %p40
    %p42 = scmp.ne.s32.totalorder %s34, %s37
    %p43 = scmp.eq.s32.totalorder %s10, 0
    %p44 = por %p42, %p43
    %p45 = scmp.ne.s32.totalorder %s34, %s37
    %p46 = scmp.eq.s32.totalorder %s15, 1
    %p47 = por %p45, %p46
    %p48 = scmp.ne.s32.totalorder %s37, %s38
    %p49 = scmp.eq.s32.totalorder %s15, 0
    %p50 = por %p48, %p49
    %p51 = scmp.ne.s32.totalorder %s37, %s38
    %p52 = scmp.eq.s32.totalorder %s16, 1
    %p53 = por %p51, %p52
    %p55 = scmp.ne.s32.totalorder %s38, %s54
    %p56 = scmp.eq.s32.totalorder %s16, 0
    %p57 = por %p55, %p56
    %s59 = sadd.s32 %s58, 1
    %p62 = scmp.eq.s32.totalorder %s10, 1
    %p63 = scmp.ne.s32.totalorder %s58, %s60
    %p64 = scmp.eq.s32.totalorder %s10, 0
    %p65 = por %p63, %p64
    %p66 = scmp.ne.s32.totalorder %s58, %s60
    %p67 = scmp.eq.s32.totalorder %s15, 1
    %p68 = por %p66, %p67
    %p69 = scmp.ne.s32.totalorder %s60, %s61
    %p70 = scmp.eq.s32.totalorder %s15, 0
    %p71 = por %p69, %p70
    %p72 = scmp.ne.s32.totalorder %s60, %s61
    %p73 = scmp.eq.s32.totalorder %s16, 1
    %p74 = por %p72, %p73
    %p76 = scmp.ne.s32.totalorder %s61, %s75
    %p77 = scmp.eq.s32.totalorder %s16, 0
    %p78 = por %p76, %p77
    %s79 = sadd.s32 %s17, %s18
    %s80 = sadd.s32 %s29, %s25
    %s81 = ssub.s32 %s79, %s80
    %p82 = scmp.eq.s32.totalorder %s81, 0
    %s84 = sadd.s32 %s83, 1
    %s85 = scalar_select %p82, %s83, %s84
    %p88 = pneg %p82
    %p89 = scmp.eq.s32.totalorder %s10, 1
    %p90 = por %p88, %p89
    %p91 = scmp.ne.s32.totalorder %s83, %s86
    %p92 = scmp.eq.s32.totalorder %s10, 0
    %p93 = por %p91, %p92
    %p94 = scmp.ne.s32.totalorder %s83, %s86
    %p95 = scmp.eq.s32.totalorder %s15, 1
    %p96 = por %p94, %p95
    %p97 = scmp.ne.s32.totalorder %s86, %s87
    %p98 = scmp.eq.s32.totalorder %s15, 0
    %p99 = por %p97, %p98
    %p100 = scmp.ne.s32.totalorder %s86, %s87
    %p101 = scmp.eq.s32.totalorder %s16, 1
    %p102 = por %p100, %p101
    %p104 = scmp.ne.s32.totalorder %s87, %s103
    %p105 = scmp.eq.s32.totalorder %s16, 0
    %p106 = por %p104, %p105
    %s107 = sadd.s32 %s17, %s18
    %s108 = sadd.s32 %s29, %s25
    %s109 = ssub.s32 %s107, %s108
    %p110 = scmp.eq.s32.totalorder %s109, 0
    %s112 = sadd.s32 %s111, 1
    %s113 = scalar_select %p110, %s111, %s112
    %p116 = pneg %p110
    %p117 = scmp.eq.s32.totalorder %s10, 1
    %p118 = por %p116, %p117
    %p119 = scmp.ne.s32.totalorder %s111, %s114
    %p120 = scmp.eq.s32.totalorder %s10, 0
    %p121 = por %p119, %p120
    %p122 = scmp.ne.s32.totalorder %s111, %s114
    %p123 = scmp.eq.s32.totalorder %s15, 1
    %p124 = por %p122, %p123
    %p125 = scmp.ne.s32.totalorder %s114, %s115
    %p126 = scmp.eq.s32.totalorder %s15, 0
    %p127 = por %p125, %p126
    %p128 = scmp.ne.s32.totalorder %s114, %s115
    %p129 = scmp.eq.s32.totalorder %s16, 1
    %p130 = por %p128, %p129
    %p132 = scmp.ne.s32.totalorder %s115, %s131
    %p133 = scmp.eq.s32.totalorder %s16, 0
    %p134 = por %p132, %p133
    %p135 = scmp.le.s32.totalorder 1, %s10
    %p136 = scmp.lt.s32.totalorder %s10, 3
    %p137 = pnand %p135, %p136
    %p138 = pneg %p137
    // Predicated region
    $region9: #{bottleneck_forward.4} parent=5 // pred_check
      _
    $region10: #{bottleneck_forward.4} parent=5 // pred_check_branch
      %140 = sbr.rel (%p137) target = $region12
    $region11: #{bottleneck_forward.4} parent=5 // pred_region
      %s141 = ssub.s32 %s10, 1
      // Predicated region
      $region13: #{bottleneck_forward.4} parent=11 // pred_check
        %p142 = pneg %p71
      $region14: #{bottleneck_forward.4} parent=11 // pred_check_branch
        %144 = sbr.rel (%p142) target = $region16
      $region15: #{bottleneck_forward.4} parent=11 // pred_region
        _
      $region16: #{bottleneck_forward.4} parent=11 // pred_fallthru
        _
    $region12: #{bottleneck_forward.4} parent=5 // pred_fallthru
      _
    %p145 = scmp.lt.s32.totalorder %s10, 2
    // Predicated region
    $region17: #{bottleneck_forward.4} parent=5 // pred_check
      %p146 = pneg %p145
    $region18: #{bottleneck_forward.4} parent=5 // pred_check_branch
      %148 = sbr.rel (%p146) target = $region20
    $region19: #{bottleneck_forward.4} parent=5 // pred_region
      // Predicated region
      $region21: #{bottleneck_forward.4} parent=19 // pred_check
        %p149 = pneg %p44
      $region22: #{bottleneck_forward.4} parent=19 // pred_check_branch
        %151 = sbr.rel (%p149) target = $region24
      $region23: #{bottleneck_forward.4} parent=19 // pred_region
        %s152 = smul.u32 2, %s18
        %p153 = scmp.lt.s32.totalorder %s17, 1
        %s154 = scalar_select %p153, %s17, 1
        %p155 = scmp.lt.s32.totalorder %s152, 1
        %s156 = scalar_select %p155, %s152, 1
        %s157 = smul.addr %s154, 4
        %s158 = sadd.s32 %s156, %s157
        %s159 = smul.addr %s158, 8
        %s160 = scalar_lea.vmem %s0, %s159
        %s161 = smul.u32 2, %s18
      $region24: #{bottleneck_forward.4} parent=19 // pred_fallthru
        _
    $region20: #{bottleneck_forward.4} parent=5 // pred_fallthru
      _
    %p162 = scmp.le.s32.totalorder 1, %s10
    %p163 = scmp.lt.s32.totalorder %s10, 3
    %p164 = pnand %p162, %p163
    %p165 = pneg %p164
    // Predicated region
    $region25: #{bottleneck_forward.4} parent=5 // pred_check
      _
    $region26: #{bottleneck_forward.4} parent=5 // pred_check_branch
      %167 = sbr.rel (%p164) target = $region28
    $region27: #{bottleneck_forward.4} parent=5 // pred_region
      %s168 = ssub.s32 %s10, 1
      %s169 = smul.u32 2, %s20
      %p170 = scmp.lt.s32.totalorder %s19, 1
      %s171 = scalar_select %p170, %s19, 1
      %p172 = scmp.lt.s32.totalorder %s169, 1
      %s173 = scalar_select %p172, %s169, 1
      %s174 = smul.addr %s171, 4
      %s175 = sadd.s32 %s173, %s174
      %s176 = smul.addr %s175, 8
      %s177 = scalar_lea.vmem %s0, %s176
      %p178 = pneg %p50
      %p179 = pneg %p47
      %p180 = pneg %p71
      %p181 = pneg %p68
      %p182 = pneg %p99
      %p183 = pneg %p96
      %s184 = sadd.s32 %s19, %s20
      %s185 = smul.u32 32, %s184
      %p186 = scmp.lt.s32.totalorder %s185, 63
      %s187 = scalar_select %p186, %s185, 63
      %s188 = smul.addr %s187, 8
      %s189 = scalar_lea.vmem %s2, %s188
      %p190 = pneg %p127
      %p191 = pneg %p124
      %s192 = sadd.s32 %s19, %s20
      %p193 = scmp.lt.s32.totalorder %s192, 1
      %s194 = scalar_select %p193, %s192, 1
      %s195 = smul.addr %s194, 2
      %s196 = scalar_lea.vmem %s3, %s195
      %s197 = smul.u32 2, %s20
      %p198 = scmp.lt.s32.totalorder %s19, 1
      %s199 = scalar_select %p198, %s19, 1
      %p200 = scmp.lt.s32.totalorder %s197, 1
      %s201 = scalar_select %p200, %s197, 1
      %s202 = smul.addr %s199, 4
      %s203 = sadd.s32 %s201, %s202
      %s204 = smul.addr %s203, 8
      %s205 = scalar_lea.vmem %s0, %s204
      %s206 = smul.u32 2, %s20
      %s207 = sadd.s32 %s19, %s20
      %s208 = smul.u32 32, %s207
      %p209 = scmp.lt.s32.totalorder %s208, 63
      %s210 = scalar_select %p209, %s208, 63
      %s211 = smul.addr %s210, 8
      %s212 = scalar_lea.vmem %s2, %s211
      %s213 = sadd.s32 %s19, %s20
      %s214 = smul.u32 32, %s213
      %s215 = sadd.s32 %s19, %s20
      %p216 = scmp.lt.s32.totalorder %s215, 1
      %s217 = scalar_select %p216, %s215, 1
      %s218 = smul.addr %s217, 2
      %s219 = scalar_lea.vmem %s3, %s218
      %s220 = sadd.s32 %s19, %s20
      %v221 = vld [vmem:[%s205] sm:$0xff]
      %v222 = vld [vmem:[%s205 + $0x8] sm:$0xff]
      %v223 = vld [vmem:[%s205 + $0x10] sm:$0xff]
      %v224 = vld [vmem:[%s205 + $0x18] sm:$0xff]
      %v225 = vld [vmem:[%s1] sm:$0xff]
      %v226 = vld [vmem:[%s1 + $0x8] sm:$0xff]
      %227 = vxpose.xlu0.b32.start [1/16] %v221, 128
      %228 = vxpose.xlu0.b32.cont [2/16] %v223, 128
      %229 = vxpose.xlu0.b32.cont [3/16] 0.0, 128
      %230 = vxpose.xlu0.b32.cont [4/16] 0.0, 128
      %231 = vxpose.xlu0.b32.cont [5/16] 0.0, 128
      %232 = vxpose.xlu0.b32.cont [6/16] 0.0, 128
      %233 = vxpose.xlu0.b32.cont [7/16] 0.0, 128
      %234 = vxpose.xlu0.b32.cont [8/16] 0.0, 128
      %235 = vxpose.xlu0.b32.cont [9/16] 0.0, 128
      %236 = vxpose.xlu0.b32.cont [10/16] 0.0, 128
      %237 = vxpose.xlu0.b32.cont [11/16] 0.0, 128
      %238 = vxpose.xlu0.b32.cont [12/16] 0.0, 128
      %239 = vxpose.xlu0.b32.cont [13/16] 0.0, 128
      %240 = vxpose.xlu0.b32.cont [14/16] 0.0, 128
      %241 = vxpose.xlu0.b32.cont [15/16] 0.0, 128
      %242 = vxpose.xlu0.b32.end [16/16] 0.0, 128
      %v243 = vpop.trf.xlu0
      %v244 = vpop.trf.xlu0
      %v245 = vpop.trf.xlu0
      %v246 = vpop.trf.xlu0
      %v247 = vpop.trf.xlu0
      %v248 = vpop.trf.xlu0
      %v249 = vpop.trf.xlu0
      %v250 = vpop.trf.xlu0
      %v251 = vpop.trf.xlu0
      %v252 = vpop.trf.xlu0
      %v253 = vpop.trf.xlu0
      %v254 = vpop.trf.xlu0
      %v255 = vpop.trf.xlu0
      %v256 = vpop.trf.xlu0
      %v257 = vpop.trf.xlu0
      %v258 = vpop.trf.xlu0
      %259 = vxpose.xlu0.b32.start [1/16] %v222, 128
      %260 = vxpose.xlu0.b32.cont [2/16] %v224, 128
      %261 = vxpose.xlu0.b32.cont [3/16] 0.0, 128
      %262 = vxpose.xlu0.b32.cont [4/16] 0.0, 128
      %263 = vxpose.xlu0.b32.cont [5/16] 0.0, 128
      %264 = vxpose.xlu0.b32.cont [6/16] 0.0, 128
      %265 = vxpose.xlu0.b32.cont [7/16] 0.0, 128
      %266 = vxpose.xlu0.b32.cont [8/16] 0.0, 128
      %267 = vxpose.xlu0.b32.cont [9/16] 0.0, 128
      %268 = vxpose.xlu0.b32.cont [10/16] 0.0, 128
      %269 = vxpose.xlu0.b32.cont [11/16] 0.0, 128
      %270 = vxpose.xlu0.b32.cont [12/16] 0.0, 128
      %271 = vxpose.xlu0.b32.cont [13/16] 0.0, 128
      %272 = vxpose.xlu0.b32.cont [14/16] 0.0, 128
      %273 = vxpose.xlu0.b32.cont [15/16] 0.0, 128
      %274 = vxpose.xlu0.b32.end [16/16] 0.0, 128
      %v275 = vpop.trf.xlu0
      %v276 = vpop.trf.xlu0
      %v277 = vpop.trf.xlu0
      %v278 = vpop.trf.xlu0
      %v279 = vpop.trf.xlu0
      %v280 = vpop.trf.xlu0
      %v281 = vpop.trf.xlu0
      %v282 = vpop.trf.xlu0
      %v283 = vpop.trf.xlu0
      %v284 = vpop.trf.xlu0
      %v285 = vpop.trf.xlu0
      %v286 = vpop.trf.xlu0
      %v287 = vpop.trf.xlu0
      %v288 = vpop.trf.xlu0
      %v289 = vpop.trf.xlu0
      %v290 = vpop.trf.xlu0
      %vm291 = vcmask 130048
      %v293 = vsel %vm291, %v243, 0
      %v296 = vsel %vm291, %v244, 0
      %v299 = vsel %vm291, %v245, 0
      %v302 = vsel %vm291, %v246, 0
      %v305 = vsel %vm291, %v247, 0
      %v308 = vsel %vm291, %v248, 0
      %v311 = vsel %vm291, %v249, 0
      %v314 = vsel %vm291, %v250, 0
      %v317 = vsel %vm291, %v251, 0
      %v320 = vsel %vm291, %v252, 0
      %v323 = vsel %vm291, %v253, 0
      %v326 = vsel %vm291, %v254, 0
      %v329 = vsel %vm291, %v255, 0
      %v332 = vsel %vm291, %v256, 0
      %v335 = vsel %vm291, %v257, 0
      %v338 = vsel %vm291, %v258, 0
      %v341 = vsel %vm291, %v275, 0
      %v344 = vsel %vm291, %v276, 0
      %v347 = vsel %vm291, %v277, 0
      %v350 = vsel %vm291, %v278, 0
      %v353 = vsel %vm291, %v279, 0
      %v356 = vsel %vm291, %v280, 0
      %v359 = vsel %vm291, %v281, 0
      %v362 = vsel %vm291, %v282, 0
      %v365 = vsel %vm291, %v283, 0
      %v368 = vsel %vm291, %v284, 0
      %v371 = vsel %vm291, %v285, 0
      %v374 = vsel %vm291, %v286, 0
      %v377 = vsel %vm291, %v287, 0
      %v380 = vsel %vm291, %v288, 0
      %v383 = vsel %vm291, %v289, 0
      %v386 = vsel %vm291, %v290, 0
      %388 = vmatprep.subr.mxu0 0.0
      %389 = vmatpush1.msra.mxu0 %v225
      %390 = vmatprep.subr.mxu0 0.0
      %391 = vmatpush1.msra.mxu0 %v226
      %392 = vmatprep.subr.mxu0 0.0
      %393 = vmatpush1.msra.mxu0 0.0
      %394 = vmatprep.subr.mxu0 0.0
      %395 = vmatpush1.msra.mxu0 0.0
      %396 = vmatprep.subr.mxu0 0.0
      %397 = vmatpush1.msra.mxu0 0.0
      %398 = vmatprep.subr.mxu0 0.0
      %399 = vmatpush1.msra.mxu0 0.0
      %400 = vmatprep.subr.mxu0 0.0
      %401 = vmatpush1.msra.mxu0 0.0
      %402 = vmatprep.subr.mxu0 0.0
      %403 = vmatpush1.msra.mxu0 0.0
      %404 = vmatprep.subr.mxu0 0.0
      %405 = vmatpush1.msra.mxu0 0.0
      %406 = vmatprep.subr.mxu0 0.0
      %407 = vmatpush1.msra.mxu0 0.0
      %408 = vmatprep.subr.mxu0 0.0
      %409 = vmatpush1.msra.mxu0 0.0
      %410 = vmatprep.subr.mxu0 0.0
      %411 = vmatpush1.msra.mxu0 0.0
      %412 = vmatprep.subr.mxu0 0.0
      %413 = vmatpush1.msra.mxu0 0.0
      %414 = vmatprep.subr.mxu0 0.0
      %415 = vmatpush1.msra.mxu0 0.0
      %416 = vmatprep.subr.mxu0 0.0
      %417 = vmatpush1.msra.mxu0 0.0
      %418 = vmatprep.subr.mxu0 0.0
      %419 = vmatpush1.msra.mxu0 0.0
      %420 = vmatprep.subr.mxu0 0.0
      %421 = vmatpush1.msra.mxu0 0.0
      %422 = vmatprep.subr.mxu0 0.0
      %423 = vmatpush1.msra.mxu0 0.0
      %424 = vmatprep.subr.mxu0 0.0
      %425 = vmatpush1.msra.mxu0 0.0
      %426 = vmatprep.subr.mxu0 0.0
      %427 = vmatpush1.msra.mxu0 0.0
      %428 = vmatprep.subr.mxu0 0.0
      %429 = vmatpush1.msra.mxu0 0.0
      %430 = vmatprep.subr.mxu0 0.0
      %431 = vmatpush1.msra.mxu0 0.0
      %432 = vmatprep.subr.mxu0 0.0
      %433 = vmatpush1.msra.mxu0 0.0
      %434 = vmatprep.subr.mxu0 0.0
      %435 = vmatpush1.msra.mxu0 0.0
      %436 = vmatprep.subr.mxu0 0.0
      %437 = vmatpush1.msra.mxu0 0.0
      %438 = vmatprep.subr.mxu0 0.0
      %439 = vmatpush1.msra.mxu0 0.0
      %440 = vmatprep.subr.mxu0 0.0
      %441 = vmatpush1.msra.mxu0 0.0
      %442 = vmatprep.subr.mxu0 0.0
      %443 = vmatpush1.msra.mxu0 0.0
      %444 = vmatprep.subr.mxu0 0.0
      %445 = vmatpush1.msra.mxu0 0.0
      %446 = vmatprep.subr.mxu0 0.0
      %447 = vmatpush1.msra.mxu0 0.0
      %448 = vmatprep.subr.mxu0 0.0
      %449 = vmatpush1.msra.mxu0 0.0
      %450 = vmatprep.subr.mxu0 0.0
      %451 = vmatpush1.msra.mxu0 0.0
      %452 = vmatprep.mubr.f32.mxu0 0.0
      %453 = vmatmul.mubr.f32.gmra.mrb[0].mxu0 %v293
      %v454 = vpop.f32.mrb[0].mxu0
      %v455 = vadd.f32 0.0, %v454
      %v456 = vpop.f32.mrb[0].mxu0
      %457 = vmatprep.mubr.f32.mxu0 0.0
      %458 = vmatmul.mubr.f32.gmra.mrb[0].mxu0 %v296
      %v459 = vpop.f32.mrb[0].mxu0
      %v460 = vadd.f32 0.0, %v459
      %v461 = vpop.f32.mrb[0].mxu0
      %462 = vmatprep.mubr.f32.mxu0 0.0
      %463 = vmatmul.mubr.f32.gmra.mrb[0].mxu0 %v299
      %v464 = vpop.f32.mrb[0].mxu0
      %v465 = vadd.f32 0.0, %v464
      %v466 = vpop.f32.mrb[0].mxu0
      %467 = vmatprep.mubr.f32.mxu0 0.0
      %468 = vmatmul.mubr.f32.gmra.mrb[0].mxu0 %v302
      %v469 = vpop.f32.mrb[0].mxu0
      %v470 = vadd.f32 0.0, %v469
      %v471 = vpop.f32.mrb[0].mxu0
      %472 = vmatprep.mubr.f32.mxu0 0.0
      %473 = vmatmul.mubr.f32.gmra.mrb[0].mxu0 %v305
      %v474 = vpop.f32.mrb[0].mxu0
      %v475 = vadd.f32 0.0, %v474
      %v476 = vpop.f32.mrb[0].mxu0
      %477 = vmatprep.mubr.f32.mxu0 0.0
      %478 = vmatmul.mubr.f32.gmra.mrb[0].mxu0 %v308
      %v479 = vpop.f32.mrb[0].mxu0
      %v480 = vadd.f32 0.0, %v479
      %v481 = vpop.f32.mrb[0].mxu0
      %482 = vmatprep.mubr.f32.mxu0 0.0
      %483 = vmatmul.mubr.f32.gmra.mrb[0].mxu0 %v311
      %v484 = vpop.f32.mrb[0].mxu0
      %v485 = vadd.f32 0.0, %v484
      %v486 = vpop.f32.mrb[0].mxu0
      %487 = vmatprep.mubr.f32.mxu0 0.0
      %488 = vmatmul.mubr.f32.gmra.mrb[0].mxu0 %v314
      %v489 = vpop.f32.mrb[0].mxu0
      %v490 = vadd.f32 0.0, %v489
      %v491 = vpop.f32.mrb[0].mxu0
      %492 = vmatprep.mubr.f32.mxu0 0.0
      %493 = vmatmul.mubr.f32.gmra.mrb[0].mxu0 %v317
      %v494 = vpop.f32.mrb[0].mxu0
      %v495 = vadd.f32 0.0, %v494
      %v496 = vpop.f32.mrb[0].mxu0
      %497 = vmatprep.mubr.f32.mxu0 0.0
      %498 = vmatmul.mubr.f32.gmra.mrb[0].mxu0 %v320
      %v499 = vpop.f32.mrb[0].mxu0
      %v500 = vadd.f32 0.0, %v499
      %v501 = vpop.f32.mrb[0].mxu0
      %502 = vmatprep.mubr.f32.mxu0 0.0
      %503 = vmatmul.mubr.f32.gmra.mrb[0].mxu0 %v323
      %v504 = vpop.f32.mrb[0].mxu0
      %v505 = vadd.f32 0.0, %v504
      %v506 = vpop.f32.mrb[0].mxu0
      %507 = vmatprep.mubr.f32.mxu0 0.0
      %508 = vmatmul.mubr.f32.gmra.mrb[0].mxu0 %v326
      %v509 = vpop.f32.mrb[0].mxu0
      %v510 = vadd.f32 0.0, %v509
      %v511 = vpop.f32.mrb[0].mxu0
      %512 = vmatprep.mubr.f32.mxu0 0.0
      %513 = vmatmul.mubr.f32.gmra.mrb[0].mxu0 %v329
      %v514 = vpop.f32.mrb[0].mxu0
      %v515 = vadd.f32 0.0, %v514
      %v516 = vpop.f32.mrb[0].mxu0
      %517 = vmatprep.mubr.f32.mxu0 0.0
      %518 = vmatmul.mubr.f32.gmra.mrb[0].mxu0 %v332
      %v519 = vpop.f32.mrb[0].mxu0
      %v520 = vadd.f32 0.0, %v519
      %v521 = vpop.f32.mrb[0].mxu0
      %522 = vmatprep.mubr.f32.mxu0 0.0
      %523 = vmatmul.mubr.f32.gmra.mrb[0].mxu0 %v335
      %v524 = vpop.f32.mrb[0].mxu0
      %v525 = vadd.f32 0.0, %v524
      %v526 = vpop.f32.mrb[0].mxu0
      %527 = vmatprep.mubr.f32.mxu0 0.0
      %528 = vmatmul.mubr.f32.gmra.mrb[0].mxu0 %v338
      %v529 = vpop.f32.mrb[0].mxu0
      %v530 = vadd.f32 0.0, %v529
      %v531 = vpop.f32.mrb[0].mxu0
      %532 = vmatprep.mubr.f32.mxu0 0.0
      %533 = vmatmul.mubr.f32.gmra.mrb[0].mxu0 %v341
      %v534 = vpop.f32.mrb[0].mxu0
      %v535 = vadd.f32 0.0, %v534
      %v536 = vpop.f32.mrb[0].mxu0
      %537 = vmatprep.mubr.f32.mxu0 0.0
      %538 = vmatmul.mubr.f32.gmra.mrb[0].mxu0 %v344
      %v539 = vpop.f32.mrb[0].mxu0
      %v540 = vadd.f32 0.0, %v539
      %v541 = vpop.f32.mrb[0].mxu0
      %542 = vmatprep.mubr.f32.mxu0 0.0
      %543 = vmatmul.mubr.f32.gmra.mrb[0].mxu0 %v347
      %v544 = vpop.f32.mrb[0].mxu0
      %v545 = vadd.f32 0.0, %v544
      %v546 = vpop.f32.mrb[0].mxu0
      %547 = vmatprep.mubr.f32.mxu0 0.0
      %548 = vmatmul.mubr.f32.gmra.mrb[0].mxu0 %v350
      %v549 = vpop.f32.mrb[0].mxu0
      %v550 = vadd.f32 0.0, %v549
      %v551 = vpop.f32.mrb[0].mxu0
      %552 = vmatprep.mubr.f32.mxu0 0.0
      %553 = vmatmul.mubr.f32.gmra.mrb[0].mxu0 %v353
      %v554 = vpop.f32.mrb[0].mxu0
      %v555 = vadd.f32 0.0, %v554
      %v556 = vpop.f32.mrb[0].mxu0
      %557 = vmatprep.mubr.f32.mxu0 0.0
      %558 = vmatmul.mubr.f32.gmra.mrb[0].mxu0 %v356
      %v559 = vpop.f32.mrb[0].mxu0
      %v560 = vadd.f32 0.0, %v559
      %v561 = vpop.f32.mrb[0].mxu0
      %562 = vmatprep.mubr.f32.mxu0 0.0
      %563 = vmatmul.mubr.f32.gmra.mrb[0].mxu0 %v359
      %v564 = vpop.f32.mrb[0].mxu0
      %v565 = vadd.f32 0.0, %v564
      %v566 = vpop.f32.mrb[0].mxu0
      %567 = vmatprep.mubr.f32.mxu0 0.0
      %568 = vmatmul.mubr.f32.gmra.mrb[0].mxu0 %v362
      %v569 = vpop.f32.mrb[0].mxu0
      %v570 = vadd.f32 0.0, %v569
      %v571 = vpop.f32.mrb[0].mxu0
      %572 = vmatprep.mubr.f32.mxu0 0.0
      %573 = vmatmul.mubr.f32.gmra.mrb[0].mxu0 %v365
      %v574 = vpop.f32.mrb[0].mxu0
      %v575 = vadd.f32 0.0, %v574
      %v576 = vpop.f32.mrb[0].mxu0
      %577 = vmatprep.mubr.f32.mxu0 0.0
      %578 = vmatmul.mubr.f32.gmra.mrb[0].mxu0 %v368
      %v579 = vpop.f32.mrb[0].mxu0
      %v580 = vadd.f32 0.0, %v579
      %v581 = vpop.f32.mrb[0].mxu0
      %582 = vmatprep.mubr.f32.mxu0 0.0
      %583 = vmatmul.mubr.f32.gmra.mrb[0].mxu0 %v371
      %v584 = vpop.f32.mrb[0].mxu0
      %v585 = vadd.f32 0.0, %v584
      %v586 = vpop.f32.mrb[0].mxu0
      %587 = vmatprep.mubr.f32.mxu0 0.0
      %588 = vmatmul.mubr.f32.gmra.mrb[0].mxu0 %v374
      %v589 = vpop.f32.mrb[0].mxu0
      %v590 = vadd.f32 0.0, %v589
      %v591 = vpop.f32.mrb[0].mxu0
      %592 = vmatprep.mubr.f32.mxu0 0.0
      %593 = vmatmul.mubr.f32.gmra.mrb[0].mxu0 %v377
      %v594 = vpop.f32.mrb[0].mxu0
      %v595 = vadd.f32 0.0, %v594
      %v596 = vpop.f32.mrb[0].mxu0
      %597 = vmatprep.mubr.f32.mxu0 0.0
      %598 = vmatmul.mubr.f32.gmra.mrb[0].mxu0 %v380
      %v599 = vpop.f32.mrb[0].mxu0
      %v600 = vadd.f32 0.0, %v599
      %v601 = vpop.f32.mrb[0].mxu0
      %602 = vmatprep.mubr.f32.mxu0 0.0
      %603 = vmatmul.mubr.f32.gmra.mrb[0].mxu0 %v383
      %v604 = vpop.f32.mrb[0].mxu0
      %v605 = vadd.f32 0.0, %v604
      %v606 = vpop.f32.mrb[0].mxu0
      %607 = vmatprep.mubr.f32.mxu0 0.0
      %608 = vmatmul.mubr.f32.gmra.mrb[0].mxu0 %v386
      %v609 = vpop.f32.mrb[0].mxu0
      %v610 = vadd.f32 0.0, %v609
      %v611 = vpop.f32.mrb[0].mxu0
      %612 = vdwg.mxu0
      %vm613 = vcmask 64512
      %614 = vst.msk [vmem:[%s212] sm:$0xff] %vm613, %v455
      %615 = vst.msk [vmem:[%s212 + $0x8] sm:$0xff] %vm613, %v460
      %616 = vst.msk [vmem:[%s212 + $0x10] sm:$0xff] %vm613, %v465
      %617 = vst.msk [vmem:[%s212 + $0x18] sm:$0xff] %vm613, %v470
      %618 = vst.msk [vmem:[%s212 + $0x20] sm:$0xff] %vm613, %v475
      %619 = vst.msk [vmem:[%s212 + $0x28] sm:$0xff] %vm613, %v480
      %620 = vst.msk [vmem:[%s212 + $0x30] sm:$0xff] %vm613, %v485
      %621 = vst.msk [vmem:[%s212 + $0x38] sm:$0xff] %vm613, %v490
      %622 = vst.msk [vmem:[%s212 + $0x40] sm:$0xff] %vm613, %v495
      %623 = vst.msk [vmem:[%s212 + $0x48] sm:$0xff] %vm613, %v500
      %624 = vst.msk [vmem:[%s212 + $0x50] sm:$0xff] %vm613, %v505
      %625 = vst.msk [vmem:[%s212 + $0x58] sm:$0xff] %vm613, %v510
      %626 = vst.msk [vmem:[%s212 + $0x60] sm:$0xff] %vm613, %v515
      %627 = vst.msk [vmem:[%s212 + $0x68] sm:$0xff] %vm613, %v520
      %628 = vst.msk [vmem:[%s212 + $0x70] sm:$0xff] %vm613, %v525
      %629 = vst.msk [vmem:[%s212 + $0x78] sm:$0xff] %vm613, %v530
      %630 = vst.msk [vmem:[%s212 + $0x80] sm:$0xff] %vm613, %v535
      %631 = vst.msk [vmem:[%s212 + $0x88] sm:$0xff] %vm613, %v540
      %632 = vst.msk [vmem:[%s212 + $0x90] sm:$0xff] %vm613, %v545
      %633 = vst.msk [vmem:[%s212 + $0x98] sm:$0xff] %vm613, %v550
      %634 = vst.msk [vmem:[%s212 + $0xa0] sm:$0xff] %vm613, %v555
      %635 = vst.msk [vmem:[%s212 + $0xa8] sm:$0xff] %vm613, %v560
      %636 = vst.msk [vmem:[%s212 + $0xb0] sm:$0xff] %vm613, %v565
      %637 = vst.msk [vmem:[%s212 + $0xb8] sm:$0xff] %vm613, %v570
      %638 = vst.msk [vmem:[%s212 + $0xc0] sm:$0xff] %vm613, %v575
      %639 = vst.msk [vmem:[%s212 + $0xc8] sm:$0xff] %vm613, %v580
      %640 = vst.msk [vmem:[%s212 + $0xd0] sm:$0xff] %vm613, %v585
      %641 = vst.msk [vmem:[%s212 + $0xd8] sm:$0xff] %vm613, %v590
      %642 = vst.msk [vmem:[%s212 + $0xe0] sm:$0xff] %vm613, %v595
      %643 = vst.msk [vmem:[%s212 + $0xe8] sm:$0xff] %vm613, %v600
      %644 = vst.msk [vmem:[%s212 + $0xf0] sm:$0xff] %vm613, %v605
      %645 = vst.msk [vmem:[%s212 + $0xf8] sm:$0xff] %vm613, %v610
      %v646 = vsel %vm613, %v455, 0.0
      %v647 = vsel %vm613, %v460, 0.0
      %v648 = vadd.f32 %v646, %v647
      %v649 = vsel %vm613, %v465, 0.0
      %v650 = vadd.f32 %v648, %v649
      %v651 = vsel %vm613, %v470, 0.0
      %v652 = vadd.f32 %v650, %v651
      %v653 = vsel %vm613, %v475, 0.0
      %v654 = vadd.f32 %v652, %v653
      %v655 = vsel %vm613, %v480, 0.0
      %v656 = vadd.f32 %v654, %v655
      %v657 = vsel %vm613, %v485, 0.0
      %v658 = vadd.f32 %v656, %v657
      %v659 = vsel %vm613, %v490, 0.0
      %v660 = vadd.f32 %v658, %v659
      %v661 = vsel %vm613, %v495, 0.0
      %v662 = vadd.f32 %v660, %v661
      %v663 = vsel %vm613, %v500, 0.0
      %v664 = vadd.f32 %v662, %v663
      %v665 = vsel %vm613, %v505, 0.0
      %v666 = vadd.f32 %v664, %v665
      %v667 = vsel %vm613, %v510, 0.0
      %v668 = vadd.f32 %v666, %v667
      %v669 = vsel %vm613, %v515, 0.0
      %v670 = vadd.f32 %v668, %v669
      %v671 = vsel %vm613, %v520, 0.0
      %v672 = vadd.f32 %v670, %v671
      %v673 = vsel %vm613, %v525, 0.0
      %v674 = vadd.f32 %v672, %v673
      %v675 = vsel %vm613, %v530, 0.0
      %v676 = vadd.f32 %v674, %v675
      %v677 = vsel %vm613, %v535, 0.0
      %v678 = vadd.f32 %v676, %v677
      %v679 = vsel %vm613, %v540, 0.0
      %v680 = vadd.f32 %v678, %v679
      %v681 = vsel %vm613, %v545, 0.0
      %v682 = vadd.f32 %v680, %v681
      %v683 = vsel %vm613, %v550, 0.0
      %v684 = vadd.f32 %v682, %v683
      %v685 = vsel %vm613, %v555, 0.0
      %v686 = vadd.f32 %v684, %v685
      %v687 = vsel %vm613, %v560, 0.0
      %v688 = vadd.f32 %v686, %v687
      %v689 = vsel %vm613, %v565, 0.0
      %v690 = vadd.f32 %v688, %v689
      %v691 = vsel %vm613, %v570, 0.0
      %v692 = vadd.f32 %v690, %v691
      %v693 = vsel %vm613, %v575, 0.0
      %v694 = vadd.f32 %v692, %v693
      %v695 = vsel %vm613, %v580, 0.0
      %v696 = vadd.f32 %v694, %v695
      %v697 = vsel %vm613, %v585, 0.0
      %v698 = vadd.f32 %v696, %v697
      %v699 = vsel %vm613, %v590, 0.0
      %v700 = vadd.f32 %v698, %v699
      %v701 = vsel %vm613, %v595, 0.0
      %v702 = vadd.f32 %v700, %v701
      %v703 = vsel %vm613, %v600, 0.0
      %v704 = vadd.f32 %v702, %v703
      %v705 = vsel %vm613, %v605, 0.0
      %v706 = vadd.f32 %v704, %v705
      %v707 = vsel %vm613, %v610, 0.0
      %v708 = vadd.f32 %v706, %v707
      %v709 = vrot.slane %v708, 4
      %v710 = vadd.f32 %v708, %v709
      %v711 = vrot.slane %v710, 2
      %v712 = vadd.f32 %v710, %v711
      %v713 = vrot.slane %v712, 1
      %v714 = vadd.f32 %v712, %v713
      %v715 = vmul.f32 %v455, %v455
      %v716 = vmul.f32 %v460, %v460
      %v717 = vmul.f32 %v465, %v465
      %v718 = vmul.f32 %v470, %v470
      %v719 = vmul.f32 %v475, %v475
      %v720 = vmul.f32 %v480, %v480
      %v721 = vmul.f32 %v485, %v485
      %v722 = vmul.f32 %v490, %v490
      %v723 = vmul.f32 %v495, %v495
      %v724 = vmul.f32 %v500, %v500
      %v725 = vmul.f32 %v505, %v505
      %v726 = vmul.f32 %v510, %v510
      %v727 = vmul.f32 %v515, %v515
      %v728 = vmul.f32 %v520, %v520
      %v729 = vmul.f32 %v525, %v525
      %v730 = vmul.f32 %v530, %v530
      %v731 = vmul.f32 %v535, %v535
      %v732 = vmul.f32 %v540, %v540
      %v733 = vmul.f32 %v545, %v545
      %v734 = vmul.f32 %v550, %v550
      %v735 = vmul.f32 %v555, %v555
      %v736 = vmul.f32 %v560, %v560
      %v737 = vmul.f32 %v565, %v565
      %v738 = vmul.f32 %v570, %v570
      %v739 = vmul.f32 %v575, %v575
      %v740 = vmul.f32 %v580, %v580
      %v741 = vmul.f32 %v585, %v585
      %v742 = vmul.f32 %v590, %v590
      %v743 = vmul.f32 %v595, %v595
      %v744 = vmul.f32 %v600, %v600
      %v745 = vmul.f32 %v605, %v605
      %v746 = vmul.f32 %v610, %v610
      %v747 = vsel %vm613, %v715, 0.0
      %v748 = vsel %vm613, %v716, 0.0
      %v749 = vadd.f32 %v747, %v748
      %v750 = vsel %vm613, %v717, 0.0
      %v751 = vadd.f32 %v749, %v750
      %v752 = vsel %vm613, %v718, 0.0
      %v753 = vadd.f32 %v751, %v752
      %v754 = vsel %vm613, %v719, 0.0
      %v755 = vadd.f32 %v753, %v754
      %v756 = vsel %vm613, %v720, 0.0
      %v757 = vadd.f32 %v755, %v756
      %v758 = vsel %vm613, %v721, 0.0
      %v759 = vadd.f32 %v757, %v758
      %v760 = vsel %vm613, %v722, 0.0
      %v761 = vadd.f32 %v759, %v760
      %v762 = vsel %vm613, %v723, 0.0
      %v763 = vadd.f32 %v761, %v762
      %v764 = vsel %vm613, %v724, 0.0
      %v765 = vadd.f32 %v763, %v764
      %v766 = vsel %vm613, %v725, 0.0
      %v767 = vadd.f32 %v765, %v766
      %v768 = vsel %vm613, %v726, 0.0
      %v769 = vadd.f32 %v767, %v768
      %v770 = vsel %vm613, %v727, 0.0
      %v771 = vadd.f32 %v769, %v770
      %v772 = vsel %vm613, %v728, 0.0
      %v773 = vadd.f32 %v771, %v772
      %v774 = vsel %vm613, %v729, 0.0
      %v775 = vadd.f32 %v773, %v774
      %v776 = vsel %vm613, %v730, 0.0
      %v777 = vadd.f32 %v775, %v776
      %v778 = vsel %vm613, %v731, 0.0
      %v779 = vadd.f32 %v777, %v778
      %v780 = vsel %vm613, %v732, 0.0
      %v781 = vadd.f32 %v779, %v780
      %v782 = vsel %vm613, %v733, 0.0
      %v783 = vadd.f32 %v781, %v782
      %v784 = vsel %vm613, %v734, 0.0
      %v785 = vadd.f32 %v783, %v784
      %v786 = vsel %vm613, %v735, 0.0
      %v787 = vadd.f32 %v785, %v786
      %v788 = vsel %vm613, %v736, 0.0
      %v789 = vadd.f32 %v787, %v788
      %v790 = vsel %vm613, %v737, 0.0
      %v791 = vadd.f32 %v789, %v790
      %v792 = vsel %vm613, %v738, 0.0
      %v793 = vadd.f32 %v791, %v792
      %v794 = vsel %vm613, %v739, 0.0
      %v795 = vadd.f32 %v793, %v794
      %v796 = vsel %vm613, %v740, 0.0
      %v797 = vadd.f32 %v795, %v796
      %v798 = vsel %vm613, %v741, 0.0
      %v799 = vadd.f32 %v797, %v798
      %v800 = vsel %vm613, %v742, 0.0
      %v801 = vadd.f32 %v799, %v800
      %v802 = vsel %vm613, %v743, 0.0
      %v803 = vadd.f32 %v801, %v802
      %v804 = vsel %vm613, %v744, 0.0
      %v805 = vadd.f32 %v803, %v804
      %v806 = vsel %vm613, %v745, 0.0
      %v807 = vadd.f32 %v805, %v806
      %v808 = vsel %vm613, %v746, 0.0
      %v809 = vadd.f32 %v807, %v808
      %v810 = vrot.slane %v809, 4
      %v811 = vadd.f32 %v809, %v810
      %v812 = vrot.slane %v811, 2
      %v813 = vadd.f32 %v811, %v812
      %v814 = vrot.slane %v813, 1
      %v815 = vadd.f32 %v813, %v814
      %v816 = vlaneseq
      %v817 = vshrl.u32 %v816, 7
      %vm818 = vcmp.eq.s32.totalorder %v817, 0
      %v819 = vsel %vm818, %v714, %v815
      %vm820 = vcmask 58368
      %821 = vst.msk [vmem:[%s219] sm:$0x3] %vm820, %v819
      %s822 = sadd.s32 %s19, %s20
      %s823 = smul.u32 32, %s822
      %p824 = scmp.lt.s32.totalorder %s823, 63
      %s825 = scalar_select %p824, %s823, 63
      %s826 = smul.addr %s825, 8
      %s827 = scalar_lea.vmem %s2, %s826
      %s828 = sadd.s32 %s19, %s20
      %p829 = scmp.lt.s32.totalorder %s828, 1
      %s830 = scalar_select %p829, %s828, 1
      %s831 = smul.addr %s830, 2
      %s832 = scalar_lea.vmem %s3, %s831
      // Predicated region
      $region29: #{bottleneck_forward.4} parent=27 // pred_check
        %p833 = pneg %p96
      $region30: #{bottleneck_forward.4} parent=27 // pred_check_branch
        %835 = sbr.rel (%p833) target = $region32
      $region31: #{bottleneck_forward.4} parent=27 // pred_region
        %s836 = sadd.s32 %s19, %s20
        %s837 = smul.u32 32, %s836
      $region32: #{bottleneck_forward.4} parent=27 // pred_fallthru
        _
      // Predicated region
      $region33: #{bottleneck_forward.4} parent=27 // pred_check
        %p838 = pneg %p124
      $region34: #{bottleneck_forward.4} parent=27 // pred_check_branch
        %840 = sbr.rel (%p838) target = $region36
      $region35: #{bottleneck_forward.4} parent=27 // pred_region
        %s841 = sadd.s32 %s19, %s20
      $region36: #{bottleneck_forward.4} parent=27 // pred_fallthru
        _
    $region28: #{bottleneck_forward.4} parent=5 // pred_fallthru
      _
    %p842 = scmp.le.s32.totalorder 2, %s10
    // Predicated region
    $region37: #{bottleneck_forward.4} parent=5 // pred_check
      %p843 = pneg %p842
    $region38: #{bottleneck_forward.4} parent=5 // pred_check_branch
      %845 = sbr.rel (%p843) target = $region40
    $region39: #{bottleneck_forward.4} parent=5 // pred_region
      %s846 = ssub.s32 %s10, 2
      // Predicated region
      $region41: #{bottleneck_forward.4} parent=39 // pred_check
        %p847 = pneg %p102
      $region42: #{bottleneck_forward.4} parent=39 // pred_check_branch
        %849 = sbr.rel (%p847) target = $region44
      $region43: #{bottleneck_forward.4} parent=39 // pred_region
        %s850 = sadd.s32 %s21, %s22
        %s851 = smul.u32 32, %s850
        %p852 = scmp.lt.s32.totalorder %s851, 63
        %s853 = scalar_select %p852, %s851, 63
        %s854 = smul.addr %s853, 8
        %s855 = scalar_lea.vmem %s2, %s854
      $region44: #{bottleneck_forward.4} parent=39 // pred_fallthru
        _
      // Predicated region
      $region45: #{bottleneck_forward.4} parent=39 // pred_check
        %p856 = pneg %p130
      $region46: #{bottleneck_forward.4} parent=39 // pred_check_branch
        %858 = sbr.rel (%p856) target = $region48
      $region47: #{bottleneck_forward.4} parent=39 // pred_region
        %s859 = sadd.s32 %s21, %s22
        %p860 = scmp.lt.s32.totalorder %s859, 1
        %s861 = scalar_select %p860, %s859, 1
        %s862 = smul.addr %s861, 2
        %s863 = scalar_lea.vmem %s3, %s862
      $region48: #{bottleneck_forward.4} parent=39 // pred_fallthru
        _
    $region40: #{bottleneck_forward.4} parent=5 // pred_fallthru
      _
  $region6: #{bottleneck_forward.4} parent=0 // loop_footer
    %s14 = sadd.s32 1, %s10
  $region7: #{bottleneck_forward.4} parent=0 // loop_footer_branch
    %9 = sbr.rel target = $region3
  $region8: #{bottleneck_forward.4} parent=0 // loop_exit
    _

// kernel: bottleneck_forward.7
$region0: #{bottleneck_forward.7}
  #allocation0 [shape = 'u32[]', space=smem, size = 0x4, offset = 0x4, fixed_abs, tag = 'smem constant byte address 0x4 - core index']
  #allocation1 [shape = 'u32[144,128]{1,0:T(1,128)}', space=vmem, size = 0x12000, scoped, tag = 'internal scratch']
  %s0 = inlined_call_operand.vmem [shape: f32[2,16,256], index: 0, kind: input, shape index: {}]
  %s1 = inlined_call_operand.vmem [shape: f32[16,1], index: 1, kind: input, shape index: {}]
  %s2 = inlined_call_operand.vmem [shape: f32[16,1], index: 2, kind: input, shape index: {}]
  %s3 = inlined_call_operand.vmem [shape: f32[2,16,256], index: 3, kind: input, shape index: {}]
  %s4 = inlined_call_operand.vmem [shape: f32[2,16,256], index: 4, kind: output, shape index: {}]
  %s5 = sld [smem:[#allocation0]]
  $region49: #{bottleneck_forward.7} parent=0
    _
  %s7 = ssub.s32 1, %s5
  %s8 = scalar_select 0, %s7, %s5
  loop: start=0, step=1, limit=4
  $region2: #{bottleneck_forward.7} parent=0 // loop_pre_header
    _
  $region3: #{bottleneck_forward.7} parent=0 // loop_header
    %s10 = sphi 0, %s14
    %p11 = scmp.ge.s32.totalorder %s10, 4
    %s17 = sphi 0, %s29
    %s18 = sphi 0, %s25
    %s19 = sphi 0, %s17
    %s20 = sphi 0, %s18
    %s21 = sphi 0, %s19
    %s22 = sphi 0, %s20
    %s34 = sphi 0, %s36
    %s37 = sphi 0, %s34
    %s38 = sphi 0, %s37
    %s54 = sphi 0, %s38
    %s58 = sphi 0, %s58
    %s60 = sphi 0, %s58
    %s61 = sphi 0, %s60
    %s75 = sphi 0, %s61
    %s79 = sphi 0, %s79
    %s81 = sphi 0, %s79
    %s82 = sphi 0, %s81
    %s96 = sphi 0, %s82
    %s104 = sphi 0, %s106
    %s107 = sphi 0, %s104
    %s108 = sphi 0, %s107
    %s124 = sphi 0, %s108
    %s132 = sphi 0, %s134
    %s135 = sphi 0, %s132
    %s136 = sphi 0, %s135
    %s152 = sphi 0, %s136
  $region4: #{bottleneck_forward.7} parent=0 // loop_header_branch
    %13 = sbr.rel (%p11) target = $region8
  $region5: #{bottleneck_forward.7} parent=0 // loop_body
    %s15 = ssub.s32 %s10, 1
    %s16 = ssub.s32 %s10, 2
    %s23 = sadd.s32 1, %s18
    %p24 = scmp.ge.s32.totalorder %s23, 1
    %s25 = scalar_select %p24, 0, %s23
    %s26 = sadd.s32 1, %s17
    %s27 = scalar_select %p24, %s26, %s17
    %p28 = scmp.ge.s32.totalorder %s27, 2
    %s29 = scalar_select %p28, 0, %s27
    %s30 = ssub.s32 %s17, %s29
    %s31 = ssub.s32 %s18, %s25
    %s32 = sor.u32 %s30, %s31
    %p33 = scmp.eq.s32.totalorder %s32, 0
    %s35 = sadd.s32 %s34, 1
    %s36 = scalar_select %p33, %s34, %s35
    %p39 = pneg %p33
    %p40 = scmp.eq.s32.totalorder %s10, 1
    %p41 = por %p39, %p40
    %p42 = scmp.ne.s32.totalorder %s34, %s37
    %p43 = scmp.eq.s32.totalorder %s10, 0
    %p44 = por %p42, %p43
    %p45 = scmp.ne.s32.totalorder %s34, %s37
    %p46 = scmp.eq.s32.totalorder %s15, 1
    %p47 = por %p45, %p46
    %p48 = scmp.ne.s32.totalorder %s37, %s38
    %p49 = scmp.eq.s32.totalorder %s15, 0
    %p50 = por %p48, %p49
    %p51 = scmp.ne.s32.totalorder %s37, %s38
    %p52 = scmp.eq.s32.totalorder %s16, 1
    %p53 = por %p51, %p52
    %p55 = scmp.ne.s32.totalorder %s38, %s54
    %p56 = scmp.eq.s32.totalorder %s16, 0
    %p57 = por %p55, %p56
    %s59 = sadd.s32 %s58, 1
    %p62 = scmp.eq.s32.totalorder %s10, 1
    %p63 = scmp.ne.s32.totalorder %s58, %s60
    %p64 = scmp.eq.s32.totalorder %s10, 0
    %p65 = por %p63, %p64
    %p66 = scmp.ne.s32.totalorder %s58, %s60
    %p67 = scmp.eq.s32.totalorder %s15, 1
    %p68 = por %p66, %p67
    %p69 = scmp.ne.s32.totalorder %s60, %s61
    %p70 = scmp.eq.s32.totalorder %s15, 0
    %p71 = por %p69, %p70
    %p72 = scmp.ne.s32.totalorder %s60, %s61
    %p73 = scmp.eq.s32.totalorder %s16, 1
    %p74 = por %p72, %p73
    %p76 = scmp.ne.s32.totalorder %s61, %s75
    %p77 = scmp.eq.s32.totalorder %s16, 0
    %p78 = por %p76, %p77
    %s80 = sadd.s32 %s79, 1
    %p83 = scmp.eq.s32.totalorder %s10, 1
    %p84 = scmp.ne.s32.totalorder %s79, %s81
    %p85 = scmp.eq.s32.totalorder %s10, 0
    %p86 = por %p84, %p85
    %p87 = scmp.ne.s32.totalorder %s79, %s81
    %p88 = scmp.eq.s32.totalorder %s15, 1
    %p89 = por %p87, %p88
    %p90 = scmp.ne.s32.totalorder %s81, %s82
    %p91 = scmp.eq.s32.totalorder %s15, 0
    %p92 = por %p90, %p91
    %p93 = scmp.ne.s32.totalorder %s81, %s82
    %p94 = scmp.eq.s32.totalorder %s16, 1
    %p95 = por %p93, %p94
    %p97 = scmp.ne.s32.totalorder %s82, %s96
    %p98 = scmp.eq.s32.totalorder %s16, 0
    %p99 = por %p97, %p98
    %s100 = ssub.s32 %s17, %s29
    %s101 = ssub.s32 %s18, %s25
    %s102 = sor.u32 %s100, %s101
    %p103 = scmp.eq.s32.totalorder %s102, 0
    %s105 = sadd.s32 %s104, 1
    %s106 = scalar_select %p103, %s104, %s105
    %p109 = pneg %p103
    %p110 = scmp.eq.s32.totalorder %s10, 1
    %p111 = por %p109, %p110
    %p112 = scmp.ne.s32.totalorder %s104, %s107
    %p113 = scmp.eq.s32.totalorder %s10, 0
    %p114 = por %p112, %p113
    %p115 = scmp.ne.s32.totalorder %s104, %s107
    %p116 = scmp.eq.s32.totalorder %s15, 1
    %p117 = por %p115, %p116
    %p118 = scmp.ne.s32.totalorder %s107, %s108
    %p119 = scmp.eq.s32.totalorder %s15, 0
    %p120 = por %p118, %p119
    %p121 = scmp.ne.s32.totalorder %s107, %s108
    %p122 = scmp.eq.s32.totalorder %s16, 1
    %p123 = por %p121, %p122
    %p125 = scmp.ne.s32.totalorder %s108, %s124
    %p126 = scmp.eq.s32.totalorder %s16, 0
    %p127 = por %p125, %p126
    %s128 = ssub.s32 %s17, %s29
    %s129 = ssub.s32 %s18, %s25
    %s130 = sor.u32 %s128, %s129
    %p131 = scmp.eq.s32.totalorder %s130, 0
    %s133 = sadd.s32 %s132, 1
    %s134 = scalar_select %p131, %s132, %s133
    %p137 = pneg %p131
    %p138 = scmp.eq.s32.totalorder %s10, 1
    %p139 = por %p137, %p138
    %p140 = scmp.ne.s32.totalorder %s132, %s135
    %p141 = scmp.eq.s32.totalorder %s10, 0
    %p142 = por %p140, %p141
    %p143 = scmp.ne.s32.totalorder %s132, %s135
    %p144 = scmp.eq.s32.totalorder %s15, 1
    %p145 = por %p143, %p144
    %p146 = scmp.ne.s32.totalorder %s135, %s136
    %p147 = scmp.eq.s32.totalorder %s15, 0
    %p148 = por %p146, %p147
    %p149 = scmp.ne.s32.totalorder %s135, %s136
    %p150 = scmp.eq.s32.totalorder %s16, 1
    %p151 = por %p149, %p150
    %p153 = scmp.ne.s32.totalorder %s136, %s152
    %p154 = scmp.eq.s32.totalorder %s16, 0
    %p155 = por %p153, %p154
    %p156 = scmp.le.s32.totalorder 1, %s10
    %p157 = scmp.lt.s32.totalorder %s10, 3
    %p158 = pnand %p156, %p157
    %p159 = pneg %p158
    // Predicated region
    $region9: #{bottleneck_forward.7} parent=5 // pred_check
      _
    $region10: #{bottleneck_forward.7} parent=5 // pred_check_branch
      %161 = sbr.rel (%p158) target = $region12
    $region11: #{bottleneck_forward.7} parent=5 // pred_region
      %s162 = ssub.s32 %s10, 1
      // Predicated region
      $region13: #{bottleneck_forward.7} parent=11 // pred_check
        %p163 = pneg %p71
      $region14: #{bottleneck_forward.7} parent=11 // pred_check_branch
        %165 = sbr.rel (%p163) target = $region16
      $region15: #{bottleneck_forward.7} parent=11 // pred_region
        _
      $region16: #{bottleneck_forward.7} parent=11 // pred_fallthru
        _
      // Predicated region
      $region17: #{bottleneck_forward.7} parent=11 // pred_check
        %p166 = pneg %p92
      $region18: #{bottleneck_forward.7} parent=11 // pred_check_branch
        %168 = sbr.rel (%p166) target = $region20
      $region19: #{bottleneck_forward.7} parent=11 // pred_region
        _
      $region20: #{bottleneck_forward.7} parent=11 // pred_fallthru
        _
    $region12: #{bottleneck_forward.7} parent=5 // pred_fallthru
      _
    %p169 = scmp.lt.s32.totalorder %s10, 2
    // Predicated region
    $region21: #{bottleneck_forward.7} parent=5 // pred_check
      %p170 = pneg %p169
    $region22: #{bottleneck_forward.7} parent=5 // pred_check_branch
      %172 = sbr.rel (%p170) target = $region24
    $region23: #{bottleneck_forward.7} parent=5 // pred_region
      // Predicated region
      $region25: #{bottleneck_forward.7} parent=23 // pred_check
        %p173 = pneg %p44
      $region26: #{bottleneck_forward.7} parent=23 // pred_check_branch
        %175 = sbr.rel (%p173) target = $region28
      $region27: #{bottleneck_forward.7} parent=23 // pred_region
        %s176 = smul.u32 2, %s18
        %p177 = scmp.lt.s32.totalorder %s17, 1
        %s178 = scalar_select %p177, %s17, 1
        %p179 = scmp.lt.s32.totalorder %s176, 1
        %s180 = scalar_select %p179, %s176, 1
        %s181 = smul.addr %s178, 4
        %s182 = sadd.s32 %s180, %s181
        %s183 = smul.addr %s182, 8
        %s184 = scalar_lea.vmem %s0, %s183
        %s185 = smul.u32 2, %s18
      $region28: #{bottleneck_forward.7} parent=23 // pred_fallthru
        _
      // Predicated region
      $region29: #{bottleneck_forward.7} parent=23 // pred_check
        %p186 = pneg %p114
      $region30: #{bottleneck_forward.7} parent=23 // pred_check_branch
        %188 = sbr.rel (%p186) target = $region32
      $region31: #{bottleneck_forward.7} parent=23 // pred_region
        %s189 = smul.u32 2, %s18
        %p190 = scmp.lt.s32.totalorder %s17, 1
        %s191 = scalar_select %p190, %s17, 1
        %p192 = scmp.lt.s32.totalorder %s189, 1
        %s193 = scalar_select %p192, %s189, 1
        %s194 = smul.addr %s191, 4
        %s195 = sadd.s32 %s193, %s194
        %s196 = smul.addr %s195, 8
        %s197 = scalar_lea.vmem %s3, %s196
        %s198 = smul.u32 2, %s18
      $region32: #{bottleneck_forward.7} parent=23 // pred_fallthru
        _
    $region24: #{bottleneck_forward.7} parent=5 // pred_fallthru
      _
    %p199 = scmp.le.s32.totalorder 1, %s10
    %p200 = scmp.lt.s32.totalorder %s10, 3
    %p201 = pnand %p199, %p200
    %p202 = pneg %p201
    // Predicated region
    $region33: #{bottleneck_forward.7} parent=5 // pred_check
      _
    $region34: #{bottleneck_forward.7} parent=5 // pred_check_branch
      %204 = sbr.rel (%p201) target = $region36
    $region35: #{bottleneck_forward.7} parent=5 // pred_region
      %s205 = ssub.s32 %s10, 1
      %s206 = smul.u32 2, %s20
      %p207 = scmp.lt.s32.totalorder %s19, 1
      %s208 = scalar_select %p207, %s19, 1
      %p209 = scmp.lt.s32.totalorder %s206, 1
      %s210 = scalar_select %p209, %s206, 1
      %s211 = smul.addr %s208, 4
      %s212 = sadd.s32 %s210, %s211
      %s213 = smul.addr %s212, 8
      %s214 = scalar_lea.vmem %s0, %s213
      %p215 = pneg %p50
      %p216 = pneg %p47
      %p217 = pneg %p71
      %p218 = pneg %p68
      %p219 = pneg %p92
      %p220 = pneg %p89
      %s221 = smul.u32 2, %s20
      %p222 = scmp.lt.s32.totalorder %s19, 1
      %s223 = scalar_select %p222, %s19, 1
      %p224 = scmp.lt.s32.totalorder %s221, 1
      %s225 = scalar_select %p224, %s221, 1
      %s226 = smul.addr %s223, 4
      %s227 = sadd.s32 %s225, %s226
      %s228 = smul.addr %s227, 8
      %s229 = scalar_lea.vmem %s3, %s228
      %p230 = pneg %p120
      %p231 = pneg %p117
      %p232 = pneg %p148
      %p233 = pneg %p145
      %s234 = smul.u32 2, %s20
      %p235 = scmp.lt.s32.totalorder %s19, 1
      %s236 = scalar_select %p235, %s19, 1
      %p237 = scmp.lt.s32.totalorder %s234, 1
      %s238 = scalar_select %p237, %s234, 1
      %s239 = smul.addr %s236, 4
      %s240 = sadd.s32 %s238, %s239
      %s241 = smul.addr %s240, 8
      %s242 = scalar_lea.vmem %s4, %s241
      %s243 = smul.u32 2, %s20
      %p244 = scmp.lt.s32.totalorder %s19, 1
      %s245 = scalar_select %p244, %s19, 1
      %p246 = scmp.lt.s32.totalorder %s243, 1
      %s247 = scalar_select %p246, %s243, 1
      %s248 = smul.addr %s245, 4
      %s249 = sadd.s32 %s247, %s248
      %s250 = smul.addr %s249, 8
      %s251 = scalar_lea.vmem %s0, %s250
      %s252 = smul.u32 2, %s20
      %s253 = smul.u32 2, %s20
      %p254 = scmp.lt.s32.totalorder %s19, 1
      %s255 = scalar_select %p254, %s19, 1
      %p256 = scmp.lt.s32.totalorder %s253, 1
      %s257 = scalar_select %p256, %s253, 1
      %s258 = smul.addr %s255, 4
      %s259 = sadd.s32 %s257, %s258
      %s260 = smul.addr %s259, 8
      %s261 = scalar_lea.vmem %s3, %s260
      %s262 = smul.u32 2, %s20
      %s263 = smul.u32 2, %s20
      %p264 = scmp.lt.s32.totalorder %s19, 1
      %s265 = scalar_select %p264, %s19, 1
      %p266 = scmp.lt.s32.totalorder %s263, 1
      %s267 = scalar_select %p266, %s263, 1
      %s268 = smul.addr %s265, 4
      %s269 = sadd.s32 %s267, %s268
      %s270 = smul.addr %s269, 8
      %s271 = scalar_lea.vmem %s4, %s270
      %s272 = smul.u32 2, %s20
      %v273 = vld [vmem:[%s251] sm:$0xff]
      %v274 = vld [vmem:[%s251 + $0x8] sm:$0xff]
      %v275 = vld [vmem:[%s251 + $0x10] sm:$0xff]
      %v276 = vld [vmem:[%s251 + $0x18] sm:$0xff]
      %v277 = vld [vmem:[%s1] sm:$0xff]
      %v278 = vld [vmem:[%s1 + $0x8] sm:$0xff]
      %280 = vset.pattern.permute.xlu0 0
      %281 = vperm.xlu0 %280, %v277
      %v282 = vpop.permute.xlu0 %281
      %285 = vset.pattern.permute.xlu0 0
      %286 = vperm.xlu0 %285, %v278
      %v287 = vpop.permute.xlu0 %286
      %v289 = vmul.f32 %v273, %v282
      %v290 = vmul.f32 %v274, %v282
      %v291 = vmul.f32 %v275, %v287
      %v292 = vmul.f32 %v276, %v287
      %v293 = vld [vmem:[%s2] sm:$0xff]
      %v294 = vld [vmem:[%s2 + $0x8] sm:$0xff]
      %296 = vset.pattern.permute.xlu0 0
      %297 = vperm.xlu0 %296, %v293
      %v298 = vpop.permute.xlu0 %297
      %301 = vset.pattern.permute.xlu0 0
      %302 = vperm.xlu0 %301, %v294
      %v303 = vpop.permute.xlu0 %302
      %v305 = vadd.f32 %v289, %v298
      %v306 = vadd.f32 %v290, %v298
      %v307 = vadd.f32 %v291, %v303
      %v308 = vadd.f32 %v292, %v303
      %v309 = vld [vmem:[%s261] sm:$0xff]
      %v310 = vld [vmem:[%s261 + $0x8] sm:$0xff]
      %v311 = vld [vmem:[%s261 + $0x10] sm:$0xff]
      %v312 = vld [vmem:[%s261 + $0x18] sm:$0xff]
      %v313 = vadd.f32 %v305, %v309
      %v314 = vadd.f32 %v306, %v310
      %v315 = vadd.f32 %v307, %v311
      %v316 = vadd.f32 %v308, %v312
      %v317 = vmax.f32 %v313, 0.0
      %v318 = vmax.f32 %v314, 0.0
      %v319 = vmax.f32 %v315, 0.0
      %v320 = vmax.f32 %v316, 0.0
      %321 = vst [vmem:[%s271] sm:$0xff] %v317
      %322 = vst [vmem:[%s271 + $0x8] sm:$0xff] %v318
      %323 = vst [vmem:[%s271 + $0x10] sm:$0xff] %v319
      %324 = vst [vmem:[%s271 + $0x18] sm:$0xff] %v320
      %s325 = smul.u32 2, %s20
      %p326 = scmp.lt.s32.totalorder %s19, 1
      %s327 = scalar_select %p326, %s19, 1
      %p328 = scmp.lt.s32.totalorder %s325, 1
      %s329 = scalar_select %p328, %s325, 1
      %s330 = smul.addr %s327, 4
      %s331 = sadd.s32 %s329, %s330
      %s332 = smul.addr %s331, 8
      %s333 = scalar_lea.vmem %s4, %s332
      // Predicated region
      $region37: #{bottleneck_forward.7} parent=35 // pred_check
        %p334 = pneg %p145
      $region38: #{bottleneck_forward.7} parent=35 // pred_check_branch
        %336 = sbr.rel (%p334) target = $region40
      $region39: #{bottleneck_forward.7} parent=35 // pred_region
        %s337 = smul.u32 2, %s20
      $region40: #{bottleneck_forward.7} parent=35 // pred_fallthru
        _
    $region36: #{bottleneck_forward.7} parent=5 // pred_fallthru
      _
    %p338 = scmp.le.s32.totalorder 2, %s10
    // Predicated region
    $region41: #{bottleneck_forward.7} parent=5 // pred_check
      %p339 = pneg %p338
    $region42: #{bottleneck_forward.7} parent=5 // pred_check_branch
      %341 = sbr.rel (%p339) target = $region44
    $region43: #{bottleneck_forward.7} parent=5 // pred_region
      %s342 = ssub.s32 %s10, 2
      // Predicated region
      $region45: #{bottleneck_forward.7} parent=43 // pred_check
        %p343 = pneg %p151
      $region46: #{bottleneck_forward.7} parent=43 // pred_check_branch
        %345 = sbr.rel (%p343) target = $region48
      $region47: #{bottleneck_forward.7} parent=43 // pred_region
        %s346 = smul.u32 2, %s22
        %p347 = scmp.lt.s32.totalorder %s21, 1
        %s348 = scalar_select %p347, %s21, 1
        %p349 = scmp.lt.s32.totalorder %s346, 1
        %s350 = scalar_select %p349, %s346, 1
        %s351 = smul.addr %s348, 4
        %s352 = sadd.s32 %s350, %s351
        %s353 = smul.addr %s352, 8
        %s354 = scalar_lea.vmem %s4, %s353
      $region48: #{bottleneck_forward.7} parent=43 // pred_fallthru
        _
    $region44: #{bottleneck_forward.7} parent=5 // pred_fallthru
      _
  $region6: #{bottleneck_forward.7} parent=0 // loop_footer
    %s14 = sadd.s32 1, %s10
  $region7: #{bottleneck_forward.7} parent=0 // loop_footer_branch
    %9 = sbr.rel target = $region3
  $region8: #{bottleneck_forward.7} parent=0 // loop_exit
    _

// kernel: bottleneck_forward.6
$region0: #{bottleneck_forward.6}
  #allocation0 [shape = 'u32[]', space=smem, size = 0x4, offset = 0x4, fixed_abs, tag = 'smem constant byte address 0x4 - core index']
  #allocation1 [shape = 'u32[144,128]{1,0:T(1,128)}', space=vmem, size = 0x12000, scoped, tag = 'internal scratch']
  %s0 = inlined_call_operand.vmem [shape: f32[512,8], index: 0, kind: input, shape index: {}]
  %s1 = inlined_call_operand.vmem [shape: f32[1,8], index: 1, kind: input, shape index: {}]
  %s2 = inlined_call_operand.vmem [shape: f32[1,8], index: 2, kind: input, shape index: {}]
  %s3 = inlined_call_operand.vmem [shape: f32[16,8], index: 3, kind: input, shape index: {}]
  %s4 = inlined_call_operand.vmem [shape: f32[2,16,256], index: 4, kind: output, shape index: {0}]
  %s5 = inlined_call_operand.vmem [shape: f32[2,16,2], index: 5, kind: output, shape index: {1}]
  %6 = xla_tuple %s4, %s5
  %s7 = sld [smem:[#allocation0]]
  $region57: #{bottleneck_forward.6} parent=0
    _
  %s9 = ssub.s32 1, %s7
  %s10 = scalar_select 0, %s9, %s7
  loop: start=0, step=1, limit=4
  $region2: #{bottleneck_forward.6} parent=0 // loop_pre_header
    _
  $region3: #{bottleneck_forward.6} parent=0 // loop_header
    %s12 = sphi 0, %s16
    %p13 = scmp.ge.s32.totalorder %s12, 4
    %s19 = sphi 0, %s31
    %s20 = sphi 0, %s27
    %s21 = sphi 0, %s19
    %s22 = sphi 0, %s20
    %s23 = sphi 0, %s21
    %s24 = sphi 0, %s22
    %s36 = sphi 0, %s38
    %s39 = sphi 0, %s36
    %s40 = sphi 0, %s39
    %s56 = sphi 0, %s40
    %s60 = sphi 0, %s60
    %s62 = sphi 0, %s60
    %s63 = sphi 0, %s62
    %s77 = sphi 0, %s63
    %s81 = sphi 0, %s81
    %s83 = sphi 0, %s81
    %s84 = sphi 0, %s83
    %s98 = sphi 0, %s84
    %s102 = sphi 0, %s102
    %s104 = sphi 0, %s102
    %s105 = sphi 0, %s104
    %s119 = sphi 0, %s105
    %s127 = sphi 0, %s129
    %s130 = sphi 0, %s127
    %s131 = sphi 0, %s130
    %s147 = sphi 0, %s131
    %s155 = sphi 0, %s157
    %s158 = sphi 0, %s155
    %s159 = sphi 0, %s158
    %s175 = sphi 0, %s159
  $region4: #{bottleneck_forward.6} parent=0 // loop_header_branch
    %15 = sbr.rel (%p13) target = $region8
  $region5: #{bottleneck_forward.6} parent=0 // loop_body
    %s17 = ssub.s32 %s12, 1
    %s18 = ssub.s32 %s12, 2
    %s25 = sadd.s32 1, %s20
    %p26 = scmp.ge.s32.totalorder %s25, 1
    %s27 = scalar_select %p26, 0, %s25
    %s28 = sadd.s32 1, %s19
    %s29 = scalar_select %p26, %s28, %s19
    %p30 = scmp.ge.s32.totalorder %s29, 2
    %s31 = scalar_select %p30, 0, %s29
    %s32 = sadd.s32 %s19, %s20
    %s33 = sadd.s32 %s31, %s27
    %s34 = ssub.s32 %s32, %s33
    %p35 = scmp.eq.s32.totalorder %s34, 0
    %s37 = sadd.s32 %s36, 1
    %s38 = scalar_select %p35, %s36, %s37
    %p41 = pneg %p35
    %p42 = scmp.eq.s32.totalorder %s12, 1
    %p43 = por %p41, %p42
    %p44 = scmp.ne.s32.totalorder %s36, %s39
    %p45 = scmp.eq.s32.totalorder %s12, 0
    %p46 = por %p44, %p45
    %p47 = scmp.ne.s32.totalorder %s36, %s39
    %p48 = scmp.eq.s32.totalorder %s17, 1
    %p49 = por %p47, %p48
    %p50 = scmp.ne.s32.totalorder %s39, %s40
    %p51 = scmp.eq.s32.totalorder %s17, 0
    %p52 = por %p50, %p51
    %p53 = scmp.ne.s32.totalorder %s39, %s40
    %p54 = scmp.eq.s32.totalorder %s18, 1
    %p55 = por %p53, %p54
    %p57 = scmp.ne.s32.totalorder %s40, %s56
    %p58 = scmp.eq.s32.totalorder %s18, 0
    %p59 = por %p57, %p58
    %s61 = sadd.s32 %s60, 1
    %p64 = scmp.eq.s32.totalorder %s12, 1
    %p65 = scmp.ne.s32.totalorder %s60, %s62
    %p66 = scmp.eq.s32.totalorder %s12, 0
    %p67 = por %p65, %p66
    %p68 = scmp.ne.s32.totalorder %s60, %s62
    %p69 = scmp.eq.s32.totalorder %s17, 1
    %p70 = por %p68, %p69
    %p71 = scmp.ne.s32.totalorder %s62, %s63
    %p72 = scmp.eq.s32.totalorder %s17, 0
    %p73 = por %p71, %p72
    %p74 = scmp.ne.s32.totalorder %s62, %s63
    %p75 = scmp.eq.s32.totalorder %s18, 1
    %p76 = por %p74, %p75
    %p78 = scmp.ne.s32.totalorder %s63, %s77
    %p79 = scmp.eq.s32.totalorder %s18, 0
    %p80 = por %p78, %p79
    %s82 = sadd.s32 %s81, 1
    %p85 = scmp.eq.s32.totalorder %s12, 1
    %p86 = scmp.ne.s32.totalorder %s81, %s83
    %p87 = scmp.eq.s32.totalorder %s12, 0
    %p88 = por %p86, %p87
    %p89 = scmp.ne.s32.totalorder %s81, %s83
    %p90 = scmp.eq.s32.totalorder %s17, 1
    %p91 = por %p89, %p90
    %p92 = scmp.ne.s32.totalorder %s83, %s84
    %p93 = scmp.eq.s32.totalorder %s17, 0
    %p94 = por %p92, %p93
    %p95 = scmp.ne.s32.totalorder %s83, %s84
    %p96 = scmp.eq.s32.totalorder %s18, 1
    %p97 = por %p95, %p96
    %p99 = scmp.ne.s32.totalorder %s84, %s98
    %p100 = scmp.eq.s32.totalorder %s18, 0
    %p101 = por %p99, %p100
    %s103 = sadd.s32 %s102, 1
    %p106 = scmp.eq.s32.totalorder %s12, 1
    %p107 = scmp.ne.s32.totalorder %s102, %s104
    %p108 = scmp.eq.s32.totalorder %s12, 0
    %p109 = por %p107, %p108
    %p110 = scmp.ne.s32.totalorder %s102, %s104
    %p111 = scmp.eq.s32.totalorder %s17, 1
    %p112 = por %p110, %p111
    %p113 = scmp.ne.s32.totalorder %s104, %s105
    %p114 = scmp.eq.s32.totalorder %s17, 0
    %p115 = por %p113, %p114
    %p116 = scmp.ne.s32.totalorder %s104, %s105
    %p117 = scmp.eq.s32.totalorder %s18, 1
    %p118 = por %p116, %p117
    %p120 = scmp.ne.s32.totalorder %s105, %s119
    %p121 = scmp.eq.s32.totalorder %s18, 0
    %p122 = por %p120, %p121
    %s123 = ssub.s32 %s19, %s31
    %s124 = ssub.s32 %s20, %s27
    %s125 = sor.u32 %s123, %s124
    %p126 = scmp.eq.s32.totalorder %s125, 0
    %s128 = sadd.s32 %s127, 1
    %s129 = scalar_select %p126, %s127, %s128
    %p132 = pneg %p126
    %p133 = scmp.eq.s32.totalorder %s12, 1
    %p134 = por %p132, %p133
    %p135 = scmp.ne.s32.totalorder %s127, %s130
    %p136 = scmp.eq.s32.totalorder %s12, 0
    %p137 = por %p135, %p136
    %p138 = scmp.ne.s32.totalorder %s127, %s130
    %p139 = scmp.eq.s32.totalorder %s17, 1
    %p140 = por %p138, %p139
    %p141 = scmp.ne.s32.totalorder %s130, %s131
    %p142 = scmp.eq.s32.totalorder %s17, 0
    %p143 = por %p141, %p142
    %p144 = scmp.ne.s32.totalorder %s130, %s131
    %p145 = scmp.eq.s32.totalorder %s18, 1
    %p146 = por %p144, %p145
    %p148 = scmp.ne.s32.totalorder %s131, %s147
    %p149 = scmp.eq.s32.totalorder %s18, 0
    %p150 = por %p148, %p149
    %s151 = sadd.s32 %s19, %s20
    %s152 = sadd.s32 %s31, %s27
    %s153 = ssub.s32 %s151, %s152
    %p154 = scmp.eq.s32.totalorder %s153, 0
    %s156 = sadd.s32 %s155, 1
    %s157 = scalar_select %p154, %s155, %s156
    %p160 = pneg %p154
    %p161 = scmp.eq.s32.totalorder %s12, 1
    %p162 = por %p160, %p161
    %p163 = scmp.ne.s32.totalorder %s155, %s158
    %p164 = scmp.eq.s32.totalorder %s12, 0
    %p165 = por %p163, %p164
    %p166 = scmp.ne.s32.totalorder %s155, %s158
    %p167 = scmp.eq.s32.totalorder %s17, 1
    %p168 = por %p166, %p167
    %p169 = scmp.ne.s32.totalorder %s158, %s159
    %p170 = scmp.eq.s32.totalorder %s17, 0
    %p171 = por %p169, %p170
    %p172 = scmp.ne.s32.totalorder %s158, %s159
    %p173 = scmp.eq.s32.totalorder %s18, 1
    %p174 = por %p172, %p173
    %p176 = scmp.ne.s32.totalorder %s159, %s175
    %p177 = scmp.eq.s32.totalorder %s18, 0
    %p178 = por %p176, %p177
    %p179 = scmp.le.s32.totalorder 1, %s12
    %p180 = scmp.lt.s32.totalorder %s12, 3
    %p181 = pnand %p179, %p180
    %p182 = pneg %p181
    // Predicated region
    $region9: #{bottleneck_forward.6} parent=5 // pred_check
      _
    $region10: #{bottleneck_forward.6} parent=5 // pred_check_branch
      %184 = sbr.rel (%p181) target = $region12
    $region11: #{bottleneck_forward.6} parent=5 // pred_region
      %s185 = ssub.s32 %s12, 1
      // Predicated region
      $region13: #{bottleneck_forward.6} parent=11 // pred_check
        %p186 = pneg %p73
      $region14: #{bottleneck_forward.6} parent=11 // pred_check_branch
        %188 = sbr.rel (%p186) target = $region16
      $region15: #{bottleneck_forward.6} parent=11 // pred_region
        _
      $region16: #{bottleneck_forward.6} parent=11 // pred_fallthru
        _
      // Predicated region
      $region17: #{bottleneck_forward.6} parent=11 // pred_check
        %p189 = pneg %p94
      $region18: #{bottleneck_forward.6} parent=11 // pred_check_branch
        %191 = sbr.rel (%p189) target = $region20
      $region19: #{bottleneck_forward.6} parent=11 // pred_region
        _
      $region20: #{bottleneck_forward.6} parent=11 // pred_fallthru
        _
      // Predicated region
      $region21: #{bottleneck_forward.6} parent=11 // pred_check
        %p192 = pneg %p115
      $region22: #{bottleneck_forward.6} parent=11 // pred_check_branch
        %194 = sbr.rel (%p192) target = $region24
      $region23: #{bottleneck_forward.6} parent=11 // pred_region
        _
      $region24: #{bottleneck_forward.6} parent=11 // pred_fallthru
        _
    $region12: #{bottleneck_forward.6} parent=5 // pred_fallthru
      _
    %p195 = scmp.lt.s32.totalorder %s12, 2
    // Predicated region
    $region25: #{bottleneck_forward.6} parent=5 // pred_check
      %p196 = pneg %p195
    $region26: #{bottleneck_forward.6} parent=5 // pred_check_branch
      %198 = sbr.rel (%p196) target = $region28
    $region27: #{bottleneck_forward.6} parent=5 // pred_region
      // Predicated region
      $region29: #{bottleneck_forward.6} parent=27 // pred_check
        %p199 = pneg %p46
      $region30: #{bottleneck_forward.6} parent=27 // pred_check_branch
        %201 = sbr.rel (%p199) target = $region32
      $region31: #{bottleneck_forward.6} parent=27 // pred_region
        %s202 = sadd.s32 %s19, %s20
        %s203 = smul.u32 32, %s202
        %p204 = scmp.lt.s32.totalorder %s203, 63
        %s205 = scalar_select %p204, %s203, 63
        %s206 = smul.addr %s205, 8
        %s207 = scalar_lea.vmem %s0, %s206
        %s208 = sadd.s32 %s19, %s20
        %s209 = smul.u32 32, %s208
      $region32: #{bottleneck_forward.6} parent=27 // pred_fallthru
        _
    $region28: #{bottleneck_forward.6} parent=5 // pred_fallthru
      _
    %p210 = scmp.le.s32.totalorder 1, %s12
    %p211 = scmp.lt.s32.totalorder %s12, 3
    %p212 = pnand %p210, %p211
    %p213 = pneg %p212
    // Predicated region
    $region33: #{bottleneck_forward.6} parent=5 // pred_check
      _
    $region34: #{bottleneck_forward.6} parent=5 // pred_check_branch
      %215 = sbr.rel (%p212) target = $region36
    $region35: #{bottleneck_forward.6} parent=5 // pred_region
      %s216 = ssub.s32 %s12, 1
      %s217 = sadd.s32 %s21, %s22
      %s218 = smul.u32 32, %s217
      %p219 = scmp.lt.s32.totalorder %s218, 63
      %s220 = scalar_select %p219, %s218, 63
      %s221 = smul.addr %s220, 8
      %s222 = scalar_lea.vmem %s0, %s221
      %p223 = pneg %p52
      %p224 = pneg %p49
      %p225 = pneg %p73
      %p226 = pneg %p70
      %p227 = pneg %p94
      %p228 = pneg %p91
      %p229 = pneg %p115
      %p230 = pneg %p112
      %p231 = pneg %p143
      %p232 = pneg %p140
      %s233 = smul.u32 2, %s22
      %p234 = scmp.lt.s32.totalorder %s21, 1
      %s235 = scalar_select %p234, %s21, 1
      %p236 = scmp.lt.s32.totalorder %s233, 1
      %s237 = scalar_select %p236, %s233, 1
      %s238 = smul.addr %s235, 4
      %s239 = sadd.s32 %s237, %s238
      %s240 = smul.addr %s239, 8
      %s241 = scalar_lea.vmem %s4, %s240
      %p242 = pneg %p171
      %p243 = pneg %p168
      %s244 = sadd.s32 %s21, %s22
      %p245 = scmp.lt.s32.totalorder %s244, 1
      %s246 = scalar_select %p245, %s244, 1
      %s247 = smul.addr %s246, 2
      %s248 = smul.addr %s247, 8
      %s249 = scalar_lea.vmem %s5, %s248
      %s250 = sadd.s32 %s21, %s22
      %s251 = smul.u32 32, %s250
      %p252 = scmp.lt.s32.totalorder %s251, 63
      %s253 = scalar_select %p252, %s251, 63
      %s254 = smul.addr %s253, 8
      %s255 = scalar_lea.vmem %s0, %s254
      %s256 = sadd.s32 %s21, %s22
      %s257 = smul.u32 32, %s256
      %s258 = smul.u32 2, %s22
      %p259 = scmp.lt.s32.totalorder %s21, 1
      %s260 = scalar_select %p259, %s21, 1
      %p261 = scmp.lt.s32.totalorder %s258, 1
      %s262 = scalar_select %p261, %s258, 1
      %s263 = smul.addr %s260, 4
      %s264 = sadd.s32 %s262, %s263
      %s265 = smul.addr %s264, 8
      %s266 = scalar_lea.vmem %s4, %s265
      %s267 = smul.u32 2, %s22
      %s268 = sadd.s32 %s21, %s22
      %p269 = scmp.lt.s32.totalorder %s268, 1
      %s270 = scalar_select %p269, %s268, 1
      %s271 = smul.addr %s270, 2
      %s272 = smul.addr %s271, 8
      %s273 = scalar_lea.vmem %s5, %s272
      %s274 = sadd.s32 %s21, %s22
      %v275 = vld [vmem:[%s255] sm:$0xff]
      %v276 = vld [vmem:[%s255 + $0x8] sm:$0xff]
      %v277 = vld [vmem:[%s255 + $0x10] sm:$0xff]
      %v278 = vld [vmem:[%s255 + $0x18] sm:$0xff]
      %v279 = vld [vmem:[%s255 + $0x20] sm:$0xff]
      %v280 = vld [vmem:[%s255 + $0x28] sm:$0xff]
      %v281 = vld [vmem:[%s255 + $0x30] sm:$0xff]
      %v282 = vld [vmem:[%s255 + $0x38] sm:$0xff]
      %v283 = vld [vmem:[%s255 + $0x40] sm:$0xff]
      %v284 = vld [vmem:[%s255 + $0x48] sm:$0xff]
      %v285 = vld [vmem:[%s255 + $0x50] sm:$0xff]
      %v286 = vld [vmem:[%s255 + $0x58] sm:$0xff]
      %v287 = vld [vmem:[%s255 + $0x60] sm:$0xff]
      %v288 = vld [vmem:[%s255 + $0x68] sm:$0xff]
      %v289 = vld [vmem:[%s255 + $0x70] sm:$0xff]
      %v290 = vld [vmem:[%s255 + $0x78] sm:$0xff]
      %v291 = vld [vmem:[%s255 + $0x80] sm:$0xff]
      %v292 = vld [vmem:[%s255 + $0x88] sm:$0xff]
      %v293 = vld [vmem:[%s255 + $0x90] sm:$0xff]
      %v294 = vld [vmem:[%s255 + $0x98] sm:$0xff]
      %v295 = vld [vmem:[%s255 + $0xa0] sm:$0xff]
      %v296 = vld [vmem:[%s255 + $0xa8] sm:$0xff]
      %v297 = vld [vmem:[%s255 + $0xb0] sm:$0xff]
      %v298 = vld [vmem:[%s255 + $0xb8] sm:$0xff]
      %v299 = vld [vmem:[%s255 + $0xc0] sm:$0xff]
      %v300 = vld [vmem:[%s255 + $0xc8] sm:$0xff]
      %v301 = vld [vmem:[%s255 + $0xd0] sm:$0xff]
      %v302 = vld [vmem:[%s255 + $0xd8] sm:$0xff]
      %v303 = vld [vmem:[%s255 + $0xe0] sm:$0xff]
      %v304 = vld [vmem:[%s255 + $0xe8] sm:$0xff]
      %v305 = vld [vmem:[%s255 + $0xf0] sm:$0xff]
      %v306 = vld [vmem:[%s255 + $0xf8] sm:$0xff]
      %v307 = vld [vmem:[%s1] sm:$0x1]
      %v309 = vlaneseq
      %v310 = vshrl.u32 %v309, 7
      %v311 = vsub.s32 0, %v310
      %v312 = vrot.slane %v307, %v311
      %v314 = vmul.f32 %v275, %v312
      %v315 = vmul.f32 %v276, %v312
      %v316 = vmul.f32 %v277, %v312
      %v317 = vmul.f32 %v278, %v312
      %v318 = vmul.f32 %v279, %v312
      %v319 = vmul.f32 %v280, %v312
      %v320 = vmul.f32 %v281, %v312
      %v321 = vmul.f32 %v282, %v312
      %v322 = vmul.f32 %v283, %v312
      %v323 = vmul.f32 %v284, %v312
      %v324 = vmul.f32 %v285, %v312
      %v325 = vmul.f32 %v286, %v312
      %v326 = vmul.f32 %v287, %v312
      %v327 = vmul.f32 %v288, %v312
      %v328 = vmul.f32 %v289, %v312
      %v329 = vmul.f32 %v290, %v312
      %v330 = vmul.f32 %v291, %v312
      %v331 = vmul.f32 %v292, %v312
      %v332 = vmul.f32 %v293, %v312
      %v333 = vmul.f32 %v294, %v312
      %v334 = vmul.f32 %v295, %v312
      %v335 = vmul.f32 %v296, %v312
      %v336 = vmul.f32 %v297, %v312
      %v337 = vmul.f32 %v298, %v312
      %v338 = vmul.f32 %v299, %v312
      %v339 = vmul.f32 %v300, %v312
      %v340 = vmul.f32 %v301, %v312
      %v341 = vmul.f32 %v302, %v312
      %v342 = vmul.f32 %v303, %v312
      %v343 = vmul.f32 %v304, %v312
      %v344 = vmul.f32 %v305, %v312
      %v345 = vmul.f32 %v306, %v312
      %v346 = vld [vmem:[%s2] sm:$0x1]
      %v348 = vlaneseq
      %v349 = vshrl.u32 %v348, 7
      %v350 = vsub.s32 0, %v349
      %v351 = vrot.slane %v346, %v350
      %v353 = vadd.f32 %v314, %v351
      %v354 = vadd.f32 %v315, %v351
      %v355 = vadd.f32 %v316, %v351
      %v356 = vadd.f32 %v317, %v351
      %v357 = vadd.f32 %v318, %v351
      %v358 = vadd.f32 %v319, %v351
      %v359 = vadd.f32 %v320, %v351
      %v360 = vadd.f32 %v321, %v351
      %v361 = vadd.f32 %v322, %v351
      %v362 = vadd.f32 %v323, %v351
      %v363 = vadd.f32 %v324, %v351
      %v364 = vadd.f32 %v325, %v351
      %v365 = vadd.f32 %v326, %v351
      %v366 = vadd.f32 %v327, %v351
      %v367 = vadd.f32 %v328, %v351
      %v368 = vadd.f32 %v329, %v351
      %v369 = vadd.f32 %v330, %v351
      %v370 = vadd.f32 %v331, %v351
      %v371 = vadd.f32 %v332, %v351
      %v372 = vadd.f32 %v333, %v351
      %v373 = vadd.f32 %v334, %v351
      %v374 = vadd.f32 %v335, %v351
      %v375 = vadd.f32 %v336, %v351
      %v376 = vadd.f32 %v337, %v351
      %v377 = vadd.f32 %v338, %v351
      %v378 = vadd.f32 %v339, %v351
      %v379 = vadd.f32 %v340, %v351
      %v380 = vadd.f32 %v341, %v351
      %v381 = vadd.f32 %v342, %v351
      %v382 = vadd.f32 %v343, %v351
      %v383 = vadd.f32 %v344, %v351
      %v384 = vadd.f32 %v345, %v351
      %v385 = vmax.f32 %v353, 0.0
      %v386 = vmax.f32 %v354, 0.0
      %v387 = vmax.f32 %v355, 0.0
      %v388 = vmax.f32 %v356, 0.0
      %v389 = vmax.f32 %v357, 0.0
      %v390 = vmax.f32 %v358, 0.0
      %v391 = vmax.f32 %v359, 0.0
      %v392 = vmax.f32 %v360, 0.0
      %v393 = vmax.f32 %v361, 0.0
      %v394 = vmax.f32 %v362, 0.0
      %v395 = vmax.f32 %v363, 0.0
      %v396 = vmax.f32 %v364, 0.0
      %v397 = vmax.f32 %v365, 0.0
      %v398 = vmax.f32 %v366, 0.0
      %v399 = vmax.f32 %v367, 0.0
      %v400 = vmax.f32 %v368, 0.0
      %v401 = vmax.f32 %v369, 0.0
      %v402 = vmax.f32 %v370, 0.0
      %v403 = vmax.f32 %v371, 0.0
      %v404 = vmax.f32 %v372, 0.0
      %v405 = vmax.f32 %v373, 0.0
      %v406 = vmax.f32 %v374, 0.0
      %v407 = vmax.f32 %v375, 0.0
      %v408 = vmax.f32 %v376, 0.0
      %v409 = vmax.f32 %v377, 0.0
      %v410 = vmax.f32 %v378, 0.0
      %v411 = vmax.f32 %v379, 0.0
      %v412 = vmax.f32 %v380, 0.0
      %v413 = vmax.f32 %v381, 0.0
      %v414 = vmax.f32 %v382, 0.0
      %v415 = vmax.f32 %v383, 0.0
      %v416 = vmax.f32 %v384, 0.0
      %v417 = vld [vmem:[%s3] sm:$0xff]
      %v418 = vld [vmem:[%s3 + $0x8] sm:$0xff]
      %vm419 = vcmask 64512
      %v421 = vsel %vm419, %v417, 0
      %v424 = vsel %vm419, %v418, 0
      %v427 = vsel %vm419, %v385, 0
      %v430 = vsel %vm419, %v386, 0
      %v433 = vsel %vm419, %v387, 0
      %v436 = vsel %vm419, %v388, 0
      %v439 = vsel %vm419, %v389, 0
      %v442 = vsel %vm419, %v390, 0
      %v445 = vsel %vm419, %v391, 0
      %v448 = vsel %vm419, %v392, 0
      %v451 = vsel %vm419, %v393, 0
      %v454 = vsel %vm419, %v394, 0
      %v457 = vsel %vm419, %v395, 0
      %v460 = vsel %vm419, %v396, 0
      %v463 = vsel %vm419, %v397, 0
      %v466 = vsel %vm419, %v398, 0
      %v469 = vsel %vm419, %v399, 0
      %v472 = vsel %vm419, %v400, 0
      %v475 = vsel %vm419, %v401, 0
      %v478 = vsel %vm419, %v402, 0
      %v481 = vsel %vm419, %v403, 0
      %v484 = vsel %vm419, %v404, 0
      %v487 = vsel %vm419, %v405, 0
      %v490 = vsel %vm419, %v406, 0
      %v493 = vsel %vm419, %v407, 0
      %v496 = vsel %vm419, %v408, 0
      %v499 = vsel %vm419, %v409, 0
      %v502 = vsel %vm419, %v410, 0
      %v505 = vsel %vm419, %v411, 0
      %v508 = vsel %vm419, %v412, 0
      %v511 = vsel %vm419, %v413, 0
      %v514 = vsel %vm419, %v414, 0
      %v517 = vsel %vm419, %v415, 0
      %v520 = vsel %vm419, %v416, 0
      %522 = vmatprep.subr.mxu0 0.0
      %523 = vmatpush1.xpose.msra.mxu0 %v427
      %524 = vmatprep.subr.mxu0 0.0
      %525 = vmatpush1.xpose.msra.mxu0 %v430
      %526 = vmatprep.subr.mxu0 0.0
      %527 = vmatpush1.xpose.msra.mxu0 %v433
      %528 = vmatprep.subr.mxu0 0.0
      %529 = vmatpush1.xpose.msra.mxu0 %v436
      %530 = vmatprep.subr.mxu0 0.0
      %531 = vmatpush1.xpose.msra.mxu0 %v439
      %532 = vmatprep.subr.mxu0 0.0
      %533 = vmatpush1.xpose.msra.mxu0 %v442
      %534 = vmatprep.subr.mxu0 0.0
      %535 = vmatpush1.xpose.msra.mxu0 %v445
      %536 = vmatprep.subr.mxu0 0.0
      %537 = vmatpush1.xpose.msra.mxu0 %v448
      %538 = vmatprep.subr.mxu0 0.0
      %539 = vmatpush1.xpose.msra.mxu0 %v451
      %540 = vmatprep.subr.mxu0 0.0
      %541 = vmatpush1.xpose.msra.mxu0 %v454
      %542 = vmatprep.subr.mxu0 0.0
      %543 = vmatpush1.xpose.msra.mxu0 %v457
      %544 = vmatprep.subr.mxu0 0.0
      %545 = vmatpush1.xpose.msra.mxu0 %v460
      %546 = vmatprep.subr.mxu0 0.0
      %547 = vmatpush1.xpose.msra.mxu0 %v463
      %548 = vmatprep.subr.mxu0 0.0
      %549 = vmatpush1.xpose.msra.mxu0 %v466
      %550 = vmatprep.subr.mxu0 0.0
      %551 = vmatpush1.xpose.msra.mxu0 %v469
      %552 = vmatprep.subr.mxu0 0.0
      %553 = vmatpush1.xpose.msra.mxu0 %v472
      %554 = vmatprep.subr.mxu0 0.0
      %555 = vmatpush1.xpose.msra.mxu0 %v475
      %556 = vmatprep.subr.mxu0 0.0
      %557 = vmatpush1.xpose.msra.mxu0 %v478
      %558 = vmatprep.subr.mxu0 0.0
      %559 = vmatpush1.xpose.msra.mxu0 %v481
      %560 = vmatprep.subr.mxu0 0.0
      %561 = vmatpush1.xpose.msra.mxu0 %v484
      %562 = vmatprep.subr.mxu0 0.0
      %563 = vmatpush1.xpose.msra.mxu0 %v487
      %564 = vmatprep.subr.mxu0 0.0
      %565 = vmatpush1.xpose.msra.mxu0 %v490
      %566 = vmatprep.subr.mxu0 0.0
      %567 = vmatpush1.xpose.msra.mxu0 %v493
      %568 = vmatprep.subr.mxu0 0.0
      %569 = vmatpush1.xpose.msra.mxu0 %v496
      %570 = vmatprep.subr.mxu0 0.0
      %571 = vmatpush1.xpose.msra.mxu0 %v499
      %572 = vmatprep.subr.mxu0 0.0
      %573 = vmatpush1.xpose.msra.mxu0 %v502
      %574 = vmatprep.subr.mxu0 0.0
      %575 = vmatpush1.xpose.msra.mxu0 %v505
      %576 = vmatprep.subr.mxu0 0.0
      %577 = vmatpush1.xpose.msra.mxu0 %v508
      %578 = vmatprep.subr.mxu0 0.0
      %579 = vmatpush1.xpose.msra.mxu0 %v511
      %580 = vmatprep.subr.mxu0 0.0
      %581 = vmatpush1.xpose.msra.mxu0 %v514
      %582 = vmatprep.subr.mxu0 0.0
      %583 = vmatpush1.xpose.msra.mxu0 %v517
      %584 = vmatprep.subr.mxu0 0.0
      %585 = vmatpush1.xpose.msra.mxu0 %v520
      %586 = vmatprep.mubr.f32.mxu0 0.0
      %587 = vmatmul.mubr.f32.gmra.mrb[0].mxu0 %v421
      %v588 = vpop.f32.mrb[0].mxu0
      %v589 = vadd.f32 0.0, %v588
      %v590 = vpop.f32.mrb[0].mxu0
      %v591 = vadd.f32 0.0, %v590
      %592 = vmatprep.mubr.f32.mxu0 0.0
      %593 = vmatmul.mubr.f32.gmra.mrb[0].mxu0 %v424
      %v594 = vpop.f32.mrb[0].mxu0
      %v595 = vadd.f32 0.0, %v594
      %v596 = vpop.f32.mrb[0].mxu0
      %v597 = vadd.f32 0.0, %v596
      %598 = vdwg.mxu0
      %599 = vst [vmem:[%s266] sm:$0xff] %v589
      %600 = vst [vmem:[%s266 + $0x8] sm:$0xff] %v591
      %601 = vst [vmem:[%s266 + $0x10] sm:$0xff] %v595
      %602 = vst [vmem:[%s266 + $0x18] sm:$0xff] %v597
      %v603 = vadd.f32 %v589, %v591
      %604 = vadd.xlane.f32.xlu0 %v603
      %v605 = vpop.xlane.xlu0 %604
      %v606 = vadd.f32 %v595, %v597
      %607 = vadd.xlane.f32.xlu0 %v606
      %v608 = vpop.xlane.xlu0 %607
      %v609 = vmul.f32 %v589, %v589
      %v610 = vmul.f32 %v591, %v591
      %v611 = vmul.f32 %v595, %v595
      %v612 = vmul.f32 %v597, %v597
      %v613 = vadd.f32 %v609, %v610
      %614 = vadd.xlane.f32.xlu0 %v613
      %v615 = vpop.xlane.xlu0 %614
      %v616 = vadd.f32 %v611, %v612
      %617 = vadd.xlane.f32.xlu0 %v616
      %v618 = vpop.xlane.xlu0 %617
      %v619 = vlaneseq
      %v620 = vand.u32 %v619, 127
      %vm621 = vcmp.eq.s32.totalorder %v620, 0
      %v622 = vsel %vm621, %v605, %v615
      %v623 = vsel %vm621, %v608, %v618
      %vm624 = vcmask 15360
      %625 = vst.msk [vmem:[%s273] sm:$0xff] %vm624, %v622
      %626 = vst.msk [vmem:[%s273 + $0x8] sm:$0xff] %vm624, %v623
      %s627 = smul.u32 2, %s22
      %p628 = scmp.lt.s32.totalorder %s21, 1
      %s629 = scalar_select %p628, %s21, 1
      %p630 = scmp.lt.s32.totalorder %s627, 1
      %s631 = scalar_select %p630, %s627, 1
      %s632 = smul.addr %s629, 4
      %s633 = sadd.s32 %s631, %s632
      %s634 = smul.addr %s633, 8
      %s635 = scalar_lea.vmem %s4, %s634
      %s636 = sadd.s32 %s21, %s22
      %p637 = scmp.lt.s32.totalorder %s636, 1
      %s638 = scalar_select %p637, %s636, 1
      %s639 = smul.addr %s638, 2
      %s640 = smul.addr %s639, 8
      %s641 = scalar_lea.vmem %s5, %s640
      // Predicated region
      $region37: #{bottleneck_forward.6} parent=35 // pred_check
        %p642 = pneg %p140
      $region38: #{bottleneck_forward.6} parent=35 // pred_check_branch
        %644 = sbr.rel (%p642) target = $region40
      $region39: #{bottleneck_forward.6} parent=35 // pred_region
        %s645 = smul.u32 2, %s22
      $region40: #{bottleneck_forward.6} parent=35 // pred_fallthru
        _
      // Predicated region
      $region41: #{bottleneck_forward.6} parent=35 // pred_check
        %p646 = pneg %p168
      $region42: #{bottleneck_forward.6} parent=35 // pred_check_branch
        %648 = sbr.rel (%p646) target = $region44
      $region43: #{bottleneck_forward.6} parent=35 // pred_region
        %s649 = sadd.s32 %s21, %s22
      $region44: #{bottleneck_forward.6} parent=35 // pred_fallthru
        _
    $region36: #{bottleneck_forward.6} parent=5 // pred_fallthru
      _
    %p650 = scmp.le.s32.totalorder 2, %s12
    // Predicated region
    $region45: #{bottleneck_forward.6} parent=5 // pred_check
      %p651 = pneg %p650
    $region46: #{bottleneck_forward.6} parent=5 // pred_check_branch
      %653 = sbr.rel (%p651) target = $region48
    $region47: #{bottleneck_forward.6} parent=5 // pred_region
      %s654 = ssub.s32 %s12, 2
      // Predicated region
      $region49: #{bottleneck_forward.6} parent=47 // pred_check
        %p655 = pneg %p146
      $region50: #{bottleneck_forward.6} parent=47 // pred_check_branch
        %657 = sbr.rel (%p655) target = $region52
      $region51: #{bottleneck_forward.6} parent=47 // pred_region
        %s658 = smul.u32 2, %s24
        %p659 = scmp.lt.s32.totalorder %s23, 1
        %s660 = scalar_select %p659, %s23, 1
        %p661 = scmp.lt.s32.totalorder %s658, 1
        %s662 = scalar_select %p661, %s658, 1
        %s663 = smul.addr %s660, 4
        %s664 = sadd.s32 %s662, %s663
        %s665 = smul.addr %s664, 8
        %s666 = scalar_lea.vmem %s4, %s665
      $region52: #{bottleneck_forward.6} parent=47 // pred_fallthru
        _
      // Predicated region
      $region53: #{bottleneck_forward.6} parent=47 // pred_check
        %p667 = pneg %p174
      $region54: #{bottleneck_forward.6} parent=47 // pred_check_branch
        %669 = sbr.rel (%p667) target = $region56
      $region55: #{bottleneck_forward.6} parent=47 // pred_region
        %s670 = sadd.s32 %s23, %s24
        %p671 = scmp.lt.s32.totalorder %s670, 1
        %s672 = scalar_select %p671, %s670, 1
        %s673 = smul.addr %s672, 2
        %s674 = smul.addr %s673, 8
        %s675 = scalar_lea.vmem %s5, %s674
      $region56: #{bottleneck_forward.6} parent=47 // pred_fallthru
        _
    $region48: #{bottleneck_forward.6} parent=5 // pred_fallthru
      _
  $region6: #{bottleneck_forward.6} parent=0 // loop_footer
    %s16 = sadd.s32 1, %s12
  $region7: #{bottleneck_forward.6} parent=0 // loop_footer_branch
    %11 = sbr.rel target = $region3
  $region8: #{bottleneck_forward.6} parent=0 // loop_exit
    _

// kernel: bottleneck_forward.5
$region0: #{bottleneck_forward.5}
  #allocation0 [shape = 'u32[]', space=smem, size = 0x4, offset = 0x4, fixed_abs, tag = 'smem constant byte address 0x4 - core index']
  #allocation1 [shape = 'u32[144,128]{1,0:T(1,128)}', space=vmem, size = 0x12000, scoped, tag = 'internal scratch']
  #allocation2 [shape = 'f32[297,24]{1,0:T(8,128)}', space=vmem, size = 0x26000, scoped, tag = 'scratch operand']
  %s0 = inlined_call_operand.vmem [shape: f32[512,8], index: 0, kind: input, shape index: {}, may-alias: {0,1,2}]
  %s1 = inlined_call_operand.vmem [shape: f32[512,8], index: 1, kind: input, shape index: {}, may-alias: {0,1,2}]
  %s2 = inlined_call_operand.vmem [shape: f32[512,8], index: 2, kind: input, shape index: {}, may-alias: {0,1,2}]
  %s3 = inlined_call_operand.vmem [shape: f32[1,8], index: 3, kind: input, shape index: {}]
  %s4 = inlined_call_operand.vmem [shape: f32[1,8], index: 4, kind: input, shape index: {}]
  %s5 = inlined_call_operand.vmem [shape: f32[256,2], index: 5, kind: input, shape index: {}]
  %s6 = inlined_call_operand.vmem [shape: f32[3,24,8], index: 6, kind: input, shape index: {}]
  %s7 = inlined_call_operand.vmem [shape: f32[512,8], index: 7, kind: output, shape index: {0}]
  %s8 = inlined_call_operand.vmem [shape: f32[2,2,8], index: 8, kind: output, shape index: {1}]
  %9 = xla_tuple %s7, %s8
  %s10 = sld [smem:[#allocation0]]
  $region69: #{bottleneck_forward.5} parent=0
    _
  %s12 = ssub.s32 1, %s10
  %s13 = scalar_select 0, %s12, %s10
  loop: start=0, step=1, limit=4
  $region2: #{bottleneck_forward.5} parent=0 // loop_pre_header
    _
  $region3: #{bottleneck_forward.5} parent=0 // loop_header
    %s15 = sphi 0, %s19
    %p16 = scmp.ge.s32.totalorder %s15, 4
    %s22 = sphi 0, %s34
    %s23 = sphi 0, %s30
    %s24 = sphi 0, %s22
    %s25 = sphi 0, %s23
    %s26 = sphi 0, %s24
    %s27 = sphi 0, %s25
    %s39 = sphi 0, %s41
    %s42 = sphi 0, %s39
    %s43 = sphi 0, %s42
    %s59 = sphi 0, %s43
    %s77 = sphi 0, %s79
    %s80 = sphi 0, %s77
    %s81 = sphi 0, %s80
    %s97 = sphi 0, %s81
    %s115 = sphi 0, %s117
    %s118 = sphi 0, %s115
    %s119 = sphi 0, %s118
    %s135 = sphi 0, %s119
    %s139 = sphi 0, %s139
    %s141 = sphi 0, %s139
    %s142 = sphi 0, %s141
    %s156 = sphi 0, %s142
    %s160 = sphi 0, %s160
    %s162 = sphi 0, %s160
    %s163 = sphi 0, %s162
    %s177 = sphi 0, %s163
    %s181 = sphi 0, %s181
    %s183 = sphi 0, %s181
    %s184 = sphi 0, %s183
    %s198 = sphi 0, %s184
    %s202 = sphi 0, %s202
    %s204 = sphi 0, %s202
    %s205 = sphi 0, %s204
    %s219 = sphi 0, %s205
    %s227 = sphi 0, %s229
    %s230 = sphi 0, %s227
    %s231 = sphi 0, %s230
    %s247 = sphi 0, %s231
    %s255 = sphi 0, %s257
    %s258 = sphi 0, %s255
    %s259 = sphi 0, %s258
    %s275 = sphi 0, %s259
  $region4: #{bottleneck_forward.5} parent=0 // loop_header_branch
    %18 = sbr.rel (%p16) target = $region8
  $region5: #{bottleneck_forward.5} parent=0 // loop_body
    %s20 = ssub.s32 %s15, 1
    %s21 = ssub.s32 %s15, 2
    %s28 = sadd.s32 1, %s23
    %p29 = scmp.ge.s32.totalorder %s28, 1
    %s30 = scalar_select %p29, 0, %s28
    %s31 = sadd.s32 1, %s22
    %s32 = scalar_select %p29, %s31, %s22
    %p33 = scmp.ge.s32.totalorder %s32, 2
    %s34 = scalar_select %p33, 0, %s32
    %s35 = sadd.s32 %s22, %s23
    %s36 = sadd.s32 %s34, %s30
    %s37 = ssub.s32 %s35, %s36
    %p38 = scmp.eq.s32.totalorder %s37, 0
    %s40 = sadd.s32 %s39, 1
    %s41 = scalar_select %p38, %s39, %s40
    %p44 = pneg %p38
    %p45 = scmp.eq.s32.totalorder %s15, 1
    %p46 = por %p44, %p45
    %p47 = scmp.ne.s32.totalorder %s39, %s42
    %p48 = scmp.eq.s32.totalorder %s15, 0
    %p49 = por %p47, %p48
    %p50 = scmp.ne.s32.totalorder %s39, %s42
    %p51 = scmp.eq.s32.totalorder %s20, 1
    %p52 = por %p50, %p51
    %p53 = scmp.ne.s32.totalorder %s42, %s43
    %p54 = scmp.eq.s32.totalorder %s20, 0
    %p55 = por %p53, %p54
    %p56 = scmp.ne.s32.totalorder %s42, %s43
    %p57 = scmp.eq.s32.totalorder %s21, 1
    %p58 = por %p56, %p57
    %p60 = scmp.ne.s32.totalorder %s43, %s59
    %p61 = scmp.eq.s32.totalorder %s21, 0
    %p62 = por %p60, %p61
    %s63 = smul.u32 %s22, 16
    %s64 = smul.u32 %s23, 16
    %s65 = ssub.s32 %s64, 1
    %p66 = scmp.gt.s32.totalorder %s65, 0
    %s67 = scalar_select %p66, %s65, 0
    %s68 = sadd.s32 %s63, %s67
    %s69 = smul.u32 %s34, 16
    %s70 = smul.u32 %s30, 16
    %s71 = ssub.s32 %s70, 1
    %p72 = scmp.gt.s32.totalorder %s71, 0
    %s73 = scalar_select %p72, %s71, 0
    %s74 = sadd.s32 %s69, %s73
    %s75 = ssub.s32 %s68, %s74
    %p76 = scmp.eq.s32.totalorder %s75, 0
    %s78 = sadd.s32 %s77, 1
    %s79 = scalar_select %p76, %s77, %s78
    %p82 = pneg %p76
    %p83 = scmp.eq.s32.totalorder %s15, 1
    %p84 = por %p82, %p83
    %p85 = scmp.ne.s32.totalorder %s77, %s80
    %p86 = scmp.eq.s32.totalorder %s15, 0
    %p87 = por %p85, %p86
    %p88 = scmp.ne.s32.totalorder %s77, %s80
    %p89 = scmp.eq.s32.totalorder %s20, 1
    %p90 = por %p88, %p89
    %p91 = scmp.ne.s32.totalorder %s80, %s81
    %p92 = scmp.eq.s32.totalorder %s20, 0
    %p93 = por %p91, %p92
    %p94 = scmp.ne.s32.totalorder %s80, %s81
    %p95 = scmp.eq.s32.totalorder %s21, 1
    %p96 = por %p94, %p95
    %p98 = scmp.ne.s32.totalorder %s81, %s97
    %p99 = scmp.eq.s32.totalorder %s21, 0
    %p100 = por %p98, %p99
    %s101 = smul.u32 %s22, 16
    %s102 = sadd.s32 %s23, 1
    %s103 = smul.u32 %s102, 16
    %p104 = scmp.lt.s32.totalorder %s103, 15
    %s105 = scalar_select %p104, %s103, 15
    %s106 = sadd.s32 %s101, %s105
    %s107 = smul.u32 %s34, 16
    %s108 = sadd.s32 %s30, 1
    %s109 = smul.u32 %s108, 16
    %p110 = scmp.lt.s32.totalorder %s109, 15
    %s111 = scalar_select %p110, %s109, 15
    %s112 = sadd.s32 %s107, %s111
    %s113 = ssub.s32 %s106, %s112
    %p114 = scmp.eq.s32.totalorder %s113, 0
    %s116 = sadd.s32 %s115, 1
    %s117 = scalar_select %p114, %s115, %s116
    %p120 = pneg %p114
    %p121 = scmp.eq.s32.totalorder %s15, 1
    %p122 = por %p120, %p121
    %p123 = scmp.ne.s32.totalorder %s115, %s118
    %p124 = scmp.eq.s32.totalorder %s15, 0
    %p125 = por %p123, %p124
    %p126 = scmp.ne.s32.totalorder %s115, %s118
    %p127 = scmp.eq.s32.totalorder %s20, 1
    %p128 = por %p126, %p127
    %p129 = scmp.ne.s32.totalorder %s118, %s119
    %p130 = scmp.eq.s32.totalorder %s20, 0
    %p131 = por %p129, %p130
    %p132 = scmp.ne.s32.totalorder %s118, %s119
    %p133 = scmp.eq.s32.totalorder %s21, 1
    %p134 = por %p132, %p133
    %p136 = scmp.ne.s32.totalorder %s119, %s135
    %p137 = scmp.eq.s32.totalorder %s21, 0
    %p138 = por %p136, %p137
    %s140 = sadd.s32 %s139, 1
    %p143 = scmp.eq.s32.totalorder %s15, 1
    %p144 = scmp.ne.s32.totalorder %s139, %s141
    %p145 = scmp.eq.s32.totalorder %s15, 0
    %p146 = por %p144, %p145
    %p147 = scmp.ne.s32.totalorder %s139, %s141
    %p148 = scmp.eq.s32.totalorder %s20, 1
    %p149 = por %p147, %p148
    %p150 = scmp.ne.s32.totalorder %s141, %s142
    %p151 = scmp.eq.s32.totalorder %s20, 0
    %p152 = por %p150, %p151
    %p153 = scmp.ne.s32.totalorder %s141, %s142
    %p154 = scmp.eq.s32.totalorder %s21, 1
    %p155 = por %p153, %p154
    %p157 = scmp.ne.s32.totalorder %s142, %s156
    %p158 = scmp.eq.s32.totalorder %s21, 0
    %p159 = por %p157, %p158
    %s161 = sadd.s32 %s160, 1
    %p164 = scmp.eq.s32.totalorder %s15, 1
    %p165 = scmp.ne.s32.totalorder %s160, %s162
    %p166 = scmp.eq.s32.totalorder %s15, 0
    %p167 = por %p165, %p166
    %p168 = scmp.ne.s32.totalorder %s160, %s162
    %p169 = scmp.eq.s32.totalorder %s20, 1
    %p170 = por %p168, %p169
    %p171 = scmp.ne.s32.totalorder %s162, %s163
    %p172 = scmp.eq.s32.totalorder %s20, 0
    %p173 = por %p171, %p172
    %p174 = scmp.ne.s32.totalorder %s162, %s163
    %p175 = scmp.eq.s32.totalorder %s21, 1
    %p176 = por %p174, %p175
    %p178 = scmp.ne.s32.totalorder %s163, %s177
    %p179 = scmp.eq.s32.totalorder %s21, 0
    %p180 = por %p178, %p179
    %s182 = sadd.s32 %s181, 1
    %p185 = scmp.eq.s32.totalorder %s15, 1
    %p186 = scmp.ne.s32.totalorder %s181, %s183
    %p187 = scmp.eq.s32.totalorder %s15, 0
    %p188 = por %p186, %p187
    %p189 = scmp.ne.s32.totalorder %s181, %s183
    %p190 = scmp.eq.s32.totalorder %s20, 1
    %p191 = por %p189, %p190
    %p192 = scmp.ne.s32.totalorder %s183, %s184
    %p193 = scmp.eq.s32.totalorder %s20, 0
    %p194 = por %p192, %p193
    %p195 = scmp.ne.s32.totalorder %s183, %s184
    %p196 = scmp.eq.s32.totalorder %s21, 1
    %p197 = por %p195, %p196
    %p199 = scmp.ne.s32.totalorder %s184, %s198
    %p200 = scmp.eq.s32.totalorder %s21, 0
    %p201 = por %p199, %p200
    %s203 = sadd.s32 %s202, 1
    %p206 = scmp.eq.s32.totalorder %s15, 1
    %p207 = scmp.ne.s32.totalorder %s202, %s204
    %p208 = scmp.eq.s32.totalorder %s15, 0
    %p209 = por %p207, %p208
    %p210 = scmp.ne.s32.totalorder %s202, %s204
    %p211 = scmp.eq.s32.totalorder %s20, 1
    %p212 = por %p210, %p211
    %p213 = scmp.ne.s32.totalorder %s204, %s205
    %p214 = scmp.eq.s32.totalorder %s20, 0
    %p215 = por %p213, %p214
    %p216 = scmp.ne.s32.totalorder %s204, %s205
    %p217 = scmp.eq.s32.totalorder %s21, 1
    %p218 = por %p216, %p217
    %p220 = scmp.ne.s32.totalorder %s205, %s219
    %p221 = scmp.eq.s32.totalorder %s21, 0
    %p222 = por %p220, %p221
    %s223 = sadd.s32 %s22, %s23
    %s224 = sadd.s32 %s34, %s30
    %s225 = ssub.s32 %s223, %s224
    %p226 = scmp.eq.s32.totalorder %s225, 0
    %s228 = sadd.s32 %s227, 1
    %s229 = scalar_select %p226, %s227, %s228
    %p232 = pneg %p226
    %p233 = scmp.eq.s32.totalorder %s15, 1
    %p234 = por %p232, %p233
    %p235 = scmp.ne.s32.totalorder %s227, %s230
    %p236 = scmp.eq.s32.totalorder %s15, 0
    %p237 = por %p235, %p236
    %p238 = scmp.ne.s32.totalorder %s227, %s230
    %p239 = scmp.eq.s32.totalorder %s20, 1
    %p240 = por %p238, %p239
    %p241 = scmp.ne.s32.totalorder %s230, %s231
    %p242 = scmp.eq.s32.totalorder %s20, 0
    %p243 = por %p241, %p242
    %p244 = scmp.ne.s32.totalorder %s230, %s231
    %p245 = scmp.eq.s32.totalorder %s21, 1
    %p246 = por %p244, %p245
    %p248 = scmp.ne.s32.totalorder %s231, %s247
    %p249 = scmp.eq.s32.totalorder %s21, 0
    %p250 = por %p248, %p249
    %s251 = sadd.s32 %s22, %s23
    %s252 = sadd.s32 %s34, %s30
    %s253 = ssub.s32 %s251, %s252
    %p254 = scmp.eq.s32.totalorder %s253, 0
    %s256 = sadd.s32 %s255, 1
    %s257 = scalar_select %p254, %s255, %s256
    %p260 = pneg %p254
    %p261 = scmp.eq.s32.totalorder %s15, 1
    %p262 = por %p260, %p261
    %p263 = scmp.ne.s32.totalorder %s255, %s258
    %p264 = scmp.eq.s32.totalorder %s15, 0
    %p265 = por %p263, %p264
    %p266 = scmp.ne.s32.totalorder %s255, %s258
    %p267 = scmp.eq.s32.totalorder %s20, 1
    %p268 = por %p266, %p267
    %p269 = scmp.ne.s32.totalorder %s258, %s259
    %p270 = scmp.eq.s32.totalorder %s20, 0
    %p271 = por %p269, %p270
    %p272 = scmp.ne.s32.totalorder %s258, %s259
    %p273 = scmp.eq.s32.totalorder %s21, 1
    %p274 = por %p272, %p273
    %p276 = scmp.ne.s32.totalorder %s259, %s275
    %p277 = scmp.eq.s32.totalorder %s21, 0
    %p278 = por %p276, %p277
    %p279 = scmp.le.s32.totalorder 1, %s15
    %p280 = scmp.lt.s32.totalorder %s15, 3
    %p281 = pnand %p279, %p280
    %p282 = pneg %p281
    // Predicated region
    $region9: #{bottleneck_forward.5} parent=5 // pred_check
      _
    $region10: #{bottleneck_forward.5} parent=5 // pred_check_branch
      %284 = sbr.rel (%p281) target = $region12
    $region11: #{bottleneck_forward.5} parent=5 // pred_region
      %s285 = ssub.s32 %s15, 1
      // Predicated region
      $region13: #{bottleneck_forward.5} parent=11 // pred_check
        %p286 = pneg %p152
      $region14: #{bottleneck_forward.5} parent=11 // pred_check_branch
        %288 = sbr.rel (%p286) target = $region16
      $region15: #{bottleneck_forward.5} parent=11 // pred_region
        _
      $region16: #{bottleneck_forward.5} parent=11 // pred_fallthru
        _
      // Predicated region
      $region17: #{bottleneck_forward.5} parent=11 // pred_check
        %p289 = pneg %p173
      $region18: #{bottleneck_forward.5} parent=11 // pred_check_branch
        %291 = sbr.rel (%p289) target = $region20
      $region19: #{bottleneck_forward.5} parent=11 // pred_region
        _
      $region20: #{bottleneck_forward.5} parent=11 // pred_fallthru
        _
      // Predicated region
      $region21: #{bottleneck_forward.5} parent=11 // pred_check
        %p292 = pneg %p194
      $region22: #{bottleneck_forward.5} parent=11 // pred_check_branch
        %294 = sbr.rel (%p292) target = $region24
      $region23: #{bottleneck_forward.5} parent=11 // pred_region
        _
      $region24: #{bottleneck_forward.5} parent=11 // pred_fallthru
        _
      // Predicated region
      $region25: #{bottleneck_forward.5} parent=11 // pred_check
        %p295 = pneg %p215
      $region26: #{bottleneck_forward.5} parent=11 // pred_check_branch
        %297 = sbr.rel (%p295) target = $region28
      $region27: #{bottleneck_forward.5} parent=11 // pred_region
        _
      $region28: #{bottleneck_forward.5} parent=11 // pred_fallthru
        _
    $region12: #{bottleneck_forward.5} parent=5 // pred_fallthru
      _
    %p298 = scmp.lt.s32.totalorder %s15, 2
    // Predicated region
    $region29: #{bottleneck_forward.5} parent=5 // pred_check
      %p299 = pneg %p298
    $region30: #{bottleneck_forward.5} parent=5 // pred_check_branch
      %301 = sbr.rel (%p299) target = $region32
    $region31: #{bottleneck_forward.5} parent=5 // pred_region
      // Predicated region
      $region33: #{bottleneck_forward.5} parent=31 // pred_check
        %p302 = pneg %p49
      $region34: #{bottleneck_forward.5} parent=31 // pred_check_branch
        %304 = sbr.rel (%p302) target = $region36
      $region35: #{bottleneck_forward.5} parent=31 // pred_region
        %s305 = sadd.s32 %s22, %s23
        %s306 = smul.u32 32, %s305
        %p307 = scmp.lt.s32.totalorder %s306, 63
        %s308 = scalar_select %p307, %s306, 63
        %s309 = smul.addr %s308, 8
        %s310 = scalar_lea.vmem %s0, %s309
        %s311 = sadd.s32 %s22, %s23
        %s312 = smul.u32 32, %s311
      $region36: #{bottleneck_forward.5} parent=31 // pred_fallthru
        _
      // Predicated region
      $region37: #{bottleneck_forward.5} parent=31 // pred_check
        %p313 = pneg %p87
      $region38: #{bottleneck_forward.5} parent=31 // pred_check_branch
        %315 = sbr.rel (%p313) target = $region40
      $region39: #{bottleneck_forward.5} parent=31 // pred_region
        %s316 = smul.u32 %s22, 16
        %s317 = smul.u32 %s23, 16
        %s318 = ssub.s32 %s317, 1
        %p319 = scmp.gt.s32.totalorder %s318, 0
        %s320 = scalar_select %p319, %s318, 0
        %s321 = sadd.s32 %s316, %s320
        %s322 = smul.u32 2, %s321
        %p323 = scmp.lt.s32.totalorder %s322, 63
        %s324 = scalar_select %p323, %s322, 63
        %s325 = smul.addr %s324, 8
        %s326 = scalar_lea.vmem %s1, %s325
        %s327 = smul.u32 %s22, 16
        %s328 = smul.u32 %s23, 16
        %s329 = ssub.s32 %s328, 1
        %p330 = scmp.gt.s32.totalorder %s329, 0
        %s331 = scalar_select %p330, %s329, 0
        %s332 = sadd.s32 %s327, %s331
        %s333 = smul.u32 2, %s332
      $region40: #{bottleneck_forward.5} parent=31 // pred_fallthru
        _
      // Predicated region
      $region41: #{bottleneck_forward.5} parent=31 // pred_check
        %p334 = pneg %p125
      $region42: #{bottleneck_forward.5} parent=31 // pred_check_branch
        %336 = sbr.rel (%p334) target = $region44
      $region43: #{bottleneck_forward.5} parent=31 // pred_region
        %s337 = smul.u32 %s22, 16
        %s338 = sadd.s32 %s23, 1
        %s339 = smul.u32 %s338, 16
        %p340 = scmp.lt.s32.totalorder %s339, 15
        %s341 = scalar_select %p340, %s339, 15
        %s342 = sadd.s32 %s337, %s341
        %s343 = smul.u32 2, %s342
        %p344 = scmp.lt.s32.totalorder %s343, 63
        %s345 = scalar_select %p344, %s343, 63
        %s346 = smul.addr %s345, 8
        %s347 = scalar_lea.vmem %s2, %s346
        %s348 = smul.u32 %s22, 16
        %s349 = sadd.s32 %s23, 1
        %s350 = smul.u32 %s349, 16
        %p351 = scmp.lt.s32.totalorder %s350, 15
        %s352 = scalar_select %p351, %s350, 15
        %s353 = sadd.s32 %s348, %s352
        %s354 = smul.u32 2, %s353
      $region44: #{bottleneck_forward.5} parent=31 // pred_fallthru
        _
    $region32: #{bottleneck_forward.5} parent=5 // pred_fallthru
      _
    %p355 = scmp.le.s32.totalorder 1, %s15
    %p356 = scmp.lt.s32.totalorder %s15, 3
    %p357 = pnand %p355, %p356
    %p358 = pneg %p357
    // Predicated region
    $region45: #{bottleneck_forward.5} parent=5 // pred_check
      _
    $region46: #{bottleneck_forward.5} parent=5 // pred_check_branch
      %360 = sbr.rel (%p357) target = $region48
    $region47: #{bottleneck_forward.5} parent=5 // pred_region
      %s361 = ssub.s32 %s15, 1
      %s362 = sadd.s32 %s24, %s25
      %s363 = smul.u32 32, %s362
      %p364 = scmp.lt.s32.totalorder %s363, 63
      %s365 = scalar_select %p364, %s363, 63
      %s366 = smul.addr %s365, 8
      %s367 = scalar_lea.vmem %s0, %s366
      %p368 = pneg %p55
      %p369 = pneg %p52
      %s370 = smul.u32 %s24, 16
      %s371 = smul.u32 %s25, 16
      %s372 = ssub.s32 %s371, 1
      %p373 = scmp.gt.s32.totalorder %s372, 0
      %s374 = scalar_select %p373, %s372, 0
      %s375 = sadd.s32 %s370, %s374
      %s376 = smul.u32 2, %s375
      %p377 = scmp.lt.s32.totalorder %s376, 63
      %s378 = scalar_select %p377, %s376, 63
      %s379 = smul.addr %s378, 8
      %s380 = scalar_lea.vmem %s1, %s379
      %p381 = pneg %p93
      %p382 = pneg %p90
      %s383 = smul.u32 %s24, 16
      %s384 = sadd.s32 %s25, 1
      %s385 = smul.u32 %s384, 16
      %p386 = scmp.lt.s32.totalorder %s385, 15
      %s387 = scalar_select %p386, %s385, 15
      %s388 = sadd.s32 %s383, %s387
      %s389 = smul.u32 2, %s388
      %p390 = scmp.lt.s32.totalorder %s389, 63
      %s391 = scalar_select %p390, %s389, 63
      %s392 = smul.addr %s391, 8
      %s393 = scalar_lea.vmem %s2, %s392
      %p394 = pneg %p131
      %p395 = pneg %p128
      %p396 = pneg %p152
      %p397 = pneg %p149
      %p398 = pneg %p173
      %p399 = pneg %p170
      %p400 = pneg %p194
      %p401 = pneg %p191
      %p402 = pneg %p215
      %p403 = pneg %p212
      %p404 = pneg %p243
      %p405 = pneg %p240
      %s406 = sadd.s32 %s24, %s25
      %s407 = smul.u32 32, %s406
      %p408 = scmp.lt.s32.totalorder %s407, 63
      %s409 = scalar_select %p408, %s407, 63
      %s410 = smul.addr %s409, 8
      %s411 = scalar_lea.vmem %s7, %s410
      %p412 = pneg %p271
      %p413 = pneg %p268
      %s414 = sadd.s32 %s24, %s25
      %p415 = scmp.lt.s32.totalorder %s414, 1
      %s416 = scalar_select %p415, %s414, 1
      %s417 = smul.addr %s416, 2
      %s418 = scalar_lea.vmem %s8, %s417
      %s419 = sadd.s32 %s24, %s25
      %s420 = smul.u32 32, %s419
      %p421 = scmp.lt.s32.totalorder %s420, 63
      %s422 = scalar_select %p421, %s420, 63
      %s423 = smul.addr %s422, 8
      %s424 = scalar_lea.vmem %s0, %s423
      %s425 = sadd.s32 %s24, %s25
      %s426 = smul.u32 32, %s425
      %s427 = smul.u32 %s24, 16
      %s428 = smul.u32 %s25, 16
      %s429 = ssub.s32 %s428, 1
      %p430 = scmp.gt.s32.totalorder %s429, 0
      %s431 = scalar_select %p430, %s429, 0
      %s432 = sadd.s32 %s427, %s431
      %s433 = smul.u32 2, %s432
      %p434 = scmp.lt.s32.totalorder %s433, 63
      %s435 = scalar_select %p434, %s433, 63
      %s436 = smul.addr %s435, 8
      %s437 = scalar_lea.vmem %s1, %s436
      %s438 = smul.u32 %s24, 16
      %s439 = smul.u32 %s25, 16
      %s440 = ssub.s32 %s439, 1
      %p441 = scmp.gt.s32.totalorder %s440, 0
      %s442 = scalar_select %p441, %s440, 0
      %s443 = sadd.s32 %s438, %s442
      %s444 = smul.u32 2, %s443
      %s445 = smul.u32 %s24, 16
      %s446 = sadd.s32 %s25, 1
      %s447 = smul.u32 %s446, 16
      %p448 = scmp.lt.s32.totalorder %s447, 15
      %s449 = scalar_select %p448, %s447, 15
      %s450 = sadd.s32 %s445, %s449
      %s451 = smul.u32 2, %s450
      %p452 = scmp.lt.s32.totalorder %s451, 63
      %s453 = scalar_select %p452, %s451, 63
      %s454 = smul.addr %s453, 8
      %s455 = scalar_lea.vmem %s2, %s454
      %s456 = smul.u32 %s24, 16
      %s457 = sadd.s32 %s25, 1
      %s458 = smul.u32 %s457, 16
      %p459 = scmp.lt.s32.totalorder %s458, 15
      %s460 = scalar_select %p459, %s458, 15
      %s461 = sadd.s32 %s456, %s460
      %s462 = smul.u32 2, %s461
      %s463 = sadd.s32 %s24, %s25
      %s464 = smul.u32 32, %s463
      %p465 = scmp.lt.s32.totalorder %s464, 63
      %s466 = scalar_select %p465, %s464, 63
      %s467 = smul.addr %s466, 8
      %s468 = scalar_lea.vmem %s7, %s467
      %s469 = sadd.s32 %s24, %s25
      %s470 = smul.u32 32, %s469
      %s471 = sadd.s32 %s24, %s25
      %p472 = scmp.lt.s32.totalorder %s471, 1
      %s473 = scalar_select %p472, %s471, 1
      %s474 = smul.addr %s473, 2
      %s475 = scalar_lea.vmem %s8, %s474
      %s476 = sadd.s32 %s24, %s25
      %v477 = vld [vmem:[%s424] sm:$0xff]
      %v478 = vld [vmem:[%s424 + $0x8] sm:$0xff]
      %v479 = vld [vmem:[%s424 + $0x10] sm:$0xff]
      %v480 = vld [vmem:[%s424 + $0x18] sm:$0xff]
      %v481 = vld [vmem:[%s424 + $0x20] sm:$0xff]
      %v482 = vld [vmem:[%s424 + $0x28] sm:$0xff]
      %v483 = vld [vmem:[%s424 + $0x30] sm:$0xff]
      %v484 = vld [vmem:[%s424 + $0x38] sm:$0xff]
      %v485 = vld [vmem:[%s424 + $0x40] sm:$0xff]
      %v486 = vld [vmem:[%s424 + $0x48] sm:$0xff]
      %v487 = vld [vmem:[%s424 + $0x50] sm:$0xff]
      %v488 = vld [vmem:[%s424 + $0x58] sm:$0xff]
      %v489 = vld [vmem:[%s424 + $0x60] sm:$0xff]
      %v490 = vld [vmem:[%s424 + $0x68] sm:$0xff]
      %v491 = vld [vmem:[%s424 + $0x70] sm:$0xff]
      %v492 = vld [vmem:[%s424 + $0x78] sm:$0xff]
      %v493 = vld [vmem:[%s424 + $0x80] sm:$0xff]
      %v494 = vld [vmem:[%s424 + $0x88] sm:$0xff]
      %v495 = vld [vmem:[%s424 + $0x90] sm:$0xff]
      %v496 = vld [vmem:[%s424 + $0x98] sm:$0xff]
      %v497 = vld [vmem:[%s424 + $0xa0] sm:$0xff]
      %v498 = vld [vmem:[%s424 + $0xa8] sm:$0xff]
      %v499 = vld [vmem:[%s424 + $0xb0] sm:$0xff]
      %v500 = vld [vmem:[%s424 + $0xb8] sm:$0xff]
      %v501 = vld [vmem:[%s424 + $0xc0] sm:$0xff]
      %v502 = vld [vmem:[%s424 + $0xc8] sm:$0xff]
      %v503 = vld [vmem:[%s424 + $0xd0] sm:$0xff]
      %v504 = vld [vmem:[%s424 + $0xd8] sm:$0xff]
      %v505 = vld [vmem:[%s424 + $0xe0] sm:$0xff]
      %v506 = vld [vmem:[%s424 + $0xe8] sm:$0xff]
      %v507 = vld [vmem:[%s424 + $0xf0] sm:$0xff]
      %v508 = vld [vmem:[%s424 + $0xf8] sm:$0xff]
      %v509 = vld [vmem:[%s3] sm:$0x1]
      %v511 = vlaneseq
      %v512 = vshrl.u32 %v511, 7
      %v513 = vsub.s32 0, %v512
      %v514 = vrot.slane %v509, %v513
      %v516 = vmul.f32 %v477, %v514
      %v517 = vmul.f32 %v478, %v514
      %v518 = vmul.f32 %v479, %v514
      %v519 = vmul.f32 %v480, %v514
      %v520 = vmul.f32 %v481, %v514
      %v521 = vmul.f32 %v482, %v514
      %v522 = vmul.f32 %v483, %v514
      %v523 = vmul.f32 %v484, %v514
      %v524 = vmul.f32 %v485, %v514
      %v525 = vmul.f32 %v486, %v514
      %v526 = vmul.f32 %v487, %v514
      %v527 = vmul.f32 %v488, %v514
      %v528 = vmul.f32 %v489, %v514
      %v529 = vmul.f32 %v490, %v514
      %v530 = vmul.f32 %v491, %v514
      %v531 = vmul.f32 %v492, %v514
      %v532 = vmul.f32 %v493, %v514
      %v533 = vmul.f32 %v494, %v514
      %v534 = vmul.f32 %v495, %v514
      %v535 = vmul.f32 %v496, %v514
      %v536 = vmul.f32 %v497, %v514
      %v537 = vmul.f32 %v498, %v514
      %v538 = vmul.f32 %v499, %v514
      %v539 = vmul.f32 %v500, %v514
      %v540 = vmul.f32 %v501, %v514
      %v541 = vmul.f32 %v502, %v514
      %v542 = vmul.f32 %v503, %v514
      %v543 = vmul.f32 %v504, %v514
      %v544 = vmul.f32 %v505, %v514
      %v545 = vmul.f32 %v506, %v514
      %v546 = vmul.f32 %v507, %v514
      %v547 = vmul.f32 %v508, %v514
      %v548 = vld [vmem:[%s4] sm:$0x1]
      %v550 = vlaneseq
      %v551 = vshrl.u32 %v550, 7
      %v552 = vsub.s32 0, %v551
      %v553 = vrot.slane %v548, %v552
      %v555 = vadd.f32 %v516, %v553
      %v556 = vadd.f32 %v517, %v553
      %v557 = vadd.f32 %v518, %v553
      %v558 = vadd.f32 %v519, %v553
      %v559 = vadd.f32 %v520, %v553
      %v560 = vadd.f32 %v521, %v553
      %v561 = vadd.f32 %v522, %v553
      %v562 = vadd.f32 %v523, %v553
      %v563 = vadd.f32 %v524, %v553
      %v564 = vadd.f32 %v525, %v553
      %v565 = vadd.f32 %v526, %v553
      %v566 = vadd.f32 %v527, %v553
      %v567 = vadd.f32 %v528, %v553
      %v568 = vadd.f32 %v529, %v553
      %v569 = vadd.f32 %v530, %v553
      %v570 = vadd.f32 %v531, %v553
      %v571 = vadd.f32 %v532, %v553
      %v572 = vadd.f32 %v533, %v553
      %v573 = vadd.f32 %v534, %v553
      %v574 = vadd.f32 %v535, %v553
      %v575 = vadd.f32 %v536, %v553
      %v576 = vadd.f32 %v537, %v553
      %v577 = vadd.f32 %v538, %v553
      %v578 = vadd.f32 %v539, %v553
      %v579 = vadd.f32 %v540, %v553
      %v580 = vadd.f32 %v541, %v553
      %v581 = vadd.f32 %v542, %v553
      %v582 = vadd.f32 %v543, %v553
      %v583 = vadd.f32 %v544, %v553
      %v584 = vadd.f32 %v545, %v553
      %v585 = vadd.f32 %v546, %v553
      %v586 = vadd.f32 %v547, %v553
      %v587 = vmax.f32 %v555, 0.0
      %v588 = vmax.f32 %v556, 0.0
      %v589 = vmax.f32 %v557, 0.0
      %v590 = vmax.f32 %v558, 0.0
      %v591 = vmax.f32 %v559, 0.0
      %v592 = vmax.f32 %v560, 0.0
      %v593 = vmax.f32 %v561, 0.0
      %v594 = vmax.f32 %v562, 0.0
      %v595 = vmax.f32 %v563, 0.0
      %v596 = vmax.f32 %v564, 0.0
      %v597 = vmax.f32 %v565, 0.0
      %v598 = vmax.f32 %v566, 0.0
      %v599 = vmax.f32 %v567, 0.0
      %v600 = vmax.f32 %v568, 0.0
      %v601 = vmax.f32 %v569, 0.0
      %v602 = vmax.f32 %v570, 0.0
      %v603 = vmax.f32 %v571, 0.0
      %v604 = vmax.f32 %v572, 0.0
      %v605 = vmax.f32 %v573, 0.0
      %v606 = vmax.f32 %v574, 0.0
      %v607 = vmax.f32 %v575, 0.0
      %v608 = vmax.f32 %v576, 0.0
      %v609 = vmax.f32 %v577, 0.0
      %v610 = vmax.f32 %v578, 0.0
      %v611 = vmax.f32 %v579, 0.0
      %v612 = vmax.f32 %v580, 0.0
      %v613 = vmax.f32 %v581, 0.0
      %v614 = vmax.f32 %v582, 0.0
      %v615 = vmax.f32 %v583, 0.0
      %v616 = vmax.f32 %v584, 0.0
      %v617 = vmax.f32 %v585, 0.0
      %v618 = vmax.f32 %v586, 0.0
      %p619 = scmp.gt.s32.totalorder %s25, 0
      %s620 = scalar_select %p619, 1.0, 0.0
      %p621 = scmp.lt.s32.totalorder %s25, 0
      %s622 = scalar_select %p621, 1.0, 0.0
      %v623 = vld [vmem:[%s437] sm:$0xff]
      %v624 = vld [vmem:[%s437 + $0x8] sm:$0xff]
      %v625 = vmul.f32 %v623, %v514
      %v626 = vmul.f32 %v624, %v514
      %v627 = vadd.f32 %v625, %v553
      %v628 = vadd.f32 %v626, %v553
      %v629 = vmax.f32 %v627, 0.0
      %v630 = vmax.f32 %v628, 0.0
      %v631 = vstv %s620
      %v632 = vmul.f32 %v629, %v631
      %v633 = vmul.f32 %v630, %v631
      %v634 = vld [vmem:[%s455] sm:$0xff]
      %v635 = vld [vmem:[%s455 + $0x8] sm:$0xff]
      %v636 = vmul.f32 %v634, %v514
      %v637 = vmul.f32 %v635, %v514
      %v638 = vadd.f32 %v636, %v553
      %v639 = vadd.f32 %v637, %v553
      %v640 = vmax.f32 %v638, 0.0
      %v641 = vmax.f32 %v639, 0.0
      %v642 = vstv %s622
      %v643 = vmul.f32 %v640, %v642
      %v644 = vmul.f32 %v641, %v642
      %v645 = vld [vmem:[%s5] sm:$0xff]
      %v646 = vld [vmem:[%s5 + $0x8] sm:$0xff]
      %v647 = vld [vmem:[%s5 + $0x10] sm:$0xff]
      %v648 = vld [vmem:[%s5 + $0x18] sm:$0xff]
      %v649 = vld [vmem:[%s5 + $0x20] sm:$0xff]
      %v650 = vld [vmem:[%s5 + $0x28] sm:$0xff]
      %v651 = vld [vmem:[%s5 + $0x30] sm:$0xff]
      %v652 = vld [vmem:[%s5 + $0x38] sm:$0xff]
      %v653 = vld [vmem:[%s5 + $0x40] sm:$0xff]
      %v654 = vld [vmem:[%s5 + $0x48] sm:$0xff]
      %v655 = vld [vmem:[%s5 + $0x50] sm:$0xff]
      %v656 = vld [vmem:[%s5 + $0x58] sm:$0xff]
      %v657 = vld [vmem:[%s5 + $0x60] sm:$0xff]
      %v658 = vld [vmem:[%s5 + $0x68] sm:$0xff]
      %v659 = vld [vmem:[%s5 + $0x70] sm:$0xff]
      %v660 = vld [vmem:[%s5 + $0x78] sm:$0xff]
      %v661 = vld [vmem:[%s5 + $0x80] sm:$0xff]
      %v662 = vld [vmem:[%s5 + $0x88] sm:$0xff]
      %v663 = vld [vmem:[%s5 + $0x90] sm:$0xff]
      %v664 = vld [vmem:[%s5 + $0x98] sm:$0xff]
      %v665 = vld [vmem:[%s5 + $0xa0] sm:$0xff]
      %v666 = vld [vmem:[%s5 + $0xa8] sm:$0xff]
      %v667 = vld [vmem:[%s5 + $0xb0] sm:$0xff]
      %v668 = vld [vmem:[%s5 + $0xb8] sm:$0xff]
      %v669 = vld [vmem:[%s5 + $0xc0] sm:$0xff]
      %v670 = vld [vmem:[%s5 + $0xc8] sm:$0xff]
      %v671 = vld [vmem:[%s5 + $0xd0] sm:$0xff]
      %v672 = vld [vmem:[%s5 + $0xd8] sm:$0xff]
      %v673 = vld [vmem:[%s5 + $0xe0] sm:$0xff]
      %v674 = vld [vmem:[%s5 + $0xe8] sm:$0xff]
      %v675 = vld [vmem:[%s5 + $0xf0] sm:$0xff]
      %v676 = vld [vmem:[%s5 + $0xf8] sm:$0xff]
      %vm677 = vcmask 188416
      %678 = vst.msk [vmem:[#allocation2 + $0x8] sm:$0x1] %vm677, 0.0
      %679 = vst.msk [vmem:[#allocation2 + $0x127] sm:$0x1] %vm677, 0.0
      %681 = vset.pattern.permute.xlu0 0
      %682 = vperm.xlu0 %681, %v645
      %v683 = vpop.permute.xlu0 %682
      %686 = vset.pattern.permute.xlu0 0
      %687 = vperm.xlu0 %686, %v646
      %v688 = vpop.permute.xlu0 %687
      %v690 = vmul.f32 %v632, %v683
      %v691 = vmul.f32 %v633, %v688
      %vm692 = vcmask 64512
      %693 = vst.msk [vmem:[#allocation2 + $0x9] sm:$0xff] %vm692, %v690
      %694 = vst.msk [vmem:[#allocation2 + $0x11] sm:$0xff] %vm692, %v691
      %696 = vset.pattern.permute.xlu0 0
      %697 = vperm.xlu0 %696, %v647
      %v698 = vpop.permute.xlu0 %697
      %701 = vset.pattern.permute.xlu0 0
      %702 = vperm.xlu0 %701, %v648
      %v703 = vpop.permute.xlu0 %702
      %706 = vset.pattern.permute.xlu0 0
      %707 = vperm.xlu0 %706, %v649
      %v708 = vpop.permute.xlu0 %707
      %711 = vset.pattern.permute.xlu0 0
      %712 = vperm.xlu0 %711, %v650
      %v713 = vpop.permute.xlu0 %712
      %716 = vset.pattern.permute.xlu0 0
      %717 = vperm.xlu0 %716, %v651
      %v718 = vpop.permute.xlu0 %717
      %721 = vset.pattern.permute.xlu0 0
      %722 = vperm.xlu0 %721, %v652
      %v723 = vpop.permute.xlu0 %722
      %726 = vset.pattern.permute.xlu0 0
      %727 = vperm.xlu0 %726, %v653
      %v728 = vpop.permute.xlu0 %727
      %731 = vset.pattern.permute.xlu0 0
      %732 = vperm.xlu0 %731, %v654
      %v733 = vpop.permute.xlu0 %732
      %736 = vset.pattern.permute.xlu0 0
      %737 = vperm.xlu0 %736, %v655
      %v738 = vpop.permute.xlu0 %737
      %741 = vset.pattern.permute.xlu0 0
      %742 = vperm.xlu0 %741, %v656
      %v743 = vpop.permute.xlu0 %742
      %746 = vset.pattern.permute.xlu0 0
      %747 = vperm.xlu0 %746, %v657
      %v748 = vpop.permute.xlu0 %747
      %751 = vset.pattern.permute.xlu0 0
      %752 = vperm.xlu0 %751, %v658
      %v753 = vpop.permute.xlu0 %752
      %756 = vset.pattern.permute.xlu0 0
      %757 = vperm.xlu0 %756, %v659
      %v758 = vpop.permute.xlu0 %757
      %761 = vset.pattern.permute.xlu0 0
      %762 = vperm.xlu0 %761, %v660
      %v763 = vpop.permute.xlu0 %762
      %766 = vset.pattern.permute.xlu0 0
      %767 = vperm.xlu0 %766, %v661
      %v768 = vpop.permute.xlu0 %767
      %771 = vset.pattern.permute.xlu0 0
      %772 = vperm.xlu0 %771, %v662
      %v773 = vpop.permute.xlu0 %772
      %776 = vset.pattern.permute.xlu0 0
      %777 = vperm.xlu0 %776, %v663
      %v778 = vpop.permute.xlu0 %777
      %781 = vset.pattern.permute.xlu0 0
      %782 = vperm.xlu0 %781, %v664
      %v783 = vpop.permute.xlu0 %782
      %786 = vset.pattern.permute.xlu0 0
      %787 = vperm.xlu0 %786, %v665
      %v788 = vpop.permute.xlu0 %787
      %791 = vset.pattern.permute.xlu0 0
      %792 = vperm.xlu0 %791, %v666
      %v793 = vpop.permute.xlu0 %792
      %796 = vset.pattern.permute.xlu0 0
      %797 = vperm.xlu0 %796, %v667
      %v798 = vpop.permute.xlu0 %797
      %801 = vset.pattern.permute.xlu0 0
      %802 = vperm.xlu0 %801, %v668
      %v803 = vpop.permute.xlu0 %802
      %806 = vset.pattern.permute.xlu0 0
      %807 = vperm.xlu0 %806, %v669
      %v808 = vpop.permute.xlu0 %807
      %811 = vset.pattern.permute.xlu0 0
      %812 = vperm.xlu0 %811, %v670
      %v813 = vpop.permute.xlu0 %812
      %816 = vset.pattern.permute.xlu0 0
      %817 = vperm.xlu0 %816, %v671
      %v818 = vpop.permute.xlu0 %817
      %821 = vset.pattern.permute.xlu0 0
      %822 = vperm.xlu0 %821, %v672
      %v823 = vpop.permute.xlu0 %822
      %826 = vset.pattern.permute.xlu0 0
      %827 = vperm.xlu0 %826, %v673
      %v828 = vpop.permute.xlu0 %827
      %831 = vset.pattern.permute.xlu0 0
      %832 = vperm.xlu0 %831, %v674
      %v833 = vpop.permute.xlu0 %832
      %836 = vset.pattern.permute.xlu0 0
      %837 = vperm.xlu0 %836, %v675
      %v838 = vpop.permute.xlu0 %837
      %841 = vset.pattern.permute.xlu0 0
      %842 = vperm.xlu0 %841, %v676
      %v843 = vpop.permute.xlu0 %842
      %v845 = vmul.f32 %v587, %v683
      %v846 = vmul.f32 %v588, %v688
      %v847 = vmul.f32 %v589, %v698
      %v848 = vmul.f32 %v590, %v703
      %v849 = vmul.f32 %v591, %v708
      %v850 = vmul.f32 %v592, %v713
      %v851 = vmul.f32 %v593, %v718
      %v852 = vmul.f32 %v594, %v723
      %v853 = vmul.f32 %v595, %v728
      %v854 = vmul.f32 %v596, %v733
      %v855 = vmul.f32 %v597, %v738
      %v856 = vmul.f32 %v598, %v743
      %v857 = vmul.f32 %v599, %v748
      %v858 = vmul.f32 %v600, %v753
      %v859 = vmul.f32 %v601, %v758
      %v860 = vmul.f32 %v602, %v763
      %v861 = vmul.f32 %v603, %v768
      %v862 = vmul.f32 %v604, %v773
      %v863 = vmul.f32 %v605, %v778
      %v864 = vmul.f32 %v606, %v783
      %v865 = vmul.f32 %v607, %v788
      %v866 = vmul.f32 %v608, %v793
      %v867 = vmul.f32 %v609, %v798
      %v868 = vmul.f32 %v610, %v803
      %v869 = vmul.f32 %v611, %v808
      %v870 = vmul.f32 %v612, %v813
      %v871 = vmul.f32 %v613, %v818
      %v872 = vmul.f32 %v614, %v823
      %v873 = vmul.f32 %v615, %v828
      %v874 = vmul.f32 %v616, %v833
      %v875 = vmul.f32 %v617, %v838
      %v876 = vmul.f32 %v618, %v843
      %877 = vst.msk [vmem:[#allocation2 + $0x19] sm:$0xff] %vm692, %v845
      %878 = vst.msk [vmem:[#allocation2 + $0x21] sm:$0xff] %vm692, %v846
      %879 = vst.msk [vmem:[#allocation2 + $0x29] sm:$0xff] %vm692, %v847
      %880 = vst.msk [vmem:[#allocation2 + $0x31] sm:$0xff] %vm692, %v848
      %881 = vst.msk [vmem:[#allocation2 + $0x39] sm:$0xff] %vm692, %v849
      %882 = vst.msk [vmem:[#allocation2 + $0x41] sm:$0xff] %vm692, %v850
      %883 = vst.msk [vmem:[#allocation2 + $0x49] sm:$0xff] %vm692, %v851
      %884 = vst.msk [vmem:[#allocation2 + $0x51] sm:$0xff] %vm692, %v852
      %885 = vst.msk [vmem:[#allocation2 + $0x59] sm:$0xff] %vm692, %v853
      %886 = vst.msk [vmem:[#allocation2 + $0x61] sm:$0xff] %vm692, %v854
      %887 = vst.msk [vmem:[#allocation2 + $0x69] sm:$0xff] %vm692, %v855
      %888 = vst.msk [vmem:[#allocation2 + $0x71] sm:$0xff] %vm692, %v856
      %889 = vst.msk [vmem:[#allocation2 + $0x79] sm:$0xff] %vm692, %v857
      %890 = vst.msk [vmem:[#allocation2 + $0x81] sm:$0xff] %vm692, %v858
      %891 = vst.msk [vmem:[#allocation2 + $0x89] sm:$0xff] %vm692, %v859
      %892 = vst.msk [vmem:[#allocation2 + $0x91] sm:$0xff] %vm692, %v860
      %893 = vst.msk [vmem:[#allocation2 + $0x99] sm:$0xff] %vm692, %v861
      %894 = vst.msk [vmem:[#allocation2 + $0xa1] sm:$0xff] %vm692, %v862
      %895 = vst.msk [vmem:[#allocation2 + $0xa9] sm:$0xff] %vm692, %v863
      %896 = vst.msk [vmem:[#allocation2 + $0xb1] sm:$0xff] %vm692, %v864
      %897 = vst.msk [vmem:[#allocation2 + $0xb9] sm:$0xff] %vm692, %v865
      %898 = vst.msk [vmem:[#allocation2 + $0xc1] sm:$0xff] %vm692, %v866
      %899 = vst.msk [vmem:[#allocation2 + $0xc9] sm:$0xff] %vm692, %v867
      %900 = vst.msk [vmem:[#allocation2 + $0xd1] sm:$0xff] %vm692, %v868
      %901 = vst.msk [vmem:[#allocation2 + $0xd9] sm:$0xff] %vm692, %v869
      %902 = vst.msk [vmem:[#allocation2 + $0xe1] sm:$0xff] %vm692, %v870
      %903 = vst.msk [vmem:[#allocation2 + $0xe9] sm:$0xff] %vm692, %v871
      %904 = vst.msk [vmem:[#allocation2 + $0xf1] sm:$0xff] %vm692, %v872
      %905 = vst.msk [vmem:[#allocation2 + $0xf9] sm:$0xff] %vm692, %v873
      %906 = vst.msk [vmem:[#allocation2 + $0x101] sm:$0xff] %vm692, %v874
      %907 = vst.msk [vmem:[#allocation2 + $0x109] sm:$0xff] %vm692, %v875
      %908 = vst.msk [vmem:[#allocation2 + $0x111] sm:$0xff] %vm692, %v876
      %v909 = vmul.f32 %v643, %v683
      %v910 = vmul.f32 %v644, %v688
      %911 = vst.msk [vmem:[#allocation2 + $0x119] sm:$0xff] %vm692, %v909
      %912 = vst.msk [vmem:[#allocation2 + $0x121] sm:$0xff] %vm692, %v910
      %915 = vrot.lane.b32.xlu0 %v632, 8
      %v916 = vpop.permute.xlu0 %915
      %917 = vrot.lane.b32.xlu0 %v633, 8
      %v918 = vpop.permute.xlu0 %917
      %vm921 = vcmask 130112
      %922 = vst.msk [vmem:[#allocation2 + $0x8] sm:$0xff] %vm921, %v916
      %923 = vst.msk [vmem:[#allocation2 + $0x10] sm:$0xff] %vm921, %v918
      %956 = vrot.lane.b32.xlu0 %v587, 8
      %v957 = vpop.permute.xlu0 %956
      %958 = vrot.lane.b32.xlu0 %v588, 8
      %v959 = vpop.permute.xlu0 %958
      %960 = vrot.lane.b32.xlu0 %v589, 8
      %v961 = vpop.permute.xlu0 %960
      %962 = vrot.lane.b32.xlu0 %v590, 8
      %v963 = vpop.permute.xlu0 %962
      %964 = vrot.lane.b32.xlu0 %v591, 8
      %v965 = vpop.permute.xlu0 %964
      %966 = vrot.lane.b32.xlu0 %v592, 8
      %v967 = vpop.permute.xlu0 %966
      %968 = vrot.lane.b32.xlu0 %v593, 8
      %v969 = vpop.permute.xlu0 %968
      %970 = vrot.lane.b32.xlu0 %v594, 8
      %v971 = vpop.permute.xlu0 %970
      %972 = vrot.lane.b32.xlu0 %v595, 8
      %v973 = vpop.permute.xlu0 %972
      %974 = vrot.lane.b32.xlu0 %v596, 8
      %v975 = vpop.permute.xlu0 %974
      %976 = vrot.lane.b32.xlu0 %v597, 8
      %v977 = vpop.permute.xlu0 %976
      %978 = vrot.lane.b32.xlu0 %v598, 8
      %v979 = vpop.permute.xlu0 %978
      %980 = vrot.lane.b32.xlu0 %v599, 8
      %v981 = vpop.permute.xlu0 %980
      %982 = vrot.lane.b32.xlu0 %v600, 8
      %v983 = vpop.permute.xlu0 %982
      %984 = vrot.lane.b32.xlu0 %v601, 8
      %v985 = vpop.permute.xlu0 %984
      %986 = vrot.lane.b32.xlu0 %v602, 8
      %v987 = vpop.permute.xlu0 %986
      %988 = vrot.lane.b32.xlu0 %v603, 8
      %v989 = vpop.permute.xlu0 %988
      %990 = vrot.lane.b32.xlu0 %v604, 8
      %v991 = vpop.permute.xlu0 %990
      %992 = vrot.lane.b32.xlu0 %v605, 8
      %v993 = vpop.permute.xlu0 %992
      %994 = vrot.lane.b32.xlu0 %v606, 8
      %v995 = vpop.permute.xlu0 %994
      %996 = vrot.lane.b32.xlu0 %v607, 8
      %v997 = vpop.permute.xlu0 %996
      %998 = vrot.lane.b32.xlu0 %v608, 8
      %v999 = vpop.permute.xlu0 %998
      %1000 = vrot.lane.b32.xlu0 %v609, 8
      %v1001 = vpop.permute.xlu0 %1000
      %1002 = vrot.lane.b32.xlu0 %v610, 8
      %v1003 = vpop.permute.xlu0 %1002
      %1004 = vrot.lane.b32.xlu0 %v611, 8
      %v1005 = vpop.permute.xlu0 %1004
      %1006 = vrot.lane.b32.xlu0 %v612, 8
      %v1007 = vpop.permute.xlu0 %1006
      %1008 = vrot.lane.b32.xlu0 %v613, 8
      %v1009 = vpop.permute.xlu0 %1008
      %1010 = vrot.lane.b32.xlu0 %v614, 8
      %v1011 = vpop.permute.xlu0 %1010
      %1012 = vrot.lane.b32.xlu0 %v615, 8
      %v1013 = vpop.permute.xlu0 %1012
      %1014 = vrot.lane.b32.xlu0 %v616, 8
      %v1015 = vpop.permute.xlu0 %1014
      %1016 = vrot.lane.b32.xlu0 %v617, 8
      %v1017 = vpop.permute.xlu0 %1016
      %1018 = vrot.lane.b32.xlu0 %v618, 8
      %v1019 = vpop.permute.xlu0 %1018
      %1052 = vst.msk [vmem:[#allocation2 + $0x18] sm:$0xff] %vm921, %v957
      %1053 = vst.msk [vmem:[#allocation2 + $0x20] sm:$0xff] %vm921, %v959
      %1054 = vst.msk [vmem:[#allocation2 + $0x28] sm:$0xff] %vm921, %v961
      %1055 = vst.msk [vmem:[#allocation2 + $0x30] sm:$0xff] %vm921, %v963
      %1056 = vst.msk [vmem:[#allocation2 + $0x38] sm:$0xff] %vm921, %v965
      %1057 = vst.msk [vmem:[#allocation2 + $0x40] sm:$0xff] %vm921, %v967
      %1058 = vst.msk [vmem:[#allocation2 + $0x48] sm:$0xff] %vm921, %v969
      %1059 = vst.msk [vmem:[#allocation2 + $0x50] sm:$0xff] %vm921, %v971
      %1060 = vst.msk [vmem:[#allocation2 + $0x58] sm:$0xff] %vm921, %v973
      %1061 = vst.msk [vmem:[#allocation2 + $0x60] sm:$0xff] %vm921, %v975
      %1062 = vst.msk [vmem:[#allocation2 + $0x68] sm:$0xff] %vm921, %v977
      %1063 = vst.msk [vmem:[#allocation2 + $0x70] sm:$0xff] %vm921, %v979
      %1064 = vst.msk [vmem:[#allocation2 + $0x78] sm:$0xff] %vm921, %v981
      %1065 = vst.msk [vmem:[#allocation2 + $0x80] sm:$0xff] %vm921, %v983
      %1066 = vst.msk [vmem:[#allocation2 + $0x88] sm:$0xff] %vm921, %v985
      %1067 = vst.msk [vmem:[#allocation2 + $0x90] sm:$0xff] %vm921, %v987
      %1068 = vst.msk [vmem:[#allocation2 + $0x98] sm:$0xff] %vm921, %v989
      %1069 = vst.msk [vmem:[#allocation2 + $0xa0] sm:$0xff] %vm921, %v991
      %1070 = vst.msk [vmem:[#allocation2 + $0xa8] sm:$0xff] %vm921, %v993
      %1071 = vst.msk [vmem:[#allocation2 + $0xb0] sm:$0xff] %vm921, %v995
      %1072 = vst.msk [vmem:[#allocation2 + $0xb8] sm:$0xff] %vm921, %v997
      %1073 = vst.msk [vmem:[#allocation2 + $0xc0] sm:$0xff] %vm921, %v999
      %1074 = vst.msk [vmem:[#allocation2 + $0xc8] sm:$0xff] %vm921, %v1001
      %1075 = vst.msk [vmem:[#allocation2 + $0xd0] sm:$0xff] %vm921, %v1003
      %1076 = vst.msk [vmem:[#allocation2 + $0xd8] sm:$0xff] %vm921, %v1005
      %1077 = vst.msk [vmem:[#allocation2 + $0xe0] sm:$0xff] %vm921, %v1007
      %1078 = vst.msk [vmem:[#allocation2 + $0xe8] sm:$0xff] %vm921, %v1009
      %1079 = vst.msk [vmem:[#allocation2 + $0xf0] sm:$0xff] %vm921, %v1011
      %1080 = vst.msk [vmem:[#allocation2 + $0xf8] sm:$0xff] %vm921, %v1013
      %1081 = vst.msk [vmem:[#allocation2 + $0x100] sm:$0xff] %vm921, %v1015
      %1082 = vst.msk [vmem:[#allocation2 + $0x108] sm:$0xff] %vm921, %v1017
      %1083 = vst.msk [vmem:[#allocation2 + $0x110] sm:$0xff] %vm921, %v1019
      %1086 = vrot.lane.b32.xlu0 %v643, 8
      %v1087 = vpop.permute.xlu0 %1086
      %1088 = vrot.lane.b32.xlu0 %v644, 8
      %v1089 = vpop.permute.xlu0 %1088
      %1092 = vst.msk [vmem:[#allocation2 + $0x118] sm:$0xff] %vm921, %v1087
      %1093 = vst.msk [vmem:[#allocation2 + $0x120] sm:$0xff] %vm921, %v1089
      %1094 = vset.pattern.permute.xlu0 1
      %1095 = vperm.xlu0 %1094, %v645
      %v1096 = vpop.permute.xlu0 %1095
      %1098 = vset.pattern.permute.xlu0 1
      %1099 = vperm.xlu0 %1098, %v646
      %v1100 = vpop.permute.xlu0 %1099
      %v1102 = vmul.f32 %v632, %v1096
      %v1103 = vmul.f32 %v633, %v1100
      %1106 = vrot.lane.b32.xlu0 %v1102, 16
      %v1107 = vpop.permute.xlu0 %1106
      %1108 = vrot.lane.b32.xlu0 %v1103, 16
      %v1109 = vpop.permute.xlu0 %1108
      %vm1112 = vcmask 195712
      %1113 = vst.msk [vmem:[#allocation2 + $0x7] sm:$0xff] %vm1112, %v1107
      %1114 = vst.msk [vmem:[#allocation2 + $0xf] sm:$0xff] %vm1112, %v1109
      %1115 = vset.pattern.permute.xlu0 1
      %1116 = vperm.xlu0 %1115, %v647
      %v1117 = vpop.permute.xlu0 %1116
      %1119 = vset.pattern.permute.xlu0 1
      %1120 = vperm.xlu0 %1119, %v648
      %v1121 = vpop.permute.xlu0 %1120
      %1123 = vset.pattern.permute.xlu0 1
      %1124 = vperm.xlu0 %1123, %v649
      %v1125 = vpop.permute.xlu0 %1124
      %1127 = vset.pattern.permute.xlu0 1
      %1128 = vperm.xlu0 %1127, %v650
      %v1129 = vpop.permute.xlu0 %1128
      %1131 = vset.pattern.permute.xlu0 1
      %1132 = vperm.xlu0 %1131, %v651
      %v1133 = vpop.permute.xlu0 %1132
      %1135 = vset.pattern.permute.xlu0 1
      %1136 = vperm.xlu0 %1135, %v652
      %v1137 = vpop.permute.xlu0 %1136
      %1139 = vset.pattern.permute.xlu0 1
      %1140 = vperm.xlu0 %1139, %v653
      %v1141 = vpop.permute.xlu0 %1140
      %1143 = vset.pattern.permute.xlu0 1
      %1144 = vperm.xlu0 %1143, %v654
      %v1145 = vpop.permute.xlu0 %1144
      %1147 = vset.pattern.permute.xlu0 1
      %1148 = vperm.xlu0 %1147, %v655
      %v1149 = vpop.permute.xlu0 %1148
      %1151 = vset.pattern.permute.xlu0 1
      %1152 = vperm.xlu0 %1151, %v656
      %v1153 = vpop.permute.xlu0 %1152
      %1155 = vset.pattern.permute.xlu0 1
      %1156 = vperm.xlu0 %1155, %v657
      %v1157 = vpop.permute.xlu0 %1156
      %1159 = vset.pattern.permute.xlu0 1
      %1160 = vperm.xlu0 %1159, %v658
      %v1161 = vpop.permute.xlu0 %1160
      %1163 = vset.pattern.permute.xlu0 1
      %1164 = vperm.xlu0 %1163, %v659
      %v1165 = vpop.permute.xlu0 %1164
      %1167 = vset.pattern.permute.xlu0 1
      %1168 = vperm.xlu0 %1167, %v660
      %v1169 = vpop.permute.xlu0 %1168
      %1171 = vset.pattern.permute.xlu0 1
      %1172 = vperm.xlu0 %1171, %v661
      %v1173 = vpop.permute.xlu0 %1172
      %1175 = vset.pattern.permute.xlu0 1
      %1176 = vperm.xlu0 %1175, %v662
      %v1177 = vpop.permute.xlu0 %1176
      %1179 = vset.pattern.permute.xlu0 1
      %1180 = vperm.xlu0 %1179, %v663
      %v1181 = vpop.permute.xlu0 %1180
      %1183 = vset.pattern.permute.xlu0 1
      %1184 = vperm.xlu0 %1183, %v664
      %v1185 = vpop.permute.xlu0 %1184
      %1187 = vset.pattern.permute.xlu0 1
      %1188 = vperm.xlu0 %1187, %v665
      %v1189 = vpop.permute.xlu0 %1188
      %1191 = vset.pattern.permute.xlu0 1
      %1192 = vperm.xlu0 %1191, %v666
      %v1193 = vpop.permute.xlu0 %1192
      %1195 = vset.pattern.permute.xlu0 1
      %1196 = vperm.xlu0 %1195, %v667
      %v1197 = vpop.permute.xlu0 %1196
      %1199 = vset.pattern.permute.xlu0 1
      %1200 = vperm.xlu0 %1199, %v668
      %v1201 = vpop.permute.xlu0 %1200
      %1203 = vset.pattern.permute.xlu0 1
      %1204 = vperm.xlu0 %1203, %v669
      %v1205 = vpop.permute.xlu0 %1204
      %1207 = vset.pattern.permute.xlu0 1
      %1208 = vperm.xlu0 %1207, %v670
      %v1209 = vpop.permute.xlu0 %1208
      %1211 = vset.pattern.permute.xlu0 1
      %1212 = vperm.xlu0 %1211, %v671
      %v1213 = vpop.permute.xlu0 %1212
      %1215 = vset.pattern.permute.xlu0 1
      %1216 = vperm.xlu0 %1215, %v672
      %v1217 = vpop.permute.xlu0 %1216
      %1219 = vset.pattern.permute.xlu0 1
      %1220 = vperm.xlu0 %1219, %v673
      %v1221 = vpop.permute.xlu0 %1220
      %1223 = vset.pattern.permute.xlu0 1
      %1224 = vperm.xlu0 %1223, %v674
      %v1225 = vpop.permute.xlu0 %1224
      %1227 = vset.pattern.permute.xlu0 1
      %1228 = vperm.xlu0 %1227, %v675
      %v1229 = vpop.permute.xlu0 %1228
      %1231 = vset.pattern.permute.xlu0 1
      %1232 = vperm.xlu0 %1231, %v676
      %v1233 = vpop.permute.xlu0 %1232
      %v1235 = vmul.f32 %v587, %v1096
      %v1236 = vmul.f32 %v588, %v1100
      %v1237 = vmul.f32 %v589, %v1117
      %v1238 = vmul.f32 %v590, %v1121
      %v1239 = vmul.f32 %v591, %v1125
      %v1240 = vmul.f32 %v592, %v1129
      %v1241 = vmul.f32 %v593, %v1133
      %v1242 = vmul.f32 %v594, %v1137
      %v1243 = vmul.f32 %v595, %v1141
      %v1244 = vmul.f32 %v596, %v1145
      %v1245 = vmul.f32 %v597, %v1149
      %v1246 = vmul.f32 %v598, %v1153
      %v1247 = vmul.f32 %v599, %v1157
      %v1248 = vmul.f32 %v600, %v1161
      %v1249 = vmul.f32 %v601, %v1165
      %v1250 = vmul.f32 %v602, %v1169
      %v1251 = vmul.f32 %v603, %v1173
      %v1252 = vmul.f32 %v604, %v1177
      %v1253 = vmul.f32 %v605, %v1181
      %v1254 = vmul.f32 %v606, %v1185
      %v1255 = vmul.f32 %v607, %v1189
      %v1256 = vmul.f32 %v608, %v1193
      %v1257 = vmul.f32 %v609, %v1197
      %v1258 = vmul.f32 %v610, %v1201
      %v1259 = vmul.f32 %v611, %v1205
      %v1260 = vmul.f32 %v612, %v1209
      %v1261 = vmul.f32 %v613, %v1213
      %v1262 = vmul.f32 %v614, %v1217
      %v1263 = vmul.f32 %v615, %v1221
      %v1264 = vmul.f32 %v616, %v1225
      %v1265 = vmul.f32 %v617, %v1229
      %v1266 = vmul.f32 %v618, %v1233
      %1299 = vrot.lane.b32.xlu0 %v1235, 16
      %v1300 = vpop.permute.xlu0 %1299
      %1301 = vrot.lane.b32.xlu0 %v1236, 16
      %v1302 = vpop.permute.xlu0 %1301
      %1303 = vrot.lane.b32.xlu0 %v1237, 16
      %v1304 = vpop.permute.xlu0 %1303
      %1305 = vrot.lane.b32.xlu0 %v1238, 16
      %v1306 = vpop.permute.xlu0 %1305
      %1307 = vrot.lane.b32.xlu0 %v1239, 16
      %v1308 = vpop.permute.xlu0 %1307
      %1309 = vrot.lane.b32.xlu0 %v1240, 16
      %v1310 = vpop.permute.xlu0 %1309
      %1311 = vrot.lane.b32.xlu0 %v1241, 16
      %v1312 = vpop.permute.xlu0 %1311
      %1313 = vrot.lane.b32.xlu0 %v1242, 16
      %v1314 = vpop.permute.xlu0 %1313
      %1315 = vrot.lane.b32.xlu0 %v1243, 16
      %v1316 = vpop.permute.xlu0 %1315
      %1317 = vrot.lane.b32.xlu0 %v1244, 16
      %v1318 = vpop.permute.xlu0 %1317
      %1319 = vrot.lane.b32.xlu0 %v1245, 16
      %v1320 = vpop.permute.xlu0 %1319
      %1321 = vrot.lane.b32.xlu0 %v1246, 16
      %v1322 = vpop.permute.xlu0 %1321
      %1323 = vrot.lane.b32.xlu0 %v1247, 16
      %v1324 = vpop.permute.xlu0 %1323
      %1325 = vrot.lane.b32.xlu0 %v1248, 16
      %v1326 = vpop.permute.xlu0 %1325
      %1327 = vrot.lane.b32.xlu0 %v1249, 16
      %v1328 = vpop.permute.xlu0 %1327
      %1329 = vrot.lane.b32.xlu0 %v1250, 16
      %v1330 = vpop.permute.xlu0 %1329
      %1331 = vrot.lane.b32.xlu0 %v1251, 16
      %v1332 = vpop.permute.xlu0 %1331
      %1333 = vrot.lane.b32.xlu0 %v1252, 16
      %v1334 = vpop.permute.xlu0 %1333
      %1335 = vrot.lane.b32.xlu0 %v1253, 16
      %v1336 = vpop.permute.xlu0 %1335
      %1337 = vrot.lane.b32.xlu0 %v1254, 16
      %v1338 = vpop.permute.xlu0 %1337
      %1339 = vrot.lane.b32.xlu0 %v1255, 16
      %v1340 = vpop.permute.xlu0 %1339
      %1341 = vrot.lane.b32.xlu0 %v1256, 16
      %v1342 = vpop.permute.xlu0 %1341
      %1343 = vrot.lane.b32.xlu0 %v1257, 16
      %v1344 = vpop.permute.xlu0 %1343
      %1345 = vrot.lane.b32.xlu0 %v1258, 16
      %v1346 = vpop.permute.xlu0 %1345
      %1347 = vrot.lane.b32.xlu0 %v1259, 16
      %v1348 = vpop.permute.xlu0 %1347
      %1349 = vrot.lane.b32.xlu0 %v1260, 16
      %v1350 = vpop.permute.xlu0 %1349
      %1351 = vrot.lane.b32.xlu0 %v1261, 16
      %v1352 = vpop.permute.xlu0 %1351
      %1353 = vrot.lane.b32.xlu0 %v1262, 16
      %v1354 = vpop.permute.xlu0 %1353
      %1355 = vrot.lane.b32.xlu0 %v1263, 16
      %v1356 = vpop.permute.xlu0 %1355
      %1357 = vrot.lane.b32.xlu0 %v1264, 16
      %v1358 = vpop.permute.xlu0 %1357
      %1359 = vrot.lane.b32.xlu0 %v1265, 16
      %v1360 = vpop.permute.xlu0 %1359
      %1361 = vrot.lane.b32.xlu0 %v1266, 16
      %v1362 = vpop.permute.xlu0 %1361
      %1395 = vst.msk [vmem:[#allocation2 + $0x17] sm:$0xff] %vm1112, %v1300
      %1396 = vst.msk [vmem:[#allocation2 + $0x1f] sm:$0xff] %vm1112, %v1302
      %1397 = vst.msk [vmem:[#allocation2 + $0x27] sm:$0xff] %vm1112, %v1304
      %1398 = vst.msk [vmem:[#allocation2 + $0x2f] sm:$0xff] %vm1112, %v1306
      %1399 = vst.msk [vmem:[#allocation2 + $0x37] sm:$0xff] %vm1112, %v1308
      %1400 = vst.msk [vmem:[#allocation2 + $0x3f] sm:$0xff] %vm1112, %v1310
      %1401 = vst.msk [vmem:[#allocation2 + $0x47] sm:$0xff] %vm1112, %v1312
      %1402 = vst.msk [vmem:[#allocation2 + $0x4f] sm:$0xff] %vm1112, %v1314
      %1403 = vst.msk [vmem:[#allocation2 + $0x57] sm:$0xff] %vm1112, %v1316
      %1404 = vst.msk [vmem:[#allocation2 + $0x5f] sm:$0xff] %vm1112, %v1318
      %1405 = vst.msk [vmem:[#allocation2 + $0x67] sm:$0xff] %vm1112, %v1320
      %1406 = vst.msk [vmem:[#allocation2 + $0x6f] sm:$0xff] %vm1112, %v1322
      %1407 = vst.msk [vmem:[#allocation2 + $0x77] sm:$0xff] %vm1112, %v1324
      %1408 = vst.msk [vmem:[#allocation2 + $0x7f] sm:$0xff] %vm1112, %v1326
      %1409 = vst.msk [vmem:[#allocation2 + $0x87] sm:$0xff] %vm1112, %v1328
      %1410 = vst.msk [vmem:[#allocation2 + $0x8f] sm:$0xff] %vm1112, %v1330
      %1411 = vst.msk [vmem:[#allocation2 + $0x97] sm:$0xff] %vm1112, %v1332
      %1412 = vst.msk [vmem:[#allocation2 + $0x9f] sm:$0xff] %vm1112, %v1334
      %1413 = vst.msk [vmem:[#allocation2 + $0xa7] sm:$0xff] %vm1112, %v1336
      %1414 = vst.msk [vmem:[#allocation2 + $0xaf] sm:$0xff] %vm1112, %v1338
      %1415 = vst.msk [vmem:[#allocation2 + $0xb7] sm:$0xff] %vm1112, %v1340
      %1416 = vst.msk [vmem:[#allocation2 + $0xbf] sm:$0xff] %vm1112, %v1342
      %1417 = vst.msk [vmem:[#allocation2 + $0xc7] sm:$0xff] %vm1112, %v1344
      %1418 = vst.msk [vmem:[#allocation2 + $0xcf] sm:$0xff] %vm1112, %v1346
      %1419 = vst.msk [vmem:[#allocation2 + $0xd7] sm:$0xff] %vm1112, %v1348
      %1420 = vst.msk [vmem:[#allocation2 + $0xdf] sm:$0xff] %vm1112, %v1350
      %1421 = vst.msk [vmem:[#allocation2 + $0xe7] sm:$0xff] %vm1112, %v1352
      %1422 = vst.msk [vmem:[#allocation2 + $0xef] sm:$0xff] %vm1112, %v1354
      %1423 = vst.msk [vmem:[#allocation2 + $0xf7] sm:$0xff] %vm1112, %v1356
      %1424 = vst.msk [vmem:[#allocation2 + $0xff] sm:$0xff] %vm1112, %v1358
      %1425 = vst.msk [vmem:[#allocation2 + $0x107] sm:$0xff] %vm1112, %v1360
      %1426 = vst.msk [vmem:[#allocation2 + $0x10f] sm:$0xff] %vm1112, %v1362
      %v1427 = vmul.f32 %v643, %v1096
      %v1428 = vmul.f32 %v644, %v1100
      %1431 = vrot.lane.b32.xlu0 %v1427, 16
      %v1432 = vpop.permute.xlu0 %1431
      %1433 = vrot.lane.b32.xlu0 %v1428, 16
      %v1434 = vpop.permute.xlu0 %1433
      %1437 = vst.msk [vmem:[#allocation2 + $0x117] sm:$0xff] %vm1112, %v1432
      %1438 = vst.msk [vmem:[#allocation2 + $0x11f] sm:$0xff] %vm1112, %v1434
      %v1439 = vld [vmem:[#allocation2 + $0x8] sm:$0xff]
      %v1440 = vld [vmem:[#allocation2 + $0x10] sm:$0xff]
      %v1441 = vld [vmem:[#allocation2 + $0x18] sm:$0xff]
      %v1442 = vld [vmem:[#allocation2 + $0x20] sm:$0xff]
      %v1443 = vld [vmem:[#allocation2 + $0x28] sm:$0xff]
      %v1444 = vld [vmem:[#allocation2 + $0x30] sm:$0xff]
      %v1445 = vld [vmem:[#allocation2 + $0x38] sm:$0xff]
      %v1446 = vld [vmem:[#allocation2 + $0x40] sm:$0xff]
      %v1447 = vld [vmem:[#allocation2 + $0x48] sm:$0xff]
      %v1448 = vld [vmem:[#allocation2 + $0x50] sm:$0xff]
      %v1449 = vld [vmem:[#allocation2 + $0x58] sm:$0xff]
      %v1450 = vld [vmem:[#allocation2 + $0x60] sm:$0xff]
      %v1451 = vld [vmem:[#allocation2 + $0x68] sm:$0xff]
      %v1452 = vld [vmem:[#allocation2 + $0x70] sm:$0xff]
      %v1453 = vld [vmem:[#allocation2 + $0x78] sm:$0xff]
      %v1454 = vld [vmem:[#allocation2 + $0x80] sm:$0xff]
      %v1455 = vld [vmem:[#allocation2 + $0x88] sm:$0xff]
      %v1456 = vld [vmem:[#allocation2 + $0x90] sm:$0xff]
      %v1457 = vld [vmem:[#allocation2 + $0x98] sm:$0xff]
      %v1458 = vld [vmem:[#allocation2 + $0xa0] sm:$0xff]
      %v1459 = vld [vmem:[#allocation2 + $0xa8] sm:$0xff]
      %v1460 = vld [vmem:[#allocation2 + $0xb0] sm:$0xff]
      %v1461 = vld [vmem:[#allocation2 + $0xb8] sm:$0xff]
      %v1462 = vld [vmem:[#allocation2 + $0xc0] sm:$0xff]
      %v1463 = vld [vmem:[#allocation2 + $0xc8] sm:$0xff]
      %v1464 = vld [vmem:[#allocation2 + $0xd0] sm:$0xff]
      %v1465 = vld [vmem:[#allocation2 + $0xd8] sm:$0xff]
      %v1466 = vld [vmem:[#allocation2 + $0xe0] sm:$0xff]
      %v1467 = vld [vmem:[#allocation2 + $0xe8] sm:$0xff]
      %v1468 = vld [vmem:[#allocation2 + $0xf0] sm:$0xff]
      %v1469 = vld [vmem:[#allocation2 + $0xf8] sm:$0xff]
      %v1470 = vld [vmem:[#allocation2 + $0x100] sm:$0xff]
      %v1471 = vld [vmem:[%s6] sm:$0xff]
      %v1472 = vld [vmem:[%s6 + $0x8] sm:$0xff]
      %v1473 = vld [vmem:[%s6 + $0x10] sm:$0xff]
      %v1474 = vld [vmem:[#allocation2 + $0x108] sm:$0xff]
      %v1475 = vld [vmem:[#allocation2 + $0x110] sm:$0xff]
      %s1476 = scalar_lea.vmem %s6, 24
      %v1477 = vld [vmem:[%s1476] sm:$0xff]
      %v1478 = vld [vmem:[%s1476 + $0x8] sm:$0xff]
      %v1479 = vld [vmem:[%s1476 + $0x10] sm:$0xff]
      %vm1480 = vcmask 195584
      %v1482 = vsel %vm1480, %v1441, 0
      %v1485 = vsel %vm1480, %v1442, 0
      %v1488 = vsel %vm1480, %v1443, 0
      %v1491 = vsel %vm1480, %v1444, 0
      %v1494 = vsel %vm1480, %v1445, 0
      %v1497 = vsel %vm1480, %v1446, 0
      %v1500 = vsel %vm1480, %v1447, 0
      %v1503 = vsel %vm1480, %v1448, 0
      %v1506 = vsel %vm1480, %v1449, 0
      %v1509 = vsel %vm1480, %v1450, 0
      %v1512 = vsel %vm1480, %v1451, 0
      %v1515 = vsel %vm1480, %v1452, 0
      %v1518 = vsel %vm1480, %v1453, 0
      %v1521 = vsel %vm1480, %v1454, 0
      %v1524 = vsel %vm1480, %v1455, 0
      %v1527 = vsel %vm1480, %v1456, 0
      %v1530 = vsel %vm1480, %v1457, 0
      %v1533 = vsel %vm1480, %v1458, 0
      %v1536 = vsel %vm1480, %v1459, 0
      %v1539 = vsel %vm1480, %v1460, 0
      %v1542 = vsel %vm1480, %v1461, 0
      %v1545 = vsel %vm1480, %v1462, 0
      %v1548 = vsel %vm1480, %v1463, 0
      %v1551 = vsel %vm1480, %v1464, 0
      %v1554 = vsel %vm1480, %v1465, 0
      %v1557 = vsel %vm1480, %v1466, 0
      %v1560 = vsel %vm1480, %v1467, 0
      %v1563 = vsel %vm1480, %v1468, 0
      %v1566 = vsel %vm1480, %v1469, 0
      %v1569 = vsel %vm1480, %v1470, 0
      %v1572 = vsel %vm1480, %v1474, 0
      %v1575 = vsel %vm1480, %v1475, 0
      %1577 = vmatprep.subr.mxu0 0.0
      %1578 = vmatpush1.msra.mxu0 %v1477
      %1579 = vmatprep.subr.mxu0 0.0
      %1580 = vmatpush1.msra.mxu0 %v1478
      %1581 = vmatprep.subr.mxu0 0.0
      %1582 = vmatpush1.msra.mxu0 %v1479
      %1583 = vmatprep.subr.mxu0 0.0
      %1584 = vmatpush1.msra.mxu0 0.0
      %1585 = vmatprep.subr.mxu0 0.0
      %1586 = vmatpush1.msra.mxu0 0.0
      %1587 = vmatprep.subr.mxu0 0.0
      %1588 = vmatpush1.msra.mxu0 0.0
      %1589 = vmatprep.subr.mxu0 0.0
      %1590 = vmatpush1.msra.mxu0 0.0
      %1591 = vmatprep.subr.mxu0 0.0
      %1592 = vmatpush1.msra.mxu0 0.0
      %1593 = vmatprep.subr.mxu0 0.0
      %1594 = vmatpush1.msra.mxu0 0.0
      %1595 = vmatprep.subr.mxu0 0.0
      %1596 = vmatpush1.msra.mxu0 0.0
      %1597 = vmatprep.subr.mxu0 0.0
      %1598 = vmatpush1.msra.mxu0 0.0
      %1599 = vmatprep.subr.mxu0 0.0
      %1600 = vmatpush1.msra.mxu0 0.0
      %1601 = vmatprep.subr.mxu0 0.0
      %1602 = vmatpush1.msra.mxu0 0.0
      %1603 = vmatprep.subr.mxu0 0.0
      %1604 = vmatpush1.msra.mxu0 0.0
      %1605 = vmatprep.subr.mxu0 0.0
      %1606 = vmatpush1.msra.mxu0 0.0
      %1607 = vmatprep.subr.mxu0 0.0
      %1608 = vmatpush1.msra.mxu0 0.0
      %1609 = vmatprep.subr.mxu0 0.0
      %1610 = vmatpush1.msra.mxu0 0.0
      %1611 = vmatprep.subr.mxu0 0.0
      %1612 = vmatpush1.msra.mxu0 0.0
      %1613 = vmatprep.subr.mxu0 0.0
      %1614 = vmatpush1.msra.mxu0 0.0
      %1615 = vmatprep.subr.mxu0 0.0
      %1616 = vmatpush1.msra.mxu0 0.0
      %1617 = vmatprep.subr.mxu0 0.0
      %1618 = vmatpush1.msra.mxu0 0.0
      %1619 = vmatprep.subr.mxu0 0.0
      %1620 = vmatpush1.msra.mxu0 0.0
      %1621 = vmatprep.subr.mxu0 0.0
      %1622 = vmatpush1.msra.mxu0 0.0
      %1623 = vmatprep.subr.mxu0 0.0
      %1624 = vmatpush1.msra.mxu0 0.0
      %1625 = vmatprep.subr.mxu0 0.0
      %1626 = vmatpush1.msra.mxu0 0.0
      %1627 = vmatprep.subr.mxu0 0.0
      %1628 = vmatpush1.msra.mxu0 0.0
      %1629 = vmatprep.subr.mxu0 0.0
      %1630 = vmatpush1.msra.mxu0 0.0
      %1631 = vmatprep.subr.mxu0 0.0
      %1632 = vmatpush1.msra.mxu0 0.0
      %1633 = vmatprep.subr.mxu0 0.0
      %1634 = vmatpush1.msra.mxu0 0.0
      %1635 = vmatprep.subr.mxu0 0.0
      %1636 = vmatpush1.msra.mxu0 0.0
      %1637 = vmatprep.subr.mxu0 0.0
      %1638 = vmatpush1.msra.mxu0 0.0
      %1639 = vmatprep.subr.mxu0 0.0
      %1640 = vmatpush1.msra.mxu0 0.0
      %1641 = vmatprep.mubr.f32.mxu0 0.0
      %1642 = vmatmul.mubr.f32.gmra.mrb[0].mxu0 %v1482
      %v1643 = vpop.f32.mrb[0].mxu0
      %v1644 = vadd.f32 0.0, %v1643
      %v1645 = vpop.f32.mrb[0].mxu0
      %1646 = vmatprep.mubr.f32.mxu0 0.0
      %1647 = vmatmul.mubr.f32.gmra.mrb[0].mxu0 %v1485
      %v1648 = vpop.f32.mrb[0].mxu0
      %v1649 = vadd.f32 0.0, %v1648
      %v1650 = vpop.f32.mrb[0].mxu0
      %1651 = vmatprep.mubr.f32.mxu0 0.0
      %1652 = vmatmul.mubr.f32.gmra.mrb[0].mxu0 %v1488
      %v1653 = vpop.f32.mrb[0].mxu0
      %v1654 = vadd.f32 0.0, %v1653
      %v1655 = vpop.f32.mrb[0].mxu0
      %1656 = vmatprep.mubr.f32.mxu0 0.0
      %1657 = vmatmul.mubr.f32.gmra.mrb[0].mxu0 %v1491
      %v1658 = vpop.f32.mrb[0].mxu0
      %v1659 = vadd.f32 0.0, %v1658
      %v1660 = vpop.f32.mrb[0].mxu0
      %1661 = vmatprep.mubr.f32.mxu0 0.0
      %1662 = vmatmul.mubr.f32.gmra.mrb[0].mxu0 %v1494
      %v1663 = vpop.f32.mrb[0].mxu0
      %v1664 = vadd.f32 0.0, %v1663
      %v1665 = vpop.f32.mrb[0].mxu0
      %1666 = vmatprep.mubr.f32.mxu0 0.0
      %1667 = vmatmul.mubr.f32.gmra.mrb[0].mxu0 %v1497
      %v1668 = vpop.f32.mrb[0].mxu0
      %v1669 = vadd.f32 0.0, %v1668
      %v1670 = vpop.f32.mrb[0].mxu0
      %1671 = vmatprep.mubr.f32.mxu0 0.0
      %1672 = vmatmul.mubr.f32.gmra.mrb[0].mxu0 %v1500
      %v1673 = vpop.f32.mrb[0].mxu0
      %v1674 = vadd.f32 0.0, %v1673
      %v1675 = vpop.f32.mrb[0].mxu0
      %1676 = vmatprep.mubr.f32.mxu0 0.0
      %1677 = vmatmul.mubr.f32.gmra.mrb[0].mxu0 %v1503
      %v1678 = vpop.f32.mrb[0].mxu0
      %v1679 = vadd.f32 0.0, %v1678
      %v1680 = vpop.f32.mrb[0].mxu0
      %1681 = vmatprep.mubr.f32.mxu0 0.0
      %1682 = vmatmul.mubr.f32.gmra.mrb[0].mxu0 %v1506
      %v1683 = vpop.f32.mrb[0].mxu0
      %v1684 = vadd.f32 0.0, %v1683
      %v1685 = vpop.f32.mrb[0].mxu0
      %1686 = vmatprep.mubr.f32.mxu0 0.0
      %1687 = vmatmul.mubr.f32.gmra.mrb[0].mxu0 %v1509
      %v1688 = vpop.f32.mrb[0].mxu0
      %v1689 = vadd.f32 0.0, %v1688
      %v1690 = vpop.f32.mrb[0].mxu0
      %1691 = vmatprep.mubr.f32.mxu0 0.0
      %1692 = vmatmul.mubr.f32.gmra.mrb[0].mxu0 %v1512
      %v1693 = vpop.f32.mrb[0].mxu0
      %v1694 = vadd.f32 0.0, %v1693
      %v1695 = vpop.f32.mrb[0].mxu0
      %1696 = vmatprep.mubr.f32.mxu0 0.0
      %1697 = vmatmul.mubr.f32.gmra.mrb[0].mxu0 %v1515
      %v1698 = vpop.f32.mrb[0].mxu0
      %v1699 = vadd.f32 0.0, %v1698
      %v1700 = vpop.f32.mrb[0].mxu0
      %1701 = vmatprep.mubr.f32.mxu0 0.0
      %1702 = vmatmul.mubr.f32.gmra.mrb[0].mxu0 %v1518
      %v1703 = vpop.f32.mrb[0].mxu0
      %v1704 = vadd.f32 0.0, %v1703
      %v1705 = vpop.f32.mrb[0].mxu0
      %1706 = vmatprep.mubr.f32.mxu0 0.0
      %1707 = vmatmul.mubr.f32.gmra.mrb[0].mxu0 %v1521
      %v1708 = vpop.f32.mrb[0].mxu0
      %v1709 = vadd.f32 0.0, %v1708
      %v1710 = vpop.f32.mrb[0].mxu0
      %1711 = vmatprep.mubr.f32.mxu0 0.0
      %1712 = vmatmul.mubr.f32.gmra.mrb[0].mxu0 %v1524
      %v1713 = vpop.f32.mrb[0].mxu0
      %v1714 = vadd.f32 0.0, %v1713
      %v1715 = vpop.f32.mrb[0].mxu0
      %1716 = vmatprep.mubr.f32.mxu0 0.0
      %1717 = vmatmul.mubr.f32.gmra.mrb[0].mxu0 %v1527
      %v1718 = vpop.f32.mrb[0].mxu0
      %v1719 = vadd.f32 0.0, %v1718
      %v1720 = vpop.f32.mrb[0].mxu0
      %1721 = vmatprep.mubr.f32.mxu0 0.0
      %1722 = vmatmul.mubr.f32.gmra.mrb[0].mxu0 %v1530
      %v1723 = vpop.f32.mrb[0].mxu0
      %v1724 = vadd.f32 0.0, %v1723
      %v1725 = vpop.f32.mrb[0].mxu0
      %1726 = vmatprep.mubr.f32.mxu0 0.0
      %1727 = vmatmul.mubr.f32.gmra.mrb[0].mxu0 %v1533
      %v1728 = vpop.f32.mrb[0].mxu0
      %v1729 = vadd.f32 0.0, %v1728
      %v1730 = vpop.f32.mrb[0].mxu0
      %1731 = vmatprep.mubr.f32.mxu0 0.0
      %1732 = vmatmul.mubr.f32.gmra.mrb[0].mxu0 %v1536
      %v1733 = vpop.f32.mrb[0].mxu0
      %v1734 = vadd.f32 0.0, %v1733
      %v1735 = vpop.f32.mrb[0].mxu0
      %1736 = vmatprep.mubr.f32.mxu0 0.0
      %1737 = vmatmul.mubr.f32.gmra.mrb[0].mxu0 %v1539
      %v1738 = vpop.f32.mrb[0].mxu0
      %v1739 = vadd.f32 0.0, %v1738
      %v1740 = vpop.f32.mrb[0].mxu0
      %1741 = vmatprep.mubr.f32.mxu0 0.0
      %1742 = vmatmul.mubr.f32.gmra.mrb[0].mxu0 %v1542
      %v1743 = vpop.f32.mrb[0].mxu0
      %v1744 = vadd.f32 0.0, %v1743
      %v1745 = vpop.f32.mrb[0].mxu0
      %1746 = vmatprep.mubr.f32.mxu0 0.0
      %1747 = vmatmul.mubr.f32.gmra.mrb[0].mxu0 %v1545
      %v1748 = vpop.f32.mrb[0].mxu0
      %v1749 = vadd.f32 0.0, %v1748
      %v1750 = vpop.f32.mrb[0].mxu0
      %1751 = vmatprep.mubr.f32.mxu0 0.0
      %1752 = vmatmul.mubr.f32.gmra.mrb[0].mxu0 %v1548
      %v1753 = vpop.f32.mrb[0].mxu0
      %v1754 = vadd.f32 0.0, %v1753
      %v1755 = vpop.f32.mrb[0].mxu0
      %1756 = vmatprep.mubr.f32.mxu0 0.0
      %1757 = vmatmul.mubr.f32.gmra.mrb[0].mxu0 %v1551
      %v1758 = vpop.f32.mrb[0].mxu0
      %v1759 = vadd.f32 0.0, %v1758
      %v1760 = vpop.f32.mrb[0].mxu0
      %1761 = vmatprep.mubr.f32.mxu0 0.0
      %1762 = vmatmul.mubr.f32.gmra.mrb[0].mxu0 %v1554
      %v1763 = vpop.f32.mrb[0].mxu0
      %v1764 = vadd.f32 0.0, %v1763
      %v1765 = vpop.f32.mrb[0].mxu0
      %1766 = vmatprep.mubr.f32.mxu0 0.0
      %1767 = vmatmul.mubr.f32.gmra.mrb[0].mxu0 %v1557
      %v1768 = vpop.f32.mrb[0].mxu0
      %v1769 = vadd.f32 0.0, %v1768
      %v1770 = vpop.f32.mrb[0].mxu0
      %1771 = vmatprep.mubr.f32.mxu0 0.0
      %1772 = vmatmul.mubr.f32.gmra.mrb[0].mxu0 %v1560
      %v1773 = vpop.f32.mrb[0].mxu0
      %v1774 = vadd.f32 0.0, %v1773
      %v1775 = vpop.f32.mrb[0].mxu0
      %1776 = vmatprep.mubr.f32.mxu0 0.0
      %1777 = vmatmul.mubr.f32.gmra.mrb[0].mxu0 %v1563
      %v1778 = vpop.f32.mrb[0].mxu0
      %v1779 = vadd.f32 0.0, %v1778
      %v1780 = vpop.f32.mrb[0].mxu0
      %1781 = vmatprep.mubr.f32.mxu0 0.0
      %1782 = vmatmul.mubr.f32.gmra.mrb[0].mxu0 %v1566
      %v1783 = vpop.f32.mrb[0].mxu0
      %v1784 = vadd.f32 0.0, %v1783
      %v1785 = vpop.f32.mrb[0].mxu0
      %1786 = vmatprep.mubr.f32.mxu0 0.0
      %1787 = vmatmul.mubr.f32.gmra.mrb[0].mxu0 %v1569
      %v1788 = vpop.f32.mrb[0].mxu0
      %v1789 = vadd.f32 0.0, %v1788
      %v1790 = vpop.f32.mrb[0].mxu0
      %1791 = vmatprep.mubr.f32.mxu0 0.0
      %1792 = vmatmul.mubr.f32.gmra.mrb[0].mxu0 %v1572
      %v1793 = vpop.f32.mrb[0].mxu0
      %v1794 = vadd.f32 0.0, %v1793
      %v1795 = vpop.f32.mrb[0].mxu0
      %1796 = vmatprep.mubr.f32.mxu0 0.0
      %1797 = vmatmul.mubr.f32.gmra.mrb[0].mxu0 %v1575
      %v1798 = vpop.f32.mrb[0].mxu0
      %v1799 = vadd.f32 0.0, %v1798
      %v1800 = vpop.f32.mrb[0].mxu0
      %1801 = vdwg.mxu0
      %v1803 = vsel %vm1480, %v1439, 0
      %v1806 = vsel %vm1480, %v1440, 0
      %1808 = vmatprep.subr.mxu0 0.0
      %1809 = vmatpush1.msra.mxu0 %v1471
      %1810 = vmatprep.subr.mxu0 0.0
      %1811 = vmatpush1.msra.mxu0 %v1472
      %1812 = vmatprep.subr.mxu0 0.0
      %1813 = vmatpush1.msra.mxu0 %v1473
      %1814 = vmatprep.subr.mxu0 0.0
      %1815 = vmatpush1.msra.mxu0 0.0
      %1816 = vmatprep.subr.mxu0 0.0
      %1817 = vmatpush1.msra.mxu0 0.0
      %1818 = vmatprep.subr.mxu0 0.0
      %1819 = vmatpush1.msra.mxu0 0.0
      %1820 = vmatprep.subr.mxu0 0.0
      %1821 = vmatpush1.msra.mxu0 0.0
      %1822 = vmatprep.subr.mxu0 0.0
      %1823 = vmatpush1.msra.mxu0 0.0
      %1824 = vmatprep.subr.mxu0 0.0
      %1825 = vmatpush1.msra.mxu0 0.0
      %1826 = vmatprep.subr.mxu0 0.0
      %1827 = vmatpush1.msra.mxu0 0.0
      %1828 = vmatprep.subr.mxu0 0.0
      %1829 = vmatpush1.msra.mxu0 0.0
      %1830 = vmatprep.subr.mxu0 0.0
      %1831 = vmatpush1.msra.mxu0 0.0
      %1832 = vmatprep.subr.mxu0 0.0
      %1833 = vmatpush1.msra.mxu0 0.0
      %1834 = vmatprep.subr.mxu0 0.0
      %1835 = vmatpush1.msra.mxu0 0.0
      %1836 = vmatprep.subr.mxu0 0.0
      %1837 = vmatpush1.msra.mxu0 0.0
      %1838 = vmatprep.subr.mxu0 0.0
      %1839 = vmatpush1.msra.mxu0 0.0
      %1840 = vmatprep.subr.mxu0 0.0
      %1841 = vmatpush1.msra.mxu0 0.0
      %1842 = vmatprep.subr.mxu0 0.0
      %1843 = vmatpush1.msra.mxu0 0.0
      %1844 = vmatprep.subr.mxu0 0.0
      %1845 = vmatpush1.msra.mxu0 0.0
      %1846 = vmatprep.subr.mxu0 0.0
      %1847 = vmatpush1.msra.mxu0 0.0
      %1848 = vmatprep.subr.mxu0 0.0
      %1849 = vmatpush1.msra.mxu0 0.0
      %1850 = vmatprep.subr.mxu0 0.0
      %1851 = vmatpush1.msra.mxu0 0.0
      %1852 = vmatprep.subr.mxu0 0.0
      %1853 = vmatpush1.msra.mxu0 0.0
      %1854 = vmatprep.subr.mxu0 0.0
      %1855 = vmatpush1.msra.mxu0 0.0
      %1856 = vmatprep.subr.mxu0 0.0
      %1857 = vmatpush1.msra.mxu0 0.0
      %1858 = vmatprep.subr.mxu0 0.0
      %1859 = vmatpush1.msra.mxu0 0.0
      %1860 = vmatprep.subr.mxu0 0.0
      %1861 = vmatpush1.msra.mxu0 0.0
      %1862 = vmatprep.subr.mxu0 0.0
      %1863 = vmatpush1.msra.mxu0 0.0
      %1864 = vmatprep.subr.mxu0 0.0
      %1865 = vmatpush1.msra.mxu0 0.0
      %1866 = vmatprep.subr.mxu0 0.0
      %1867 = vmatpush1.msra.mxu0 0.0
      %1868 = vmatprep.subr.mxu0 0.0
      %1869 = vmatpush1.msra.mxu0 0.0
      %1870 = vmatprep.subr.mxu0 0.0
      %1871 = vmatpush1.msra.mxu0 0.0
      %1872 = vmatprep.mubr.f32.mxu0 0.0
      %1873 = vmatmul.mubr.f32.gmra.mrb[0].mxu0 %v1803
      %v1874 = vpop.f32.mrb[0].mxu0
      %v1875 = vadd.f32 %v1644, %v1874
      %v1876 = vpop.f32.mrb[0].mxu0
      %1877 = vmatprep.mubr.f32.mxu0 0.0
      %1878 = vmatmul.mubr.f32.gmra.mrb[0].mxu0 %v1806
      %v1879 = vpop.f32.mrb[0].mxu0
      %v1880 = vadd.f32 %v1649, %v1879
      %v1881 = vpop.f32.mrb[0].mxu0
      %1882 = vmatprep.mubr.f32.mxu0 0.0
      %1883 = vmatmul.mubr.f32.gmra.mrb[0].mxu0 %v1482
      %v1884 = vpop.f32.mrb[0].mxu0
      %v1885 = vadd.f32 %v1654, %v1884
      %v1886 = vpop.f32.mrb[0].mxu0
      %1887 = vmatprep.mubr.f32.mxu0 0.0
      %1888 = vmatmul.mubr.f32.gmra.mrb[0].mxu0 %v1485
      %v1889 = vpop.f32.mrb[0].mxu0
      %v1890 = vadd.f32 %v1659, %v1889
      %v1891 = vpop.f32.mrb[0].mxu0
      %1892 = vmatprep.mubr.f32.mxu0 0.0
      %1893 = vmatmul.mubr.f32.gmra.mrb[0].mxu0 %v1488
      %v1894 = vpop.f32.mrb[0].mxu0
      %v1895 = vadd.f32 %v1664, %v1894
      %v1896 = vpop.f32.mrb[0].mxu0
      %1897 = vmatprep.mubr.f32.mxu0 0.0
      %1898 = vmatmul.mubr.f32.gmra.mrb[0].mxu0 %v1491
      %v1899 = vpop.f32.mrb[0].mxu0
      %v1900 = vadd.f32 %v1669, %v1899
      %v1901 = vpop.f32.mrb[0].mxu0
      %1902 = vmatprep.mubr.f32.mxu0 0.0
      %1903 = vmatmul.mubr.f32.gmra.mrb[0].mxu0 %v1494
      %v1904 = vpop.f32.mrb[0].mxu0
      %v1905 = vadd.f32 %v1674, %v1904
      %v1906 = vpop.f32.mrb[0].mxu0
      %1907 = vmatprep.mubr.f32.mxu0 0.0
      %1908 = vmatmul.mubr.f32.gmra.mrb[0].mxu0 %v1497
      %v1909 = vpop.f32.mrb[0].mxu0
      %v1910 = vadd.f32 %v1679, %v1909
      %v1911 = vpop.f32.mrb[0].mxu0
      %1912 = vmatprep.mubr.f32.mxu0 0.0
      %1913 = vmatmul.mubr.f32.gmra.mrb[0].mxu0 %v1500
      %v1914 = vpop.f32.mrb[0].mxu0
      %v1915 = vadd.f32 %v1684, %v1914
      %v1916 = vpop.f32.mrb[0].mxu0
      %1917 = vmatprep.mubr.f32.mxu0 0.0
      %1918 = vmatmul.mubr.f32.gmra.mrb[0].mxu0 %v1503
      %v1919 = vpop.f32.mrb[0].mxu0
      %v1920 = vadd.f32 %v1689, %v1919
      %v1921 = vpop.f32.mrb[0].mxu0
      %1922 = vmatprep.mubr.f32.mxu0 0.0
      %1923 = vmatmul.mubr.f32.gmra.mrb[0].mxu0 %v1506
      %v1924 = vpop.f32.mrb[0].mxu0
      %v1925 = vadd.f32 %v1694, %v1924
      %v1926 = vpop.f32.mrb[0].mxu0
      %1927 = vmatprep.mubr.f32.mxu0 0.0
      %1928 = vmatmul.mubr.f32.gmra.mrb[0].mxu0 %v1509
      %v1929 = vpop.f32.mrb[0].mxu0
      %v1930 = vadd.f32 %v1699, %v1929
      %v1931 = vpop.f32.mrb[0].mxu0
      %1932 = vmatprep.mubr.f32.mxu0 0.0
      %1933 = vmatmul.mubr.f32.gmra.mrb[0].mxu0 %v1512
      %v1934 = vpop.f32.mrb[0].mxu0
      %v1935 = vadd.f32 %v1704, %v1934
      %v1936 = vpop.f32.mrb[0].mxu0
      %1937 = vmatprep.mubr.f32.mxu0 0.0
      %1938 = vmatmul.mubr.f32.gmra.mrb[0].mxu0 %v1515
      %v1939 = vpop.f32.mrb[0].mxu0
      %v1940 = vadd.f32 %v1709, %v1939
      %v1941 = vpop.f32.mrb[0].mxu0
      %1942 = vmatprep.mubr.f32.mxu0 0.0
      %1943 = vmatmul.mubr.f32.gmra.mrb[0].mxu0 %v1518
      %v1944 = vpop.f32.mrb[0].mxu0
      %v1945 = vadd.f32 %v1714, %v1944
      %v1946 = vpop.f32.mrb[0].mxu0
      %1947 = vmatprep.mubr.f32.mxu0 0.0
      %1948 = vmatmul.mubr.f32.gmra.mrb[0].mxu0 %v1521
      %v1949 = vpop.f32.mrb[0].mxu0
      %v1950 = vadd.f32 %v1719, %v1949
      %v1951 = vpop.f32.mrb[0].mxu0
      %1952 = vmatprep.mubr.f32.mxu0 0.0
      %1953 = vmatmul.mubr.f32.gmra.mrb[0].mxu0 %v1524
      %v1954 = vpop.f32.mrb[0].mxu0
      %v1955 = vadd.f32 %v1724, %v1954
      %v1956 = vpop.f32.mrb[0].mxu0
      %1957 = vmatprep.mubr.f32.mxu0 0.0
      %1958 = vmatmul.mubr.f32.gmra.mrb[0].mxu0 %v1527
      %v1959 = vpop.f32.mrb[0].mxu0
      %v1960 = vadd.f32 %v1729, %v1959
      %v1961 = vpop.f32.mrb[0].mxu0
      %1962 = vmatprep.mubr.f32.mxu0 0.0
      %1963 = vmatmul.mubr.f32.gmra.mrb[0].mxu0 %v1530
      %v1964 = vpop.f32.mrb[0].mxu0
      %v1965 = vadd.f32 %v1734, %v1964
      %v1966 = vpop.f32.mrb[0].mxu0
      %1967 = vmatprep.mubr.f32.mxu0 0.0
      %1968 = vmatmul.mubr.f32.gmra.mrb[0].mxu0 %v1533
      %v1969 = vpop.f32.mrb[0].mxu0
      %v1970 = vadd.f32 %v1739, %v1969
      %v1971 = vpop.f32.mrb[0].mxu0
      %1972 = vmatprep.mubr.f32.mxu0 0.0
      %1973 = vmatmul.mubr.f32.gmra.mrb[0].mxu0 %v1536
      %v1974 = vpop.f32.mrb[0].mxu0
      %v1975 = vadd.f32 %v1744, %v1974
      %v1976 = vpop.f32.mrb[0].mxu0
      %1977 = vmatprep.mubr.f32.mxu0 0.0
      %1978 = vmatmul.mubr.f32.gmra.mrb[0].mxu0 %v1539
      %v1979 = vpop.f32.mrb[0].mxu0
      %v1980 = vadd.f32 %v1749, %v1979
      %v1981 = vpop.f32.mrb[0].mxu0
      %1982 = vmatprep.mubr.f32.mxu0 0.0
      %1983 = vmatmul.mubr.f32.gmra.mrb[0].mxu0 %v1542
      %v1984 = vpop.f32.mrb[0].mxu0
      %v1985 = vadd.f32 %v1754, %v1984
      %v1986 = vpop.f32.mrb[0].mxu0
      %1987 = vmatprep.mubr.f32.mxu0 0.0
      %1988 = vmatmul.mubr.f32.gmra.mrb[0].mxu0 %v1545
      %v1989 = vpop.f32.mrb[0].mxu0
      %v1990 = vadd.f32 %v1759, %v1989
      %v1991 = vpop.f32.mrb[0].mxu0
      %1992 = vmatprep.mubr.f32.mxu0 0.0
      %1993 = vmatmul.mubr.f32.gmra.mrb[0].mxu0 %v1548
      %v1994 = vpop.f32.mrb[0].mxu0
      %v1995 = vadd.f32 %v1764, %v1994
      %v1996 = vpop.f32.mrb[0].mxu0
      %1997 = vmatprep.mubr.f32.mxu0 0.0
      %1998 = vmatmul.mubr.f32.gmra.mrb[0].mxu0 %v1551
      %v1999 = vpop.f32.mrb[0].mxu0
      %v2000 = vadd.f32 %v1769, %v1999
      %v2001 = vpop.f32.mrb[0].mxu0
      %2002 = vmatprep.mubr.f32.mxu0 0.0
      %2003 = vmatmul.mubr.f32.gmra.mrb[0].mxu0 %v1554
      %v2004 = vpop.f32.mrb[0].mxu0
      %v2005 = vadd.f32 %v1774, %v2004
      %v2006 = vpop.f32.mrb[0].mxu0
      %2007 = vmatprep.mubr.f32.mxu0 0.0
      %2008 = vmatmul.mubr.f32.gmra.mrb[0].mxu0 %v1557
      %v2009 = vpop.f32.mrb[0].mxu0
      %v2010 = vadd.f32 %v1779, %v2009
      %v2011 = vpop.f32.mrb[0].mxu0
      %2012 = vmatprep.mubr.f32.mxu0 0.0
      %2013 = vmatmul.mubr.f32.gmra.mrb[0].mxu0 %v1560
      %v2014 = vpop.f32.mrb[0].mxu0
      %v2015 = vadd.f32 %v1784, %v2014
      %v2016 = vpop.f32.mrb[0].mxu0
      %2017 = vmatprep.mubr.f32.mxu0 0.0
      %2018 = vmatmul.mubr.f32.gmra.mrb[0].mxu0 %v1563
      %v2019 = vpop.f32.mrb[0].mxu0
      %v2020 = vadd.f32 %v1789, %v2019
      %v2021 = vpop.f32.mrb[0].mxu0
      %2022 = vmatprep.mubr.f32.mxu0 0.0
      %2023 = vmatmul.mubr.f32.gmra.mrb[0].mxu0 %v1566
      %v2024 = vpop.f32.mrb[0].mxu0
      %v2025 = vadd.f32 %v1794, %v2024
      %v2026 = vpop.f32.mrb[0].mxu0
      %2027 = vmatprep.mubr.f32.mxu0 0.0
      %2028 = vmatmul.mubr.f32.gmra.mrb[0].mxu0 %v1569
      %v2029 = vpop.f32.mrb[0].mxu0
      %v2030 = vadd.f32 %v1799, %v2029
      %v2031 = vpop.f32.mrb[0].mxu0
      %2032 = vdwg.mxu0
      %v2033 = vld [vmem:[#allocation2 + $0x28] sm:$0xff]
      %v2034 = vld [vmem:[#allocation2 + $0x30] sm:$0xff]
      %v2035 = vld [vmem:[#allocation2 + $0x38] sm:$0xff]
      %v2036 = vld [vmem:[#allocation2 + $0x40] sm:$0xff]
      %v2037 = vld [vmem:[#allocation2 + $0x48] sm:$0xff]
      %v2038 = vld [vmem:[#allocation2 + $0x50] sm:$0xff]
      %v2039 = vld [vmem:[#allocation2 + $0x58] sm:$0xff]
      %v2040 = vld [vmem:[#allocation2 + $0x60] sm:$0xff]
      %v2041 = vld [vmem:[#allocation2 + $0x68] sm:$0xff]
      %v2042 = vld [vmem:[#allocation2 + $0x70] sm:$0xff]
      %v2043 = vld [vmem:[#allocation2 + $0x78] sm:$0xff]
      %v2044 = vld [vmem:[#allocation2 + $0x80] sm:$0xff]
      %v2045 = vld [vmem:[#allocation2 + $0x88] sm:$0xff]
      %v2046 = vld [vmem:[#allocation2 + $0x90] sm:$0xff]
      %v2047 = vld [vmem:[#allocation2 + $0x98] sm:$0xff]
      %v2048 = vld [vmem:[#allocation2 + $0xa0] sm:$0xff]
      %v2049 = vld [vmem:[#allocation2 + $0xa8] sm:$0xff]
      %v2050 = vld [vmem:[#allocation2 + $0xb0] sm:$0xff]
      %v2051 = vld [vmem:[#allocation2 + $0xb8] sm:$0xff]
      %v2052 = vld [vmem:[#allocation2 + $0xc0] sm:$0xff]
      %v2053 = vld [vmem:[#allocation2 + $0xc8] sm:$0xff]
      %v2054 = vld [vmem:[#allocation2 + $0xd0] sm:$0xff]
      %v2055 = vld [vmem:[#allocation2 + $0xd8] sm:$0xff]
      %v2056 = vld [vmem:[#allocation2 + $0xe0] sm:$0xff]
      %v2057 = vld [vmem:[#allocation2 + $0xe8] sm:$0xff]
      %v2058 = vld [vmem:[#allocation2 + $0xf0] sm:$0xff]
      %v2059 = vld [vmem:[#allocation2 + $0xf8] sm:$0xff]
      %v2060 = vld [vmem:[#allocation2 + $0x100] sm:$0xff]
      %v2061 = vld [vmem:[#allocation2 + $0x108] sm:$0xff]
      %v2062 = vld [vmem:[#allocation2 + $0x110] sm:$0xff]
      %v2063 = vld [vmem:[#allocation2 + $0x118] sm:$0xff]
      %v2064 = vld [vmem:[#allocation2 + $0x120] sm:$0xff]
      %s2065 = scalar_lea.vmem %s6, 48
      %v2066 = vld [vmem:[%s2065] sm:$0xff]
      %v2067 = vld [vmem:[%s2065 + $0x8] sm:$0xff]
      %v2068 = vld [vmem:[%s2065 + $0x10] sm:$0xff]
      %v2070 = vsel %vm1480, %v2033, 0
      %v2073 = vsel %vm1480, %v2034, 0
      %v2076 = vsel %vm1480, %v2035, 0
      %v2079 = vsel %vm1480, %v2036, 0
      %v2082 = vsel %vm1480, %v2037, 0
      %v2085 = vsel %vm1480, %v2038, 0
      %v2088 = vsel %vm1480, %v2039, 0
      %v2091 = vsel %vm1480, %v2040, 0
      %v2094 = vsel %vm1480, %v2041, 0
      %v2097 = vsel %vm1480, %v2042, 0
      %v2100 = vsel %vm1480, %v2043, 0
      %v2103 = vsel %vm1480, %v2044, 0
      %v2106 = vsel %vm1480, %v2045, 0
      %v2109 = vsel %vm1480, %v2046, 0
      %v2112 = vsel %vm1480, %v2047, 0
      %v2115 = vsel %vm1480, %v2048, 0
      %v2118 = vsel %vm1480, %v2049, 0
      %v2121 = vsel %vm1480, %v2050, 0
      %v2124 = vsel %vm1480, %v2051, 0
      %v2127 = vsel %vm1480, %v2052, 0
      %v2130 = vsel %vm1480, %v2053, 0
      %v2133 = vsel %vm1480, %v2054, 0
      %v2136 = vsel %vm1480, %v2055, 0
      %v2139 = vsel %vm1480, %v2056, 0
      %v2142 = vsel %vm1480, %v2057, 0
      %v2145 = vsel %vm1480, %v2058, 0
      %v2148 = vsel %vm1480, %v2059, 0
      %v2151 = vsel %vm1480, %v2060, 0
      %v2154 = vsel %vm1480, %v2061, 0
      %v2157 = vsel %vm1480, %v2062, 0
      %v2160 = vsel %vm1480, %v2063, 0
      %v2163 = vsel %vm1480, %v2064, 0
      %2165 = vmatprep.subr.mxu0 0.0
      %2166 = vmatpush1.msra.mxu0 %v2066
      %2167 = vmatprep.subr.mxu0 0.0
      %2168 = vmatpush1.msra.mxu0 %v2067
      %2169 = vmatprep.subr.mxu0 0.0
      %2170 = vmatpush1.msra.mxu0 %v2068
      %2171 = vmatprep.subr.mxu0 0.0
      %2172 = vmatpush1.msra.mxu0 0.0
      %2173 = vmatprep.subr.mxu0 0.0
      %2174 = vmatpush1.msra.mxu0 0.0
      %2175 = vmatprep.subr.mxu0 0.0
      %2176 = vmatpush1.msra.mxu0 0.0
      %2177 = vmatprep.subr.mxu0 0.0
      %2178 = vmatpush1.msra.mxu0 0.0
      %2179 = vmatprep.subr.mxu0 0.0
      %2180 = vmatpush1.msra.mxu0 0.0
      %2181 = vmatprep.subr.mxu0 0.0
      %2182 = vmatpush1.msra.mxu0 0.0
      %2183 = vmatprep.subr.mxu0 0.0
      %2184 = vmatpush1.msra.mxu0 0.0
      %2185 = vmatprep.subr.mxu0 0.0
      %2186 = vmatpush1.msra.mxu0 0.0
      %2187 = vmatprep.subr.mxu0 0.0
      %2188 = vmatpush1.msra.mxu0 0.0
      %2189 = vmatprep.subr.mxu0 0.0
      %2190 = vmatpush1.msra.mxu0 0.0
      %2191 = vmatprep.subr.mxu0 0.0
      %2192 = vmatpush1.msra.mxu0 0.0
      %2193 = vmatprep.subr.mxu0 0.0
      %2194 = vmatpush1.msra.mxu0 0.0
      %2195 = vmatprep.subr.mxu0 0.0
      %2196 = vmatpush1.msra.mxu0 0.0
      %2197 = vmatprep.subr.mxu0 0.0
      %2198 = vmatpush1.msra.mxu0 0.0
      %2199 = vmatprep.subr.mxu0 0.0
      %2200 = vmatpush1.msra.mxu0 0.0
      %2201 = vmatprep.subr.mxu0 0.0
      %2202 = vmatpush1.msra.mxu0 0.0
      %2203 = vmatprep.subr.mxu0 0.0
      %2204 = vmatpush1.msra.mxu0 0.0
      %2205 = vmatprep.subr.mxu0 0.0
      %2206 = vmatpush1.msra.mxu0 0.0
      %2207 = vmatprep.subr.mxu0 0.0
      %2208 = vmatpush1.msra.mxu0 0.0
      %2209 = vmatprep.subr.mxu0 0.0
      %2210 = vmatpush1.msra.mxu0 0.0
      %2211 = vmatprep.subr.mxu0 0.0
      %2212 = vmatpush1.msra.mxu0 0.0
      %2213 = vmatprep.subr.mxu0 0.0
      %2214 = vmatpush1.msra.mxu0 0.0
      %2215 = vmatprep.subr.mxu0 0.0
      %2216 = vmatpush1.msra.mxu0 0.0
      %2217 = vmatprep.subr.mxu0 0.0
      %2218 = vmatpush1.msra.mxu0 0.0
      %2219 = vmatprep.subr.mxu0 0.0
      %2220 = vmatpush1.msra.mxu0 0.0
      %2221 = vmatprep.subr.mxu0 0.0
      %2222 = vmatpush1.msra.mxu0 0.0
      %2223 = vmatprep.subr.mxu0 0.0
      %2224 = vmatpush1.msra.mxu0 0.0
      %2225 = vmatprep.subr.mxu0 0.0
      %2226 = vmatpush1.msra.mxu0 0.0
      %2227 = vmatprep.subr.mxu0 0.0
      %2228 = vmatpush1.msra.mxu0 0.0
      %2229 = vmatprep.mubr.f32.mxu0 0.0
      %2230 = vmatmul.mubr.f32.gmra.mrb[0].mxu0 %v2070
      %v2231 = vpop.f32.mrb[0].mxu0
      %v2232 = vadd.f32 0.0, %v2231
      %v2233 = vpop.f32.mrb[0].mxu0
      %2234 = vmatprep.mubr.f32.mxu0 0.0
      %2235 = vmatmul.mubr.f32.gmra.mrb[0].mxu0 %v2073
      %v2236 = vpop.f32.mrb[0].mxu0
      %v2237 = vadd.f32 0.0, %v2236
      %v2238 = vpop.f32.mrb[0].mxu0
      %2239 = vmatprep.mubr.f32.mxu0 0.0
      %2240 = vmatmul.mubr.f32.gmra.mrb[0].mxu0 %v2076
      %v2241 = vpop.f32.mrb[0].mxu0
      %v2242 = vadd.f32 0.0, %v2241
      %v2243 = vpop.f32.mrb[0].mxu0
      %2244 = vmatprep.mubr.f32.mxu0 0.0
      %2245 = vmatmul.mubr.f32.gmra.mrb[0].mxu0 %v2079
      %v2246 = vpop.f32.mrb[0].mxu0
      %v2247 = vadd.f32 0.0, %v2246
      %v2248 = vpop.f32.mrb[0].mxu0
      %2249 = vmatprep.mubr.f32.mxu0 0.0
      %2250 = vmatmul.mubr.f32.gmra.mrb[0].mxu0 %v2082
      %v2251 = vpop.f32.mrb[0].mxu0
      %v2252 = vadd.f32 0.0, %v2251
      %v2253 = vpop.f32.mrb[0].mxu0
      %2254 = vmatprep.mubr.f32.mxu0 0.0
      %2255 = vmatmul.mubr.f32.gmra.mrb[0].mxu0 %v2085
      %v2256 = vpop.f32.mrb[0].mxu0
      %v2257 = vadd.f32 0.0, %v2256
      %v2258 = vpop.f32.mrb[0].mxu0
      %2259 = vmatprep.mubr.f32.mxu0 0.0
      %2260 = vmatmul.mubr.f32.gmra.mrb[0].mxu0 %v2088
      %v2261 = vpop.f32.mrb[0].mxu0
      %v2262 = vadd.f32 0.0, %v2261
      %v2263 = vpop.f32.mrb[0].mxu0
      %2264 = vmatprep.mubr.f32.mxu0 0.0
      %2265 = vmatmul.mubr.f32.gmra.mrb[0].mxu0 %v2091
      %v2266 = vpop.f32.mrb[0].mxu0
      %v2267 = vadd.f32 0.0, %v2266
      %v2268 = vpop.f32.mrb[0].mxu0
      %2269 = vmatprep.mubr.f32.mxu0 0.0
      %2270 = vmatmul.mubr.f32.gmra.mrb[0].mxu0 %v2094
      %v2271 = vpop.f32.mrb[0].mxu0
      %v2272 = vadd.f32 0.0, %v2271
      %v2273 = vpop.f32.mrb[0].mxu0
      %2274 = vmatprep.mubr.f32.mxu0 0.0
      %2275 = vmatmul.mubr.f32.gmra.mrb[0].mxu0 %v2097
      %v2276 = vpop.f32.mrb[0].mxu0
      %v2277 = vadd.f32 0.0, %v2276
      %v2278 = vpop.f32.mrb[0].mxu0
      %2279 = vmatprep.mubr.f32.mxu0 0.0
      %2280 = vmatmul.mubr.f32.gmra.mrb[0].mxu0 %v2100
      %v2281 = vpop.f32.mrb[0].mxu0
      %v2282 = vadd.f32 0.0, %v2281
      %v2283 = vpop.f32.mrb[0].mxu0
      %2284 = vmatprep.mubr.f32.mxu0 0.0
      %2285 = vmatmul.mubr.f32.gmra.mrb[0].mxu0 %v2103
      %v2286 = vpop.f32.mrb[0].mxu0
      %v2287 = vadd.f32 0.0, %v2286
      %v2288 = vpop.f32.mrb[0].mxu0
      %2289 = vmatprep.mubr.f32.mxu0 0.0
      %2290 = vmatmul.mubr.f32.gmra.mrb[0].mxu0 %v2106
      %v2291 = vpop.f32.mrb[0].mxu0
      %v2292 = vadd.f32 0.0, %v2291
      %v2293 = vpop.f32.mrb[0].mxu0
      %2294 = vmatprep.mubr.f32.mxu0 0.0
      %2295 = vmatmul.mubr.f32.gmra.mrb[0].mxu0 %v2109
      %v2296 = vpop.f32.mrb[0].mxu0
      %v2297 = vadd.f32 0.0, %v2296
      %v2298 = vpop.f32.mrb[0].mxu0
      %2299 = vmatprep.mubr.f32.mxu0 0.0
      %2300 = vmatmul.mubr.f32.gmra.mrb[0].mxu0 %v2112
      %v2301 = vpop.f32.mrb[0].mxu0
      %v2302 = vadd.f32 0.0, %v2301
      %v2303 = vpop.f32.mrb[0].mxu0
      %2304 = vmatprep.mubr.f32.mxu0 0.0
      %2305 = vmatmul.mubr.f32.gmra.mrb[0].mxu0 %v2115
      %v2306 = vpop.f32.mrb[0].mxu0
      %v2307 = vadd.f32 0.0, %v2306
      %v2308 = vpop.f32.mrb[0].mxu0
      %2309 = vmatprep.mubr.f32.mxu0 0.0
      %2310 = vmatmul.mubr.f32.gmra.mrb[0].mxu0 %v2118
      %v2311 = vpop.f32.mrb[0].mxu0
      %v2312 = vadd.f32 0.0, %v2311
      %v2313 = vpop.f32.mrb[0].mxu0
      %2314 = vmatprep.mubr.f32.mxu0 0.0
      %2315 = vmatmul.mubr.f32.gmra.mrb[0].mxu0 %v2121
      %v2316 = vpop.f32.mrb[0].mxu0
      %v2317 = vadd.f32 0.0, %v2316
      %v2318 = vpop.f32.mrb[0].mxu0
      %2319 = vmatprep.mubr.f32.mxu0 0.0
      %2320 = vmatmul.mubr.f32.gmra.mrb[0].mxu0 %v2124
      %v2321 = vpop.f32.mrb[0].mxu0
      %v2322 = vadd.f32 0.0, %v2321
      %v2323 = vpop.f32.mrb[0].mxu0
      %2324 = vmatprep.mubr.f32.mxu0 0.0
      %2325 = vmatmul.mubr.f32.gmra.mrb[0].mxu0 %v2127
      %v2326 = vpop.f32.mrb[0].mxu0
      %v2327 = vadd.f32 0.0, %v2326
      %v2328 = vpop.f32.mrb[0].mxu0
      %2329 = vmatprep.mubr.f32.mxu0 0.0
      %2330 = vmatmul.mubr.f32.gmra.mrb[0].mxu0 %v2130
      %v2331 = vpop.f32.mrb[0].mxu0
      %v2332 = vadd.f32 0.0, %v2331
      %v2333 = vpop.f32.mrb[0].mxu0
      %2334 = vmatprep.mubr.f32.mxu0 0.0
      %2335 = vmatmul.mubr.f32.gmra.mrb[0].mxu0 %v2133
      %v2336 = vpop.f32.mrb[0].mxu0
      %v2337 = vadd.f32 0.0, %v2336
      %v2338 = vpop.f32.mrb[0].mxu0
      %2339 = vmatprep.mubr.f32.mxu0 0.0
      %2340 = vmatmul.mubr.f32.gmra.mrb[0].mxu0 %v2136
      %v2341 = vpop.f32.mrb[0].mxu0
      %v2342 = vadd.f32 0.0, %v2341
      %v2343 = vpop.f32.mrb[0].mxu0
      %2344 = vmatprep.mubr.f32.mxu0 0.0
      %2345 = vmatmul.mubr.f32.gmra.mrb[0].mxu0 %v2139
      %v2346 = vpop.f32.mrb[0].mxu0
      %v2347 = vadd.f32 0.0, %v2346
      %v2348 = vpop.f32.mrb[0].mxu0
      %2349 = vmatprep.mubr.f32.mxu0 0.0
      %2350 = vmatmul.mubr.f32.gmra.mrb[0].mxu0 %v2142
      %v2351 = vpop.f32.mrb[0].mxu0
      %v2352 = vadd.f32 0.0, %v2351
      %v2353 = vpop.f32.mrb[0].mxu0
      %2354 = vmatprep.mubr.f32.mxu0 0.0
      %2355 = vmatmul.mubr.f32.gmra.mrb[0].mxu0 %v2145
      %v2356 = vpop.f32.mrb[0].mxu0
      %v2357 = vadd.f32 0.0, %v2356
      %v2358 = vpop.f32.mrb[0].mxu0
      %2359 = vmatprep.mubr.f32.mxu0 0.0
      %2360 = vmatmul.mubr.f32.gmra.mrb[0].mxu0 %v2148
      %v2361 = vpop.f32.mrb[0].mxu0
      %v2362 = vadd.f32 0.0, %v2361
      %v2363 = vpop.f32.mrb[0].mxu0
      %2364 = vmatprep.mubr.f32.mxu0 0.0
      %2365 = vmatmul.mubr.f32.gmra.mrb[0].mxu0 %v2151
      %v2366 = vpop.f32.mrb[0].mxu0
      %v2367 = vadd.f32 0.0, %v2366
      %v2368 = vpop.f32.mrb[0].mxu0
      %2369 = vmatprep.mubr.f32.mxu0 0.0
      %2370 = vmatmul.mubr.f32.gmra.mrb[0].mxu0 %v2154
      %v2371 = vpop.f32.mrb[0].mxu0
      %v2372 = vadd.f32 0.0, %v2371
      %v2373 = vpop.f32.mrb[0].mxu0
      %2374 = vmatprep.mubr.f32.mxu0 0.0
      %2375 = vmatmul.mubr.f32.gmra.mrb[0].mxu0 %v2157
      %v2376 = vpop.f32.mrb[0].mxu0
      %v2377 = vadd.f32 0.0, %v2376
      %v2378 = vpop.f32.mrb[0].mxu0
      %2379 = vmatprep.mubr.f32.mxu0 0.0
      %2380 = vmatmul.mubr.f32.gmra.mrb[0].mxu0 %v2160
      %v2381 = vpop.f32.mrb[0].mxu0
      %v2382 = vadd.f32 0.0, %v2381
      %v2383 = vpop.f32.mrb[0].mxu0
      %2384 = vmatprep.mubr.f32.mxu0 0.0
      %2385 = vmatmul.mubr.f32.gmra.mrb[0].mxu0 %v2163
      %v2386 = vpop.f32.mrb[0].mxu0
      %v2387 = vadd.f32 0.0, %v2386
      %v2388 = vpop.f32.mrb[0].mxu0
      %2389 = vdwg.mxu0
      %v2390 = vadd.f32 %v1875, %v2232
      %v2391 = vadd.f32 %v1880, %v2237
      %v2392 = vadd.f32 %v1885, %v2242
      %v2393 = vadd.f32 %v1890, %v2247
      %v2394 = vadd.f32 %v1895, %v2252
      %v2395 = vadd.f32 %v1900, %v2257
      %v2396 = vadd.f32 %v1905, %v2262
      %v2397 = vadd.f32 %v1910, %v2267
      %v2398 = vadd.f32 %v1915, %v2272
      %v2399 = vadd.f32 %v1920, %v2277
      %v2400 = vadd.f32 %v1925, %v2282
      %v2401 = vadd.f32 %v1930, %v2287
      %v2402 = vadd.f32 %v1935, %v2292
      %v2403 = vadd.f32 %v1940, %v2297
      %v2404 = vadd.f32 %v1945, %v2302
      %v2405 = vadd.f32 %v1950, %v2307
      %v2406 = vadd.f32 %v1955, %v2312
      %v2407 = vadd.f32 %v1960, %v2317
      %v2408 = vadd.f32 %v1965, %v2322
      %v2409 = vadd.f32 %v1970, %v2327
      %v2410 = vadd.f32 %v1975, %v2332
      %v2411 = vadd.f32 %v1980, %v2337
      %v2412 = vadd.f32 %v1985, %v2342
      %v2413 = vadd.f32 %v1990, %v2347
      %v2414 = vadd.f32 %v1995, %v2352
      %v2415 = vadd.f32 %v2000, %v2357
      %v2416 = vadd.f32 %v2005, %v2362
      %v2417 = vadd.f32 %v2010, %v2367
      %v2418 = vadd.f32 %v2015, %v2372
      %v2419 = vadd.f32 %v2020, %v2377
      %v2420 = vadd.f32 %v2025, %v2382
      %v2421 = vadd.f32 %v2030, %v2387
      %2422 = vst.msk [vmem:[%s468] sm:$0xff] %vm692, %v2390
      %2423 = vst.msk [vmem:[%s468 + $0x8] sm:$0xff] %vm692, %v2391
      %2424 = vst.msk [vmem:[%s468 + $0x10] sm:$0xff] %vm692, %v2392
      %2425 = vst.msk [vmem:[%s468 + $0x18] sm:$0xff] %vm692, %v2393
      %2426 = vst.msk [vmem:[%s468 + $0x20] sm:$0xff] %vm692, %v2394
      %2427 = vst.msk [vmem:[%s468 + $0x28] sm:$0xff] %vm692, %v2395
      %2428 = vst.msk [vmem:[%s468 + $0x30] sm:$0xff] %vm692, %v2396
      %2429 = vst.msk [vmem:[%s468 + $0x38] sm:$0xff] %vm692, %v2397
      %2430 = vst.msk [vmem:[%s468 + $0x40] sm:$0xff] %vm692, %v2398
      %2431 = vst.msk [vmem:[%s468 + $0x48] sm:$0xff] %vm692, %v2399
      %2432 = vst.msk [vmem:[%s468 + $0x50] sm:$0xff] %vm692, %v2400
      %2433 = vst.msk [vmem:[%s468 + $0x58] sm:$0xff] %vm692, %v2401
      %2434 = vst.msk [vmem:[%s468 + $0x60] sm:$0xff] %vm692, %v2402
      %2435 = vst.msk [vmem:[%s468 + $0x68] sm:$0xff] %vm692, %v2403
      %2436 = vst.msk [vmem:[%s468 + $0x70] sm:$0xff] %vm692, %v2404
      %2437 = vst.msk [vmem:[%s468 + $0x78] sm:$0xff] %vm692, %v2405
      %2438 = vst.msk [vmem:[%s468 + $0x80] sm:$0xff] %vm692, %v2406
      %2439 = vst.msk [vmem:[%s468 + $0x88] sm:$0xff] %vm692, %v2407
      %2440 = vst.msk [vmem:[%s468 + $0x90] sm:$0xff] %vm692, %v2408
      %2441 = vst.msk [vmem:[%s468 + $0x98] sm:$0xff] %vm692, %v2409
      %2442 = vst.msk [vmem:[%s468 + $0xa0] sm:$0xff] %vm692, %v2410
      %2443 = vst.msk [vmem:[%s468 + $0xa8] sm:$0xff] %vm692, %v2411
      %2444 = vst.msk [vmem:[%s468 + $0xb0] sm:$0xff] %vm692, %v2412
      %2445 = vst.msk [vmem:[%s468 + $0xb8] sm:$0xff] %vm692, %v2413
      %2446 = vst.msk [vmem:[%s468 + $0xc0] sm:$0xff] %vm692, %v2414
      %2447 = vst.msk [vmem:[%s468 + $0xc8] sm:$0xff] %vm692, %v2415
      %2448 = vst.msk [vmem:[%s468 + $0xd0] sm:$0xff] %vm692, %v2416
      %2449 = vst.msk [vmem:[%s468 + $0xd8] sm:$0xff] %vm692, %v2417
      %2450 = vst.msk [vmem:[%s468 + $0xe0] sm:$0xff] %vm692, %v2418
      %2451 = vst.msk [vmem:[%s468 + $0xe8] sm:$0xff] %vm692, %v2419
      %2452 = vst.msk [vmem:[%s468 + $0xf0] sm:$0xff] %vm692, %v2420
      %2453 = vst.msk [vmem:[%s468 + $0xf8] sm:$0xff] %vm692, %v2421
      %v2454 = vsel %vm692, %v2390, 0.0
      %v2455 = vsel %vm692, %v2391, 0.0
      %v2456 = vadd.f32 %v2454, %v2455
      %v2457 = vsel %vm692, %v2392, 0.0
      %v2458 = vadd.f32 %v2456, %v2457
      %v2459 = vsel %vm692, %v2393, 0.0
      %v2460 = vadd.f32 %v2458, %v2459
      %v2461 = vsel %vm692, %v2394, 0.0
      %v2462 = vadd.f32 %v2460, %v2461
      %v2463 = vsel %vm692, %v2395, 0.0
      %v2464 = vadd.f32 %v2462, %v2463
      %v2465 = vsel %vm692, %v2396, 0.0
      %v2466 = vadd.f32 %v2464, %v2465
      %v2467 = vsel %vm692, %v2397, 0.0
      %v2468 = vadd.f32 %v2466, %v2467
      %v2469 = vsel %vm692, %v2398, 0.0
      %v2470 = vadd.f32 %v2468, %v2469
      %v2471 = vsel %vm692, %v2399, 0.0
      %v2472 = vadd.f32 %v2470, %v2471
      %v2473 = vsel %vm692, %v2400, 0.0
      %v2474 = vadd.f32 %v2472, %v2473
      %v2475 = vsel %vm692, %v2401, 0.0
      %v2476 = vadd.f32 %v2474, %v2475
      %v2477 = vsel %vm692, %v2402, 0.0
      %v2478 = vadd.f32 %v2476, %v2477
      %v2479 = vsel %vm692, %v2403, 0.0
      %v2480 = vadd.f32 %v2478, %v2479
      %v2481 = vsel %vm692, %v2404, 0.0
      %v2482 = vadd.f32 %v2480, %v2481
      %v2483 = vsel %vm692, %v2405, 0.0
      %v2484 = vadd.f32 %v2482, %v2483
      %v2485 = vsel %vm692, %v2406, 0.0
      %v2486 = vadd.f32 %v2484, %v2485
      %v2487 = vsel %vm692, %v2407, 0.0
      %v2488 = vadd.f32 %v2486, %v2487
      %v2489 = vsel %vm692, %v2408, 0.0
      %v2490 = vadd.f32 %v2488, %v2489
      %v2491 = vsel %vm692, %v2409, 0.0
      %v2492 = vadd.f32 %v2490, %v2491
      %v2493 = vsel %vm692, %v2410, 0.0
      %v2494 = vadd.f32 %v2492, %v2493
      %v2495 = vsel %vm692, %v2411, 0.0
      %v2496 = vadd.f32 %v2494, %v2495
      %v2497 = vsel %vm692, %v2412, 0.0
      %v2498 = vadd.f32 %v2496, %v2497
      %v2499 = vsel %vm692, %v2413, 0.0
      %v2500 = vadd.f32 %v2498, %v2499
      %v2501 = vsel %vm692, %v2414, 0.0
      %v2502 = vadd.f32 %v2500, %v2501
      %v2503 = vsel %vm692, %v2415, 0.0
      %v2504 = vadd.f32 %v2502, %v2503
      %v2505 = vsel %vm692, %v2416, 0.0
      %v2506 = vadd.f32 %v2504, %v2505
      %v2507 = vsel %vm692, %v2417, 0.0
      %v2508 = vadd.f32 %v2506, %v2507
      %v2509 = vsel %vm692, %v2418, 0.0
      %v2510 = vadd.f32 %v2508, %v2509
      %v2511 = vsel %vm692, %v2419, 0.0
      %v2512 = vadd.f32 %v2510, %v2511
      %v2513 = vsel %vm692, %v2420, 0.0
      %v2514 = vadd.f32 %v2512, %v2513
      %v2515 = vsel %vm692, %v2421, 0.0
      %v2516 = vadd.f32 %v2514, %v2515
      %v2517 = vrot.slane %v2516, 4
      %v2518 = vadd.f32 %v2516, %v2517
      %v2519 = vrot.slane %v2518, 2
      %v2520 = vadd.f32 %v2518, %v2519
      %v2521 = vrot.slane %v2520, 1
      %v2522 = vadd.f32 %v2520, %v2521
      %v2523 = vmul.f32 %v2390, %v2390
      %v2524 = vmul.f32 %v2391, %v2391
      %v2525 = vmul.f32 %v2392, %v2392
      %v2526 = vmul.f32 %v2393, %v2393
      %v2527 = vmul.f32 %v2394, %v2394
      %v2528 = vmul.f32 %v2395, %v2395
      %v2529 = vmul.f32 %v2396, %v2396
      %v2530 = vmul.f32 %v2397, %v2397
      %v2531 = vmul.f32 %v2398, %v2398
      %v2532 = vmul.f32 %v2399, %v2399
      %v2533 = vmul.f32 %v2400, %v2400
      %v2534 = vmul.f32 %v2401, %v2401
      %v2535 = vmul.f32 %v2402, %v2402
      %v2536 = vmul.f32 %v2403, %v2403
      %v2537 = vmul.f32 %v2404, %v2404
      %v2538 = vmul.f32 %v2405, %v2405
      %v2539 = vmul.f32 %v2406, %v2406
      %v2540 = vmul.f32 %v2407, %v2407
      %v2541 = vmul.f32 %v2408, %v2408
      %v2542 = vmul.f32 %v2409, %v2409
      %v2543 = vmul.f32 %v2410, %v2410
      %v2544 = vmul.f32 %v2411, %v2411
      %v2545 = vmul.f32 %v2412, %v2412
      %v2546 = vmul.f32 %v2413, %v2413
      %v2547 = vmul.f32 %v2414, %v2414
      %v2548 = vmul.f32 %v2415, %v2415
      %v2549 = vmul.f32 %v2416, %v2416
      %v2550 = vmul.f32 %v2417, %v2417
      %v2551 = vmul.f32 %v2418, %v2418
      %v2552 = vmul.f32 %v2419, %v2419
      %v2553 = vmul.f32 %v2420, %v2420
      %v2554 = vmul.f32 %v2421, %v2421
      %v2555 = vsel %vm692, %v2523, 0.0
      %v2556 = vsel %vm692, %v2524, 0.0
      %v2557 = vadd.f32 %v2555, %v2556
      %v2558 = vsel %vm692, %v2525, 0.0
      %v2559 = vadd.f32 %v2557, %v2558
      %v2560 = vsel %vm692, %v2526, 0.0
      %v2561 = vadd.f32 %v2559, %v2560
      %v2562 = vsel %vm692, %v2527, 0.0
      %v2563 = vadd.f32 %v2561, %v2562
      %v2564 = vsel %vm692, %v2528, 0.0
      %v2565 = vadd.f32 %v2563, %v2564
      %v2566 = vsel %vm692, %v2529, 0.0
      %v2567 = vadd.f32 %v2565, %v2566
      %v2568 = vsel %vm692, %v2530, 0.0
      %v2569 = vadd.f32 %v2567, %v2568
      %v2570 = vsel %vm692, %v2531, 0.0
      %v2571 = vadd.f32 %v2569, %v2570
      %v2572 = vsel %vm692, %v2532, 0.0
      %v2573 = vadd.f32 %v2571, %v2572
      %v2574 = vsel %vm692, %v2533, 0.0
      %v2575 = vadd.f32 %v2573, %v2574
      %v2576 = vsel %vm692, %v2534, 0.0
      %v2577 = vadd.f32 %v2575, %v2576
      %v2578 = vsel %vm692, %v2535, 0.0
      %v2579 = vadd.f32 %v2577, %v2578
      %v2580 = vsel %vm692, %v2536, 0.0
      %v2581 = vadd.f32 %v2579, %v2580
      %v2582 = vsel %vm692, %v2537, 0.0
      %v2583 = vadd.f32 %v2581, %v2582
      %v2584 = vsel %vm692, %v2538, 0.0
      %v2585 = vadd.f32 %v2583, %v2584
      %v2586 = vsel %vm692, %v2539, 0.0
      %v2587 = vadd.f32 %v2585, %v2586
      %v2588 = vsel %vm692, %v2540, 0.0
      %v2589 = vadd.f32 %v2587, %v2588
      %v2590 = vsel %vm692, %v2541, 0.0
      %v2591 = vadd.f32 %v2589, %v2590
      %v2592 = vsel %vm692, %v2542, 0.0
      %v2593 = vadd.f32 %v2591, %v2592
      %v2594 = vsel %vm692, %v2543, 0.0
      %v2595 = vadd.f32 %v2593, %v2594
      %v2596 = vsel %vm692, %v2544, 0.0
      %v2597 = vadd.f32 %v2595, %v2596
      %v2598 = vsel %vm692, %v2545, 0.0
      %v2599 = vadd.f32 %v2597, %v2598
      %v2600 = vsel %vm692, %v2546, 0.0
      %v2601 = vadd.f32 %v2599, %v2600
      %v2602 = vsel %vm692, %v2547, 0.0
      %v2603 = vadd.f32 %v2601, %v2602
      %v2604 = vsel %vm692, %v2548, 0.0
      %v2605 = vadd.f32 %v2603, %v2604
      %v2606 = vsel %vm692, %v2549, 0.0
      %v2607 = vadd.f32 %v2605, %v2606
      %v2608 = vsel %vm692, %v2550, 0.0
      %v2609 = vadd.f32 %v2607, %v2608
      %v2610 = vsel %vm692, %v2551, 0.0
      %v2611 = vadd.f32 %v2609, %v2610
      %v2612 = vsel %vm692, %v2552, 0.0
      %v2613 = vadd.f32 %v2611, %v2612
      %v2614 = vsel %vm692, %v2553, 0.0
      %v2615 = vadd.f32 %v2613, %v2614
      %v2616 = vsel %vm692, %v2554, 0.0
      %v2617 = vadd.f32 %v2615, %v2616
      %v2618 = vrot.slane %v2617, 4
      %v2619 = vadd.f32 %v2617, %v2618
      %v2620 = vrot.slane %v2619, 2
      %v2621 = vadd.f32 %v2619, %v2620
      %v2622 = vrot.slane %v2621, 1
      %v2623 = vadd.f32 %v2621, %v2622
      %v2624 = vlaneseq
      %v2625 = vshrl.u32 %v2624, 7
      %vm2626 = vcmp.eq.s32.totalorder %v2625, 0
      %v2627 = vsel %vm2626, %v2522, %v2623
      %vm2628 = vcmask 58368
      %2629 = vst.msk [vmem:[%s475] sm:$0x3] %vm2628, %v2627
      %s2630 = sadd.s32 %s24, %s25
      %s2631 = smul.u32 32, %s2630
      %p2632 = scmp.lt.s32.totalorder %s2631, 63
      %s2633 = scalar_select %p2632, %s2631, 63
      %s2634 = smul.addr %s2633, 8
      %s2635 = scalar_lea.vmem %s7, %s2634
      %s2636 = sadd.s32 %s24, %s25
      %p2637 = scmp.lt.s32.totalorder %s2636, 1
      %s2638 = scalar_select %p2637, %s2636, 1
      %s2639 = smul.addr %s2638, 2
      %s2640 = scalar_lea.vmem %s8, %s2639
      // Predicated region
      $region49: #{bottleneck_forward.5} parent=47 // pred_check
        %p2641 = pneg %p240
      $region50: #{bottleneck_forward.5} parent=47 // pred_check_branch
        %2643 = sbr.rel (%p2641) target = $region52
      $region51: #{bottleneck_forward.5} parent=47 // pred_region
        %s2644 = sadd.s32 %s24, %s25
        %s2645 = smul.u32 32, %s2644
      $region52: #{bottleneck_forward.5} parent=47 // pred_fallthru
        _
      // Predicated region
      $region53: #{bottleneck_forward.5} parent=47 // pred_check
        %p2646 = pneg %p268
      $region54: #{bottleneck_forward.5} parent=47 // pred_check_branch
        %2648 = sbr.rel (%p2646) target = $region56
      $region55: #{bottleneck_forward.5} parent=47 // pred_region
        %s2649 = sadd.s32 %s24, %s25
      $region56: #{bottleneck_forward.5} parent=47 // pred_fallthru
        _
    $region48: #{bottleneck_forward.5} parent=5 // pred_fallthru
      _
    %p2650 = scmp.le.s32.totalorder 2, %s15
    // Predicated region
    $region57: #{bottleneck_forward.5} parent=5 // pred_check
      %p2651 = pneg %p2650
    $region58: #{bottleneck_forward.5} parent=5 // pred_check_branch
      %2653 = sbr.rel (%p2651) target = $region60
    $region59: #{bottleneck_forward.5} parent=5 // pred_region
      %s2654 = ssub.s32 %s15, 2
      // Predicated region
      $region61: #{bottleneck_forward.5} parent=59 // pred_check
        %p2655 = pneg %p246
      $region62: #{bottleneck_forward.5} parent=59 // pred_check_branch
        %2657 = sbr.rel (%p2655) target = $region64
      $region63: #{bottleneck_forward.5} parent=59 // pred_region
        %s2658 = sadd.s32 %s26, %s27
        %s2659 = smul.u32 32, %s2658
        %p2660 = scmp.lt.s32.totalorder %s2659, 63
        %s2661 = scalar_select %p2660, %s2659, 63
        %s2662 = smul.addr %s2661, 8
        %s2663 = scalar_lea.vmem %s7, %s2662
      $region64: #{bottleneck_forward.5} parent=59 // pred_fallthru
        _
      // Predicated region
      $region65: #{bottleneck_forward.5} parent=59 // pred_check
        %p2664 = pneg %p274
      $region66: #{bottleneck_forward.5} parent=59 // pred_check_branch
        %2666 = sbr.rel (%p2664) target = $region68
      $region67: #{bottleneck_forward.5} parent=59 // pred_region
        %s2667 = sadd.s32 %s26, %s27
        %p2668 = scmp.lt.s32.totalorder %s2667, 1
        %s2669 = scalar_select %p2668, %s2667, 1
        %s2670 = smul.addr %s2669, 2
        %s2671 = scalar_lea.vmem %s8, %s2670
      $region68: #{bottleneck_forward.5} parent=59 // pred_fallthru
        _
    $region60: #{bottleneck_forward.5} parent=5 // pred_fallthru
      _
  $region6: #{bottleneck_forward.5} parent=0 // loop_footer
    %s19 = sadd.s32 1, %s15
  $region7: #{bottleneck_forward.5} parent=0 // loop_footer_branch
    %14 = sbr.rel target = $region3
  $region8: #{bottleneck_forward.5} parent=0 // loop_exit
    _

</llo_original>
